<compile_context>
chip_gen: v7x
topology: tpu7x:2x2x1
jax: 0.10.0
libtpu: 0.0.40
codegen_flags: <defaults>
</compile_context>

<pallas_src>
import jax
import jax.numpy as jnp
import numpy as np
from jax.experimental import pallas as pl
from jax.experimental.pallas import tpu as pltpu

EPS = 1e-5  # torch.nn.BatchNorm2d default eps


def _fused_block_kernel(x_ref, w1_ref, ws_ref, w2_ref,
                        g1_ref, b1_ref, g2_ref, b2_ref,
                        o_ref, y1p_ref):
    """Whole residual block, VMEM resident.

    x_ref  : (N, A, A, 4*Cin)      bf16  space-to-depth(2) of the TF-padded input
    w1_ref : (4, 4*Cin, Cout)      bf16  conv_1 folded into 4 stride-1 taps on the s2d grid
    ws_ref : (4*Cin, Cout)         bf16  1x1 stride-2 shortcut (uses the (0,0) tap of x_ref)
    w2_ref : (9, Cout, Cout)       bf16  conv_2 3x3 taps
    g*/b*  : (1, Cout)             f32   BN gamma / beta
    o_ref  : (N, OH, OW, Cout)     f32   block output
    y1p_ref: (N, OH+2, OW+2, Cout) bf16  VMEM scratch: BN1+ReLU output with zero halo
    """
    n, ohp2, owp2, cout = y1p_ref.shape
    oh, ow = ohp2 - 2, owp2 - 2
    cin4 = x_ref.shape[-1]
    m = n * oh * ow
    inv_m = 1.0 / m

    # ---- conv_1: stride-2 3x3 conv == 4 shifted bf16 matmuls on the s2d input -----------
    # The W-shift lands on the sublane axis (relayout-prone), so it is hoisted and performed
    # only twice; the H-shift is a cheap leading-axis slice in the inner loop.
    acc = jnp.zeros((m, cout), jnp.float32)
    for dw in range(2):
        slab = x_ref[:, :, dw:dw + ow, :]                       # (n, A, ow, cin4)
        for dh in range(2):
            tap = slab[:, dh:dh + oh, :, :].reshape(m, cin4)
            acc = acc + jnp.dot(tap, w1_ref[dh * 2 + dw],
                                preferred_element_type=jnp.float32)

    # ---- BN1 (training-mode batch stats, two-pass: center then square) + ReLU -----------
    mu1 = jnp.sum(acc, axis=0, keepdims=True) * inv_m
    c1 = acc - mu1
    var1 = jnp.sum(c1 * c1, axis=0, keepdims=True) * inv_m
    scale1 = g1_ref[...] * jax.lax.rsqrt(var1 + EPS)
    y1 = jnp.maximum(c1 * scale1 + b1_ref[...], 0.0)

    # conv_1 output stays in VMEM (bf16); the zero halo supplies conv_2's pad=1.
    # Zero ONLY the halo frame -- the interior is fully overwritten by the next store.
    zrow = jnp.zeros((n, 1, owp2, cout), y1p_ref.dtype)
    zcol = jnp.zeros((n, ohp2, 1, cout), y1p_ref.dtype)
    y1p_ref[:, 0:1, :, :] = zrow
    y1p_ref[:, oh + 1:oh + 2, :, :] = zrow
    y1p_ref[:, :, 0:1, :] = zcol
    y1p_ref[:, :, ow + 1:ow + 2, :] = zcol
    y1p_ref[:, 1:1 + oh, 1:1 + ow, :] = (
        y1.reshape(n, oh, ow, cout).astype(y1p_ref.dtype))

    # ---- conv_2: 3x3 stride-1 pad-1 == 9 shifted bf16 matmuls from the VMEM scratch -----
    acc2 = jnp.zeros((m, cout), jnp.float32)
    for kw in range(3):
        slab = y1p_ref[:, :, kw:kw + ow, :]                     # (n, oh+2, ow, cout)
        for kh in range(3):
            tap = slab[:, kh:kh + oh, :, :].reshape(m, cout)
            acc2 = acc2 + jnp.dot(tap, w2_ref[kh * 3 + kw],
                                  preferred_element_type=jnp.float32)

    # Shortcut 1x1/s2: the (0,0) s2d tap is still VMEM-resident; computing it here (just
    # before the epilogue) keeps its (m, cout) f32 live range minimal.
    sc = jnp.dot(x_ref[:, 0:oh, 0:ow, :].reshape(m, cin4), ws_ref[...],
                 preferred_element_type=jnp.float32)

    # ---- BN2 (two-pass batch stats) + shortcut add + ReLU -------------------------------
    mu2 = jnp.sum(acc2, axis=0, keepdims=True) * inv_m
    c2 = acc2 - mu2
    var2 = jnp.sum(c2 * c2, axis=0, keepdims=True) * inv_m
    scale2 = g2_ref[...] * jax.lax.rsqrt(var2 + EPS)
    o_ref[...] = jnp.maximum(c2 * scale2 + b2_ref[...] + sc,
                             0.0).reshape(n, oh, ow, cout)


def s_residual_block_first(x, params, stride=2):
    """x: (N, Cin, H, W) f32 -> (N, Cout, OH, OW) f32 (PyTorch training-mode forward)."""
    w1, w2, ws, g1, b1, g2, b2 = (
        params[k] for k in ("w1", "w2", "ws", "g1", "b1", "g2", "b2"))
    n, cin, h, w = x.shape
    cout = w1.shape[0]
    assert cin != cout, "only the conv-shortcut branch (in_channel != out_channel) is implemented"
    assert stride == 2 and h % 2 == 0 and w % 2 == 0

    oh = (h + 1 - 3) // stride + 1
    ow = (w + 1 - 3) // stride + 1
    a_h, a_w = (h + 2) // 2, (w + 2) // 2            # space-to-depth grid size
    cin4 = 4 * cin

    # Channel axes are kept at their TRUE sizes (full-dim blocks are legal); padding 8-16
    # real channels to 128 lanes would inflate HBM traffic / VMEM / output writeback 8-16x.

    # input: NHWC, TF pad (+1 bottom/right), +1 more to make even, space-to-depth(2), bf16.
    x_nhwc = jnp.transpose(x, (0, 2, 3, 1))
    xp = jnp.pad(x_nhwc, ((0, 0), (0, 2), (0, 2), (0, 0)))
    xs2d = (xp.reshape(n, a_h, 2, a_w, 2, cin)
              .transpose(0, 1, 3, 2, 4, 5)           # (n, a, b, p, q, c)
              .reshape(n, a_h, a_w, cin4)).astype(jnp.bfloat16)

    # conv_1 weight: fold (3x3, stride 2) into 4 stride-1 taps over the s2d channel layout.
    w1e = jnp.zeros((cout, cin, 4, 4), jnp.float32).at[:, :, :3, :3].set(w1)
    w1p = (w1e.reshape(cout, cin, 2, 2, 2, 2)        # (co, c, dh, p, dw, q)
              .transpose(2, 4, 3, 5, 1, 0)           # (dh, dw, p, q, c, co)
              .reshape(4, cin4, cout)).astype(jnp.bfloat16)

    # shortcut 1x1 weight lives in the (p=0, q=0) block of the s2d channel layout.
    wsp = (jnp.zeros((cin4, cout), jnp.float32)
             .at[:cin, :].set(ws.reshape(cout, cin).T)).astype(jnp.bfloat16)

    # conv_2 weight: 9 taps.
    w2p = w2.transpose(2, 3, 1, 0).reshape(9, cout, cout).astype(jnp.bfloat16)

    g1p, b1p = g1.reshape(1, cout), b1.reshape(1, cout)
    g2p, b2p = g2.reshape(1, cout), b2.reshape(1, cout)

    m = n * oh * ow
    flops = 2 * m * cout * (5 * cin4 + 9 * cout)     # 4 conv_1 taps + shortcut + 9 conv_2 taps
    bytes_accessed = ((xs2d.size + w1p.size + wsp.size + w2p.size) * 2
                      + (g1p.size + b1p.size + g2p.size + b2p.size) * 4
                      + m * cout * 4)

    vmem = pl.BlockSpec(memory_space=pltpu.MemorySpace.VMEM)
    out = pl.pallas_call(
        _fused_block_kernel,
        out_shape=jax.ShapeDtypeStruct((n, oh, ow, cout), jnp.float32),
        in_specs=[vmem] * 8,
        out_specs=vmem,
        scratch_shapes=[pltpu.VMEM((n, oh + 2, ow + 2, cout), jnp.bfloat16)],
        cost_estimate=pl.CostEstimate(flops=flops, transcendentals=2 * cout,
                                      bytes_accessed=bytes_accessed),
        compiler_params=pltpu.CompilerParams(vmem_limit_bytes=32 * 1024 * 1024),
    )(xs2d, w1p, wsp, w2p, g1p, b1p, g2p, b2p)

    return jnp.transpose(out, (0, 3, 1, 2))


def _reference(x, params, stride=2):
    """Pure-JAX reference matching the PyTorch forward (fresh module, training-mode BN)."""
    w1, w2, ws, g1, b1, g2, b2 = (
        params[k] for k in ("w1", "w2", "ws", "g1", "b1", "g2", "b2"))
    dn = ("NCHW", "OIHW", "NCHW")
    prec = jax.lax.Precision.HIGHEST

    def bn(t, g, b):
        mu = t.mean(axis=(0, 2, 3), keepdims=True)
        var = ((t - mu) ** 2).mean(axis=(0, 2, 3), keepdims=True)
        return (t - mu) / jnp.sqrt(var + EPS) * g.reshape(1, -1, 1, 1) + b.reshape(1, -1, 1, 1)

    sc = jax.lax.conv_general_dilated(x, ws, (stride, stride), "VALID",
                                      dimension_numbers=dn, precision=prec)
    xp = jnp.pad(x, ((0, 0), (0, 0), (0, 1), (0, 1)))
    y = jax.lax.conv_general_dilated(xp, w1, (stride, stride), "VALID",
                                     dimension_numbers=dn, precision=prec)
    y = jnp.maximum(bn(y, g1, b1), 0.0)
    y = jax.lax.conv_general_dilated(y, w2, (1, 1), ((1, 1), (1, 1)),
                                     dimension_numbers=dn, precision=prec)
    return jnp.maximum(bn(y, g2, b2) + sc, 0.0)


if __name__ == "__main__":
    key = jax.random.PRNGKey(0)
    kx, k1, k2, k3 = jax.random.split(key, 4)

    N, CIN, COUT, H, W, STRIDE = 2, 4, 8, 16, 16, 2
    x = jax.random.normal(kx, (N, CIN, H, W), dtype=jnp.float32)

    # s_conv init: normal(std = 2 / filter_size^2 / out_channel), bias=False.
    # BatchNorm2d init: weight(gamma)=1, bias(beta)=0.
    params = {
        "w1": jax.random.normal(k1, (COUT, CIN, 3, 3), jnp.float32) * (2.0 / 3 / 3 / COUT),
        "w2": jax.random.normal(k2, (COUT, COUT, 3, 3), jnp.float32) * (2.0 / 3 / 3 / COUT),
        "ws": jax.random.normal(k3, (COUT, CIN, 1, 1), jnp.float32) * (2.0 / 1 / 1 / COUT),
        "g1": jnp.ones((COUT,), jnp.float32),
        "b1": jnp.zeros((COUT,), jnp.float32),
        "g2": jnp.ones((COUT,), jnp.float32),
        "b2": jnp.zeros((COUT,), jnp.float32),
    }

    out = jax.block_until_ready(s_residual_block_first(x, params, stride=STRIDE))
    ref = jax.block_until_ready(_reference(x, params, stride=STRIDE))
    # bf16 MXU operands vs. f32 Precision.HIGHEST reference -> slightly looser tolerance.
    np.testing.assert_allclose(np.asarray(out), np.asarray(ref), rtol=1e-2, atol=2e-2)
    print("KERNEL_OK")
</pallas_src>

<mosaic_0001>
module attributes {stable_mosaic.version = 11 : i64} {
  func.func @_fused_block_kernel(%arg0: memref<2x9x9x16xbf16, #tpu.memory_space<vmem>>, %arg1: memref<4x16x8xbf16, #tpu.memory_space<vmem>>, %arg2: memref<16x8xbf16, #tpu.memory_space<vmem>>, %arg3: memref<9x8x8xbf16, #tpu.memory_space<vmem>>, %arg4: memref<1x8xf32, #tpu.memory_space<vmem>>, %arg5: memref<1x8xf32, #tpu.memory_space<vmem>>, %arg6: memref<1x8xf32, #tpu.memory_space<vmem>>, %arg7: memref<1x8xf32, #tpu.memory_space<vmem>>, %arg8: memref<2x8x8x8xf32, #tpu.memory_space<vmem>>, %arg9: memref<2x10x10x8xbf16, #tpu.memory_space<vmem>>) attributes {dimension_semantics = [], scalar_prefetch = 0 : i64, scratch_operands = 1 : i64, tpu.core_type = #tpu.core_type<tc>} {
    %cst = arith.constant 0.000000e+00 : f32
    %0 = vector.broadcast %cst : f32 to vector<128x8xf32>
    %c0 = arith.constant 0 : index
    %c0_0 = arith.constant 0 : index
    %c0_1 = arith.constant 0 : index
    %c0_2 = arith.constant 0 : index
    %1 = vector.load %arg0[%c0, %c0_0, %c0_1, %c0_2] : memref<2x9x9x16xbf16, #tpu.memory_space<vmem>>, vector<2x9x8x16xbf16>
    %2 = vector.extract_strided_slice %1 {offsets = [0, 0, 0, 0], sizes = [2, 8, 8, 16], strides = [1, 1, 1, 1]} : vector<2x9x8x16xbf16> to vector<2x8x8x16xbf16>
    %3 = vector.shape_cast %2 : vector<2x8x8x16xbf16> to vector<128x16xbf16>
    %c0_3 = arith.constant 0 : index
    %c0_4 = arith.constant 0 : index
    %c0_5 = arith.constant 0 : index
    %4 = vector.load %arg1[%c0_3, %c0_4, %c0_5] : memref<4x16x8xbf16, #tpu.memory_space<vmem>>, vector<1x16x8xbf16>
    %5 = vector.shape_cast %4 : vector<1x16x8xbf16> to vector<16x8xbf16>
    %cst_6 = arith.constant dense<0.000000e+00> : vector<128x8xf32>
    %6 = tpu.matmul %3, %5, %cst_6 {dimension_numbers = #tpu.dot_dimension_numbers<[1], [0], [0], [1], [0, 0, 1, 1], [], []>} : vector<128x16xbf16>, vector<16x8xbf16>, vector<128x8xf32> -> vector<128x8xf32>
    %7 = arith.addf %0, %6 : vector<128x8xf32>
    %8 = vector.extract_strided_slice %1 {offsets = [0, 1, 0, 0], sizes = [2, 8, 8, 16], strides = [1, 1, 1, 1]} : vector<2x9x8x16xbf16> to vector<2x8x8x16xbf16>
    %9 = vector.shape_cast %8 : vector<2x8x8x16xbf16> to vector<128x16xbf16>
    %c2 = arith.constant 2 : index
    %c0_7 = arith.constant 0 : index
    %c0_8 = arith.constant 0 : index
    %10 = vector.load %arg1[%c2, %c0_7, %c0_8] : memref<4x16x8xbf16, #tpu.memory_space<vmem>>, vector<1x16x8xbf16>
    %11 = vector.shape_cast %10 : vector<1x16x8xbf16> to vector<16x8xbf16>
    %cst_9 = arith.constant dense<0.000000e+00> : vector<128x8xf32>
    %12 = tpu.matmul %9, %11, %cst_9 {dimension_numbers = #tpu.dot_dimension_numbers<[1], [0], [0], [1], [0, 0, 1, 1], [], []>} : vector<128x16xbf16>, vector<16x8xbf16>, vector<128x8xf32> -> vector<128x8xf32>
    %13 = arith.addf %7, %12 : vector<128x8xf32>
    %c0_10 = arith.constant 0 : index
    %c0_11 = arith.constant 0 : index
    %c1 = arith.constant 1 : index
    %c0_12 = arith.constant 0 : index
    %14 = vector.load %arg0[%c0_10, %c0_11, %c1, %c0_12] : memref<2x9x9x16xbf16, #tpu.memory_space<vmem>>, vector<2x9x8x16xbf16>
    %15 = vector.extract_strided_slice %14 {offsets = [0, 0, 0, 0], sizes = [2, 8, 8, 16], strides = [1, 1, 1, 1]} : vector<2x9x8x16xbf16> to vector<2x8x8x16xbf16>
    %16 = vector.shape_cast %15 : vector<2x8x8x16xbf16> to vector<128x16xbf16>
    %c1_13 = arith.constant 1 : index
    %c0_14 = arith.constant 0 : index
    %c0_15 = arith.constant 0 : index
    %17 = vector.load %arg1[%c1_13, %c0_14, %c0_15] : memref<4x16x8xbf16, #tpu.memory_space<vmem>>, vector<1x16x8xbf16>
    %18 = vector.shape_cast %17 : vector<1x16x8xbf16> to vector<16x8xbf16>
    %cst_16 = arith.constant dense<0.000000e+00> : vector<128x8xf32>
    %19 = tpu.matmul %16, %18, %cst_16 {dimension_numbers = #tpu.dot_dimension_numbers<[1], [0], [0], [1], [0, 0, 1, 1], [], []>} : vector<128x16xbf16>, vector<16x8xbf16>, vector<128x8xf32> -> vector<128x8xf32>
    %20 = arith.addf %13, %19 : vector<128x8xf32>
    %21 = vector.extract_strided_slice %14 {offsets = [0, 1, 0, 0], sizes = [2, 8, 8, 16], strides = [1, 1, 1, 1]} : vector<2x9x8x16xbf16> to vector<2x8x8x16xbf16>
    %22 = vector.shape_cast %21 : vector<2x8x8x16xbf16> to vector<128x16xbf16>
    %c3 = arith.constant 3 : index
    %c0_17 = arith.constant 0 : index
    %c0_18 = arith.constant 0 : index
    %23 = vector.load %arg1[%c3, %c0_17, %c0_18] : memref<4x16x8xbf16, #tpu.memory_space<vmem>>, vector<1x16x8xbf16>
    %24 = vector.shape_cast %23 : vector<1x16x8xbf16> to vector<16x8xbf16>
    %cst_19 = arith.constant dense<0.000000e+00> : vector<128x8xf32>
    %25 = tpu.matmul %22, %24, %cst_19 {dimension_numbers = #tpu.dot_dimension_numbers<[1], [0], [0], [1], [0, 0, 1, 1], [], []>} : vector<128x16xbf16>, vector<16x8xbf16>, vector<128x8xf32> -> vector<128x8xf32>
    %26 = arith.addf %20, %25 : vector<128x8xf32>
    %cst_20 = arith.constant dense<0.000000e+00> : vector<8xf32>
    %27 = vector.multi_reduction <add>, %26, %cst_20 [0] : vector<128x8xf32> to vector<8xf32>
    %28 = vector.shape_cast %27 : vector<8xf32> to vector<1x8xf32>
    %cst_21 = arith.constant 7.812500e-03 : f32
    %29 = vector.broadcast %cst_21 : f32 to vector<1x8xf32>
    %30 = arith.mulf %28, %29 : vector<1x8xf32>
    %31 = vector.broadcast %30 : vector<1x8xf32> to vector<128x8xf32>
    %32 = arith.subf %26, %31 : vector<128x8xf32>
    %33 = arith.mulf %32, %32 : vector<128x8xf32>
    %cst_22 = arith.constant dense<0.000000e+00> : vector<8xf32>
    %34 = vector.multi_reduction <add>, %33, %cst_22 [0] : vector<128x8xf32> to vector<8xf32>
    %35 = vector.shape_cast %34 : vector<8xf32> to vector<1x8xf32>
    %cst_23 = arith.constant 7.812500e-03 : f32
    %36 = vector.broadcast %cst_23 : f32 to vector<1x8xf32>
    %37 = arith.mulf %35, %36 : vector<1x8xf32>
    %c0_24 = arith.constant 0 : index
    %c0_25 = arith.constant 0 : index
    %38 = vector.load %arg4[%c0_24, %c0_25] : memref<1x8xf32, #tpu.memory_space<vmem>>, vector<1x8xf32>
    %cst_26 = arith.constant 9.99999974E-6 : f32
    %39 = vector.broadcast %cst_26 : f32 to vector<1x8xf32>
    %40 = arith.addf %37, %39 : vector<1x8xf32>
    %41 = math.rsqrt %40 : vector<1x8xf32>
    %42 = arith.mulf %38, %41 : vector<1x8xf32>
    %43 = vector.broadcast %42 : vector<1x8xf32> to vector<128x8xf32>
    %44 = arith.mulf %32, %43 : vector<128x8xf32>
    %c0_27 = arith.constant 0 : index
    %c0_28 = arith.constant 0 : index
    %45 = vector.load %arg5[%c0_27, %c0_28] : memref<1x8xf32, #tpu.memory_space<vmem>>, vector<1x8xf32>
    %46 = vector.broadcast %45 : vector<1x8xf32> to vector<128x8xf32>
    %47 = arith.addf %44, %46 : vector<128x8xf32>
    %cst_29 = arith.constant 0.000000e+00 : f32
    %48 = vector.broadcast %cst_29 : f32 to vector<128x8xf32>
    %49 = arith.maximumf %47, %48 : vector<128x8xf32>
    %cst_30 = arith.constant 0.000000e+00 : bf16
    %50 = vector.broadcast %cst_30 : bf16 to vector<2x1x10x8xbf16>
    %cst_31 = arith.constant 0.000000e+00 : bf16
    %51 = vector.broadcast %cst_31 : bf16 to vector<2x10x1x8xbf16>
    %c0_32 = arith.constant 0 : index
    %c0_33 = arith.constant 0 : index
    %c0_34 = arith.constant 0 : index
    %c0_35 = arith.constant 0 : index
    %52 = vector.load %arg9[%c0_32, %c0_33, %c0_34, %c0_35] : memref<2x10x10x8xbf16, #tpu.memory_space<vmem>>, vector<2x1x10x8xbf16>
    tpu.vector_store %arg9[%c0_32, %c0_33, %c0_34, %c0_35], %50 {strides = array<i32>} : memref<2x10x10x8xbf16, #tpu.memory_space<vmem>>, vector<2x1x10x8xbf16>,
    %c0_36 = arith.constant 0 : index
    %c9 = arith.constant 9 : index
    %c0_37 = arith.constant 0 : index
    %c0_38 = arith.constant 0 : index
    %53 = vector.load %arg9[%c0_36, %c9, %c0_37, %c0_38] : memref<2x10x10x8xbf16, #tpu.memory_space<vmem>>, vector<2x1x10x8xbf16>
    tpu.vector_store %arg9[%c0_36, %c9, %c0_37, %c0_38], %50 {strides = array<i32>} : memref<2x10x10x8xbf16, #tpu.memory_space<vmem>>, vector<2x1x10x8xbf16>,
    %c0_39 = arith.constant 0 : index
    %c0_40 = arith.constant 0 : index
    %c0_41 = arith.constant 0 : index
    %c0_42 = arith.constant 0 : index
    %54 = vector.load %arg9[%c0_39, %c0_40, %c0_41, %c0_42] : memref<2x10x10x8xbf16, #tpu.memory_space<vmem>>, vector<2x10x1x8xbf16>
    tpu.vector_store %arg9[%c0_39, %c0_40, %c0_41, %c0_42], %51 {strides = array<i32>} : memref<2x10x10x8xbf16, #tpu.memory_space<vmem>>, vector<2x10x1x8xbf16>,
    %c0_43 = arith.constant 0 : index
    %c0_44 = arith.constant 0 : index
    %c9_45 = arith.constant 9 : index
    %c0_46 = arith.constant 0 : index
    %55 = vector.load %arg9[%c0_43, %c0_44, %c9_45, %c0_46] : memref<2x10x10x8xbf16, #tpu.memory_space<vmem>>, vector<2x10x1x8xbf16>
    tpu.vector_store %arg9[%c0_43, %c0_44, %c9_45, %c0_46], %51 {strides = array<i32>} : memref<2x10x10x8xbf16, #tpu.memory_space<vmem>>, vector<2x10x1x8xbf16>,
    %56 = vector.shape_cast %49 : vector<128x8xf32> to vector<2x8x8x8xf32>
    %57 = arith.truncf %56 : vector<2x8x8x8xf32> to vector<2x8x8x8xbf16>
    %c0_47 = arith.constant 0 : index
    %c1_48 = arith.constant 1 : index
    %c1_49 = arith.constant 1 : index
    %c0_50 = arith.constant 0 : index
    %58 = vector.load %arg9[%c0_47, %c1_48, %c1_49, %c0_50] : memref<2x10x10x8xbf16, #tpu.memory_space<vmem>>, vector<2x8x8x8xbf16>
    tpu.vector_store %arg9[%c0_47, %c1_48, %c1_49, %c0_50], %57 {strides = array<i32>} : memref<2x10x10x8xbf16, #tpu.memory_space<vmem>>, vector<2x8x8x8xbf16>,
    %cst_51 = arith.constant 0.000000e+00 : f32
    %59 = vector.broadcast %cst_51 : f32 to vector<128x8xf32>
    %c0_52 = arith.constant 0 : index
    %c0_53 = arith.constant 0 : index
    %c0_54 = arith.constant 0 : index
    %c0_55 = arith.constant 0 : index
    %60 = vector.load %arg9[%c0_52, %c0_53, %c0_54, %c0_55] : memref<2x10x10x8xbf16, #tpu.memory_space<vmem>>, vector<2x10x8x8xbf16>
    %61 = vector.extract_strided_slice %60 {offsets = [0, 0, 0, 0], sizes = [2, 8, 8, 8], strides = [1, 1, 1, 1]} : vector<2x10x8x8xbf16> to vector<2x8x8x8xbf16>
    %62 = vector.shape_cast %61 : vector<2x8x8x8xbf16> to vector<128x8xbf16>
    %c0_56 = arith.constant 0 : index
    %c0_57 = arith.constant 0 : index
    %c0_58 = arith.constant 0 : index
    %63 = vector.load %arg3[%c0_56, %c0_57, %c0_58] : memref<9x8x8xbf16, #tpu.memory_space<vmem>>, vector<1x8x8xbf16>
    %64 = vector.shape_cast %63 : vector<1x8x8xbf16> to vector<8x8xbf16>
    %cst_59 = arith.constant dense<0.000000e+00> : vector<128x8xf32>
    %65 = tpu.matmul %62, %64, %cst_59 {dimension_numbers = #tpu.dot_dimension_numbers<[1], [0], [0], [1], [0, 0, 1, 1], [], []>} : vector<128x8xbf16>, vector<8x8xbf16>, vector<128x8xf32> -> vector<128x8xf32>
    %66 = arith.addf %59, %65 : vector<128x8xf32>
    %67 = vector.extract_strided_slice %60 {offsets = [0, 1, 0, 0], sizes = [2, 8, 8, 8], strides = [1, 1, 1, 1]} : vector<2x10x8x8xbf16> to vector<2x8x8x8xbf16>
    %68 = vector.shape_cast %67 : vector<2x8x8x8xbf16> to vector<128x8xbf16>
    %c3_60 = arith.constant 3 : index
    %c0_61 = arith.constant 0 : index
    %c0_62 = arith.constant 0 : index
    %69 = vector.load %arg3[%c3_60, %c0_61, %c0_62] : memref<9x8x8xbf16, #tpu.memory_space<vmem>>, vector<1x8x8xbf16>
    %70 = vector.shape_cast %69 : vector<1x8x8xbf16> to vector<8x8xbf16>
    %cst_63 = arith.constant dense<0.000000e+00> : vector<128x8xf32>
    %71 = tpu.matmul %68, %70, %cst_63 {dimension_numbers = #tpu.dot_dimension_numbers<[1], [0], [0], [1], [0, 0, 1, 1], [], []>} : vector<128x8xbf16>, vector<8x8xbf16>, vector<128x8xf32> -> vector<128x8xf32>
    %72 = arith.addf %66, %71 : vector<128x8xf32>
    %73 = vector.extract_strided_slice %60 {offsets = [0, 2, 0, 0], sizes = [2, 8, 8, 8], strides = [1, 1, 1, 1]} : vector<2x10x8x8xbf16> to vector<2x8x8x8xbf16>
    %74 = vector.shape_cast %73 : vector<2x8x8x8xbf16> to vector<128x8xbf16>
    %c6 = arith.constant 6 : index
    %c0_64 = arith.constant 0 : index
    %c0_65 = arith.constant 0 : index
    %75 = vector.load %arg3[%c6, %c0_64, %c0_65] : memref<9x8x8xbf16, #tpu.memory_space<vmem>>, vector<1x8x8xbf16>
    %76 = vector.shape_cast %75 : vector<1x8x8xbf16> to vector<8x8xbf16>
    %cst_66 = arith.constant dense<0.000000e+00> : vector<128x8xf32>
    %77 = tpu.matmul %74, %76, %cst_66 {dimension_numbers = #tpu.dot_dimension_numbers<[1], [0], [0], [1], [0, 0, 1, 1], [], []>} : vector<128x8xbf16>, vector<8x8xbf16>, vector<128x8xf32> -> vector<128x8xf32>
    %78 = arith.addf %72, %77 : vector<128x8xf32>
    %c0_67 = arith.constant 0 : index
    %c0_68 = arith.constant 0 : index
    %c1_69 = arith.constant 1 : index
    %c0_70 = arith.constant 0 : index
    %79 = vector.load %arg9[%c0_67, %c0_68, %c1_69, %c0_70] : memref<2x10x10x8xbf16, #tpu.memory_space<vmem>>, vector<2x10x8x8xbf16>
    %80 = vector.extract_strided_slice %79 {offsets = [0, 0, 0, 0], sizes = [2, 8, 8, 8], strides = [1, 1, 1, 1]} : vector<2x10x8x8xbf16> to vector<2x8x8x8xbf16>
    %81 = vector.shape_cast %80 : vector<2x8x8x8xbf16> to vector<128x8xbf16>
    %c1_71 = arith.constant 1 : index
    %c0_72 = arith.constant 0 : index
    %c0_73 = arith.constant 0 : index
    %82 = vector.load %arg3[%c1_71, %c0_72, %c0_73] : memref<9x8x8xbf16, #tpu.memory_space<vmem>>, vector<1x8x8xbf16>
    %83 = vector.shape_cast %82 : vector<1x8x8xbf16> to vector<8x8xbf16>
    %cst_74 = arith.constant dense<0.000000e+00> : vector<128x8xf32>
    %84 = tpu.matmul %81, %83, %cst_74 {dimension_numbers = #tpu.dot_dimension_numbers<[1], [0], [0], [1], [0, 0, 1, 1], [], []>} : vector<128x8xbf16>, vector<8x8xbf16>, vector<128x8xf32> -> vector<128x8xf32>
    %85 = arith.addf %78, %84 : vector<128x8xf32>
    %86 = vector.extract_strided_slice %79 {offsets = [0, 1, 0, 0], sizes = [2, 8, 8, 8], strides = [1, 1, 1, 1]} : vector<2x10x8x8xbf16> to vector<2x8x8x8xbf16>
    %87 = vector.shape_cast %86 : vector<2x8x8x8xbf16> to vector<128x8xbf16>
    %c4 = arith.constant 4 : index
    %c0_75 = arith.constant 0 : index
    %c0_76 = arith.constant 0 : index
    %88 = vector.load %arg3[%c4, %c0_75, %c0_76] : memref<9x8x8xbf16, #tpu.memory_space<vmem>>, vector<1x8x8xbf16>
    %89 = vector.shape_cast %88 : vector<1x8x8xbf16> to vector<8x8xbf16>
    %cst_77 = arith.constant dense<0.000000e+00> : vector<128x8xf32>
    %90 = tpu.matmul %87, %89, %cst_77 {dimension_numbers = #tpu.dot_dimension_numbers<[1], [0], [0], [1], [0, 0, 1, 1], [], []>} : vector<128x8xbf16>, vector<8x8xbf16>, vector<128x8xf32> -> vector<128x8xf32>
    %91 = arith.addf %85, %90 : vector<128x8xf32>
    %92 = vector.extract_strided_slice %79 {offsets = [0, 2, 0, 0], sizes = [2, 8, 8, 8], strides = [1, 1, 1, 1]} : vector<2x10x8x8xbf16> to vector<2x8x8x8xbf16>
    %93 = vector.shape_cast %92 : vector<2x8x8x8xbf16> to vector<128x8xbf16>
    %c7 = arith.constant 7 : index
    %c0_78 = arith.constant 0 : index
    %c0_79 = arith.constant 0 : index
    %94 = vector.load %arg3[%c7, %c0_78, %c0_79] : memref<9x8x8xbf16, #tpu.memory_space<vmem>>, vector<1x8x8xbf16>
    %95 = vector.shape_cast %94 : vector<1x8x8xbf16> to vector<8x8xbf16>
    %cst_80 = arith.constant dense<0.000000e+00> : vector<128x8xf32>
    %96 = tpu.matmul %93, %95, %cst_80 {dimension_numbers = #tpu.dot_dimension_numbers<[1], [0], [0], [1], [0, 0, 1, 1], [], []>} : vector<128x8xbf16>, vector<8x8xbf16>, vector<128x8xf32> -> vector<128x8xf32>
    %97 = arith.addf %91, %96 : vector<128x8xf32>
    %c0_81 = arith.constant 0 : index
    %c0_82 = arith.constant 0 : index
    %c2_83 = arith.constant 2 : index
    %c0_84 = arith.constant 0 : index
    %98 = vector.load %arg9[%c0_81, %c0_82, %c2_83, %c0_84] : memref<2x10x10x8xbf16, #tpu.memory_space<vmem>>, vector<2x10x8x8xbf16>
    %99 = vector.extract_strided_slice %98 {offsets = [0, 0, 0, 0], sizes = [2, 8, 8, 8], strides = [1, 1, 1, 1]} : vector<2x10x8x8xbf16> to vector<2x8x8x8xbf16>
    %100 = vector.shape_cast %99 : vector<2x8x8x8xbf16> to vector<128x8xbf16>
    %c2_85 = arith.constant 2 : index
    %c0_86 = arith.constant 0 : index
    %c0_87 = arith.constant 0 : index
    %101 = vector.load %arg3[%c2_85, %c0_86, %c0_87] : memref<9x8x8xbf16, #tpu.memory_space<vmem>>, vector<1x8x8xbf16>
    %102 = vector.shape_cast %101 : vector<1x8x8xbf16> to vector<8x8xbf16>
    %cst_88 = arith.constant dense<0.000000e+00> : vector<128x8xf32>
    %103 = tpu.matmul %100, %102, %cst_88 {dimension_numbers = #tpu.dot_dimension_numbers<[1], [0], [0], [1], [0, 0, 1, 1], [], []>} : vector<128x8xbf16>, vector<8x8xbf16>, vector<128x8xf32> -> vector<128x8xf32>
    %104 = arith.addf %97, %103 : vector<128x8xf32>
    %105 = vector.extract_strided_slice %98 {offsets = [0, 1, 0, 0], sizes = [2, 8, 8, 8], strides = [1, 1, 1, 1]} : vector<2x10x8x8xbf16> to vector<2x8x8x8xbf16>
    %106 = vector.shape_cast %105 : vector<2x8x8x8xbf16> to vector<128x8xbf16>
    %c5 = arith.constant 5 : index
    %c0_89 = arith.constant 0 : index
    %c0_90 = arith.constant 0 : index
    %107 = vector.load %arg3[%c5, %c0_89, %c0_90] : memref<9x8x8xbf16, #tpu.memory_space<vmem>>, vector<1x8x8xbf16>
    %108 = vector.shape_cast %107 : vector<1x8x8xbf16> to vector<8x8xbf16>
    %cst_91 = arith.constant dense<0.000000e+00> : vector<128x8xf32>
    %109 = tpu.matmul %106, %108, %cst_91 {dimension_numbers = #tpu.dot_dimension_numbers<[1], [0], [0], [1], [0, 0, 1, 1], [], []>} : vector<128x8xbf16>, vector<8x8xbf16>, vector<128x8xf32> -> vector<128x8xf32>
    %110 = arith.addf %104, %109 : vector<128x8xf32>
    %111 = vector.extract_strided_slice %98 {offsets = [0, 2, 0, 0], sizes = [2, 8, 8, 8], strides = [1, 1, 1, 1]} : vector<2x10x8x8xbf16> to vector<2x8x8x8xbf16>
    %112 = vector.shape_cast %111 : vector<2x8x8x8xbf16> to vector<128x8xbf16>
    %c8 = arith.constant 8 : index
    %c0_92 = arith.constant 0 : index
    %c0_93 = arith.constant 0 : index
    %113 = vector.load %arg3[%c8, %c0_92, %c0_93] : memref<9x8x8xbf16, #tpu.memory_space<vmem>>, vector<1x8x8xbf16>
    %114 = vector.shape_cast %113 : vector<1x8x8xbf16> to vector<8x8xbf16>
    %cst_94 = arith.constant dense<0.000000e+00> : vector<128x8xf32>
    %115 = tpu.matmul %112, %114, %cst_94 {dimension_numbers = #tpu.dot_dimension_numbers<[1], [0], [0], [1], [0, 0, 1, 1], [], []>} : vector<128x8xbf16>, vector<8x8xbf16>, vector<128x8xf32> -> vector<128x8xf32>
    %116 = arith.addf %110, %115 : vector<128x8xf32>
    %c0_95 = arith.constant 0 : index
    %c0_96 = arith.constant 0 : index
    %c0_97 = arith.constant 0 : index
    %c0_98 = arith.constant 0 : index
    %117 = vector.load %arg0[%c0_95, %c0_96, %c0_97, %c0_98] : memref<2x9x9x16xbf16, #tpu.memory_space<vmem>>, vector<2x8x8x16xbf16>
    %118 = vector.shape_cast %117 : vector<2x8x8x16xbf16> to vector<128x16xbf16>
    %c0_99 = arith.constant 0 : index
    %c0_100 = arith.constant 0 : index
    %119 = vector.load %arg2[%c0_99, %c0_100] : memref<16x8xbf16, #tpu.memory_space<vmem>>, vector<16x8xbf16>
    %cst_101 = arith.constant dense<0.000000e+00> : vector<128x8xf32>
    %120 = tpu.matmul %118, %119, %cst_101 {dimension_numbers = #tpu.dot_dimension_numbers<[1], [0], [0], [1], [0, 0, 1, 1], [], []>} : vector<128x16xbf16>, vector<16x8xbf16>, vector<128x8xf32> -> vector<128x8xf32>
    %cst_102 = arith.constant dense<0.000000e+00> : vector<8xf32>
    %121 = vector.multi_reduction <add>, %116, %cst_102 [0] : vector<128x8xf32> to vector<8xf32>
    %122 = vector.shape_cast %121 : vector<8xf32> to vector<1x8xf32>
    %cst_103 = arith.constant 7.812500e-03 : f32
    %123 = vector.broadcast %cst_103 : f32 to vector<1x8xf32>
    %124 = arith.mulf %122, %123 : vector<1x8xf32>
    %125 = vector.broadcast %124 : vector<1x8xf32> to vector<128x8xf32>
    %126 = arith.subf %116, %125 : vector<128x8xf32>
    %127 = arith.mulf %126, %126 : vector<128x8xf32>
    %cst_104 = arith.constant dense<0.000000e+00> : vector<8xf32>
    %128 = vector.multi_reduction <add>, %127, %cst_104 [0] : vector<128x8xf32> to vector<8xf32>
    %129 = vector.shape_cast %128 : vector<8xf32> to vector<1x8xf32>
    %cst_105 = arith.constant 7.812500e-03 : f32
    %130 = vector.broadcast %cst_105 : f32 to vector<1x8xf32>
    %131 = arith.mulf %129, %130 : vector<1x8xf32>
    %c0_106 = arith.constant 0 : index
    %c0_107 = arith.constant 0 : index
    %132 = vector.load %arg6[%c0_106, %c0_107] : memref<1x8xf32, #tpu.memory_space<vmem>>, vector<1x8xf32>
    %cst_108 = arith.constant 9.99999974E-6 : f32
    %133 = vector.broadcast %cst_108 : f32 to vector<1x8xf32>
    %134 = arith.addf %131, %133 : vector<1x8xf32>
    %135 = math.rsqrt %134 : vector<1x8xf32>
    %136 = arith.mulf %132, %135 : vector<1x8xf32>
    %137 = vector.broadcast %136 : vector<1x8xf32> to vector<128x8xf32>
    %138 = arith.mulf %126, %137 : vector<128x8xf32>
    %c0_109 = arith.constant 0 : index
    %c0_110 = arith.constant 0 : index
    %139 = vector.load %arg7[%c0_109, %c0_110] : memref<1x8xf32, #tpu.memory_space<vmem>>, vector<1x8xf32>
    %140 = vector.broadcast %139 : vector<1x8xf32> to vector<128x8xf32>
    %141 = arith.addf %138, %140 : vector<128x8xf32>
    %142 = arith.addf %141, %120 : vector<128x8xf32>
    %cst_111 = arith.constant 0.000000e+00 : f32
    %143 = vector.broadcast %cst_111 : f32 to vector<128x8xf32>
    %144 = arith.maximumf %142, %143 : vector<128x8xf32>
    %145 = vector.shape_cast %144 : vector<128x8xf32> to vector<2x8x8x8xf32>
    %c0_112 = arith.constant 0 : index
    %c0_113 = arith.constant 0 : index
    %c0_114 = arith.constant 0 : index
    %c0_115 = arith.constant 0 : index
    %146 = vector.load %arg8[%c0_112, %c0_113, %c0_114, %c0_115] : memref<2x8x8x8xf32, #tpu.memory_space<vmem>>, vector<2x8x8x8xf32>
    tpu.vector_store %arg8[%c0_112, %c0_113, %c0_114, %c0_115], %145 {strides = array<i32>} : memref<2x8x8x8xf32, #tpu.memory_space<vmem>>, vector<2x8x8x8xf32>,
    return
  }
}

</mosaic_0001>

<llo_original>
// kernel: tpu_custom_call.1
$region0: #{tpu_custom_call.1}
  #allocation0 [shape = 'u32[]', space=smem, size = 0x4, offset = 0x4, fixed_abs, tag = 'smem constant byte address 0x4 - core index']
  #allocation1 [shape = 'u32[144,128]{1,0:T(1,128)}', space=vmem, size = 0x12000, scoped, tag = 'internal scratch']
  #allocation2 [shape = 'bf16[2,10,10,8]{3,2,1,0:T(8,128)(2,1)}', space=vmem, size = 0x14000, scoped, tag = 'scratch operand']
  %s0 = inlined_call_operand.vmem [shape: bf16[2,9,9,16], index: 0, kind: input, shape index: {}]
  %s1 = inlined_call_operand.vmem [shape: bf16[4,16,8], index: 1, kind: input, shape index: {}]
  %s2 = inlined_call_operand.vmem [shape: bf16[16,8], index: 2, kind: input, shape index: {}]
  %s3 = inlined_call_operand.vmem [shape: bf16[9,8,8], index: 3, kind: input, shape index: {}]
  %s4 = inlined_call_operand.vmem [shape: f32[1,8], index: 4, kind: input, shape index: {}]
  %s5 = inlined_call_operand.vmem [shape: f32[1,8], index: 5, kind: input, shape index: {}]
  %s6 = inlined_call_operand.vmem [shape: f32[1,8], index: 6, kind: input, shape index: {}]
  %s7 = inlined_call_operand.vmem [shape: f32[1,8], index: 7, kind: input, shape index: {}]
  %s8 = inlined_call_operand.hbm [shape: f32[2,8,8,8], index: 8, kind: output, shape index: {}]
  %s9 = sld [smem:[#allocation0]]
  $region42: #{tpu_custom_call.1} parent=0
    _
  %s11 = ssub.s32 1, %s9
  %s12 = scalar_select 0, %s11, %s9
  $region1: #{tpu_custom_call.1} parent=0
    #allocation3 [shape = 'u8[65536]{0}', space=vmem, size = 0x10000, scoped, tag = 'output window, operand 0, single buffered']
    #allocation4 [shape = 's32[1]{0}', space=sflag, size = 0x4, scoped, tag = 'scoped memory for tpu_custom_call.1']
    %13 = vsyncpa [#allocation4], 0
    // Predicated region
    $region2: #{tpu_custom_call.1} parent=1 // pred_check
      _
    $region3: #{tpu_custom_call.1} parent=1 // pred_check_branch
      %15 = sbr.rel (0) target = $region5
    $region4: #{tpu_custom_call.1} parent=1 // pred_region
      _
    $region5: #{tpu_custom_call.1} parent=1 // pred_fallthru
      _
    // Predicated region
    $region6: #{tpu_custom_call.1} parent=1 // pred_check
      _
    $region7: #{tpu_custom_call.1} parent=1 // pred_check_branch
      %17 = sbr.rel (0) target = $region9
    $region8: #{tpu_custom_call.1} parent=1 // pred_region
      _
    $region9: #{tpu_custom_call.1} parent=1 // pred_fallthru
      _
    // Predicated region
    $region10: #{tpu_custom_call.1} parent=1 // pred_check
      _
    $region11: #{tpu_custom_call.1} parent=1 // pred_check_branch
      %19 = sbr.rel (0) target = $region13
    $region12: #{tpu_custom_call.1} parent=1 // pred_region
      _
    $region13: #{tpu_custom_call.1} parent=1 // pred_fallthru
      _
    // Predicated region
    $region14: #{tpu_custom_call.1} parent=1 // pred_check
      _
    $region15: #{tpu_custom_call.1} parent=1 // pred_check_branch
      %21 = sbr.rel (0) target = $region17
    $region16: #{tpu_custom_call.1} parent=1 // pred_region
      _
    $region17: #{tpu_custom_call.1} parent=1 // pred_fallthru
      _
    // Predicated region
    $region18: #{tpu_custom_call.1} parent=1 // pred_check
      _
    $region19: #{tpu_custom_call.1} parent=1 // pred_check_branch
      %23 = sbr.rel (0) target = $region21
    $region20: #{tpu_custom_call.1} parent=1 // pred_region
      _
    $region21: #{tpu_custom_call.1} parent=1 // pred_fallthru
      _
    // Predicated region
    $region22: #{tpu_custom_call.1} parent=1 // pred_check
      _
    $region23: #{tpu_custom_call.1} parent=1 // pred_check_branch
      %25 = sbr.rel (0) target = $region25
    $region24: #{tpu_custom_call.1} parent=1 // pred_region
      _
    $region25: #{tpu_custom_call.1} parent=1 // pred_fallthru
      _
    // Predicated region
    $region26: #{tpu_custom_call.1} parent=1 // pred_check
      _
    $region27: #{tpu_custom_call.1} parent=1 // pred_check_branch
      %27 = sbr.rel (0) target = $region29
    $region28: #{tpu_custom_call.1} parent=1 // pred_region
      _
    $region29: #{tpu_custom_call.1} parent=1 // pred_fallthru
      _
    // Predicated region
    $region30: #{tpu_custom_call.1} parent=1 // pred_check
      _
    $region31: #{tpu_custom_call.1} parent=1 // pred_check_branch
      %29 = sbr.rel (0) target = $region33
    $region32: #{tpu_custom_call.1} parent=1 // pred_region
      _
    $region33: #{tpu_custom_call.1} parent=1 // pred_fallthru
      _
    %v31 = vld [vmem:[%s0] sm:$0xf]
    %v32 = vld [vmem:[%s0 + $0x8] sm:$0xf]
    %v33 = vld [vmem:[%s0 + $0x10] sm:$0xf]
    %v34 = vld [vmem:[%s0 + $0x18] sm:$0xf]
    %v35 = vld [vmem:[%s0 + $0x20] sm:$0xf]
    %v36 = vld [vmem:[%s0 + $0x28] sm:$0xf]
    %v37 = vld [vmem:[%s0 + $0x30] sm:$0xf]
    %v38 = vld [vmem:[%s0 + $0x38] sm:$0xf]
    %v39 = vld [vmem:[%s0 + $0x40] sm:$0xf]
    %v40 = vld [vmem:[%s0 + $0x48] sm:$0xf]
    %v41 = vld [vmem:[%s0 + $0x50] sm:$0xf]
    %v42 = vld [vmem:[%s0 + $0x58] sm:$0xf]
    %v43 = vld [vmem:[%s0 + $0x60] sm:$0xf]
    %v44 = vld [vmem:[%s0 + $0x68] sm:$0xf]
    %v45 = vld [vmem:[%s0 + $0x70] sm:$0xf]
    %v46 = vld [vmem:[%s0 + $0x78] sm:$0xf]
    %v47 = vld [vmem:[%s0 + $0x80] sm:$0xf]
    %v48 = vld [vmem:[%s0 + $0x88] sm:$0xf]
    %v49 = vld [vmem:[%s1] sm:$0xf]
    %v50 = vld [vmem:[%s1 + $0x4] sm:$0xf]
    %s51 = scalar_lea.vmem %s1, 16
    %v52 = vld [vmem:[%s51] sm:$0xf]
    %v53 = vld [vmem:[%s51 + $0x4] sm:$0xf]
    %v70 = vunpack.c.l.b16 %v32
    %v71 = vunpack.c.l.b16 %v33
    %v72 = vunpack.c.l.b16 %v34
    %v73 = vunpack.c.l.b16 %v35
    %v74 = vunpack.c.l.b16 %v36
    %v75 = vunpack.c.l.b16 %v37
    %v76 = vunpack.c.l.b16 %v38
    %v77 = vunpack.c.l.b16 %v39
    %v78 = vunpack.c.l.b16 %v41
    %v79 = vunpack.c.l.b16 %v42
    %v80 = vunpack.c.l.b16 %v43
    %v81 = vunpack.c.l.b16 %v44
    %v82 = vunpack.c.l.b16 %v45
    %v83 = vunpack.c.l.b16 %v46
    %v84 = vunpack.c.l.b16 %v47
    %v85 = vunpack.c.l.b16 %v48
    %v86 = vpack.c.b16 %v71, %v70
    %v87 = vpack.c.b16 %v73, %v72
    %v88 = vpack.c.b16 %v75, %v74
    %v89 = vpack.c.b16 %v77, %v76
    %v90 = vpack.c.b16 %v79, %v78
    %v91 = vpack.c.b16 %v81, %v80
    %v92 = vpack.c.b16 %v83, %v82
    %v93 = vpack.c.b16 %v85, %v84
    %v96 = vunpack.c.l.b16 %v52
    %v97 = vunpack.c.l.b16 %v53
    %v98 = vpack.c.b16 %v97, %v96
    %vm100 = vcmask 130048
    %v102 = vsel %vm100, %v86, 0
    %v105 = vsel %vm100, %v87, 0
    %v108 = vsel %vm100, %v88, 0
    %v111 = vsel %vm100, %v89, 0
    %v114 = vsel %vm100, %v90, 0
    %v117 = vsel %vm100, %v91, 0
    %v120 = vsel %vm100, %v92, 0
    %v123 = vsel %vm100, %v93, 0
    %125 = vmatprep.subr.bf16.mxu0 0
    %126 = vmatpush1.bf16.msra.mxu0 %v98
    %127 = vmatprep.subr.bf16.mxu0 0
    %128 = vmatpush1.bf16.msra.mxu0 0
    %129 = vmatprep.subr.bf16.mxu0 0
    %130 = vmatpush1.bf16.msra.mxu0 0
    %131 = vmatprep.subr.bf16.mxu0 0
    %132 = vmatpush1.bf16.msra.mxu0 0
    %133 = vmatprep.subr.bf16.mxu0 0
    %134 = vmatpush1.bf16.msra.mxu0 0
    %135 = vmatprep.subr.bf16.mxu0 0
    %136 = vmatpush1.bf16.msra.mxu0 0
    %137 = vmatprep.subr.bf16.mxu0 0
    %138 = vmatpush1.bf16.msra.mxu0 0
    %139 = vmatprep.subr.bf16.mxu0 0
    %140 = vmatpush1.bf16.msra.mxu0 0
    %141 = vmatprep.subr.bf16.mxu0 0
    %142 = vmatpush1.bf16.msra.mxu0 0
    %143 = vmatprep.subr.bf16.mxu0 0
    %144 = vmatpush1.bf16.msra.mxu0 0
    %145 = vmatprep.subr.bf16.mxu0 0
    %146 = vmatpush1.bf16.msra.mxu0 0
    %147 = vmatprep.subr.bf16.mxu0 0
    %148 = vmatpush1.bf16.msra.mxu0 0
    %149 = vmatprep.subr.bf16.mxu0 0
    %150 = vmatpush1.bf16.msra.mxu0 0
    %151 = vmatprep.subr.bf16.mxu0 0
    %152 = vmatpush1.bf16.msra.mxu0 0
    %153 = vmatprep.subr.bf16.mxu0 0
    %154 = vmatpush1.bf16.msra.mxu0 0
    %155 = vmatprep.subr.bf16.mxu0 0
    %156 = vmatpush1.bf16.msra.mxu0 0
    %157 = vmatprep.mubr.bf16.mxu0 0
    %158 = vmatmul.mubr.bf16.gmra.mrb[0].mxu0 %v102
    %v159 = vpop.f32.mrb[0].mxu0
    %v160 = vadd.f32 0.0, %v159
    %v161 = vpop.f32.mrb[0].mxu0
    %v162 = vpop.f32.mrb[0].mxu0
    %v163 = vadd.f32 0.0, %v162
    %v164 = vpop.f32.mrb[0].mxu0
    %165 = vmatprep.mubr.bf16.mxu0 0
    %166 = vmatmul.mubr.bf16.gmra.mrb[0].mxu0 %v105
    %v167 = vpop.f32.mrb[0].mxu0
    %v168 = vadd.f32 0.0, %v167
    %v169 = vpop.f32.mrb[0].mxu0
    %v170 = vpop.f32.mrb[0].mxu0
    %v171 = vadd.f32 0.0, %v170
    %v172 = vpop.f32.mrb[0].mxu0
    %173 = vmatprep.mubr.bf16.mxu0 0
    %174 = vmatmul.mubr.bf16.gmra.mrb[0].mxu0 %v108
    %v175 = vpop.f32.mrb[0].mxu0
    %v176 = vadd.f32 0.0, %v175
    %v177 = vpop.f32.mrb[0].mxu0
    %v178 = vpop.f32.mrb[0].mxu0
    %v179 = vadd.f32 0.0, %v178
    %v180 = vpop.f32.mrb[0].mxu0
    %181 = vmatprep.mubr.bf16.mxu0 0
    %182 = vmatmul.mubr.bf16.gmra.mrb[0].mxu0 %v111
    %v183 = vpop.f32.mrb[0].mxu0
    %v184 = vadd.f32 0.0, %v183
    %v185 = vpop.f32.mrb[0].mxu0
    %v186 = vpop.f32.mrb[0].mxu0
    %v187 = vadd.f32 0.0, %v186
    %v188 = vpop.f32.mrb[0].mxu0
    %189 = vmatprep.mubr.bf16.mxu0 0
    %190 = vmatmul.mubr.bf16.gmra.mrb[0].mxu0 %v114
    %v191 = vpop.f32.mrb[0].mxu0
    %v192 = vadd.f32 0.0, %v191
    %v193 = vpop.f32.mrb[0].mxu0
    %v194 = vpop.f32.mrb[0].mxu0
    %v195 = vadd.f32 0.0, %v194
    %v196 = vpop.f32.mrb[0].mxu0
    %197 = vmatprep.mubr.bf16.mxu0 0
    %198 = vmatmul.mubr.bf16.gmra.mrb[0].mxu0 %v117
    %v199 = vpop.f32.mrb[0].mxu0
    %v200 = vadd.f32 0.0, %v199
    %v201 = vpop.f32.mrb[0].mxu0
    %v202 = vpop.f32.mrb[0].mxu0
    %v203 = vadd.f32 0.0, %v202
    %v204 = vpop.f32.mrb[0].mxu0
    %205 = vmatprep.mubr.bf16.mxu0 0
    %206 = vmatmul.mubr.bf16.gmra.mrb[0].mxu0 %v120
    %v207 = vpop.f32.mrb[0].mxu0
    %v208 = vadd.f32 0.0, %v207
    %v209 = vpop.f32.mrb[0].mxu0
    %v210 = vpop.f32.mrb[0].mxu0
    %v211 = vadd.f32 0.0, %v210
    %v212 = vpop.f32.mrb[0].mxu0
    %213 = vmatprep.mubr.bf16.mxu0 0
    %214 = vmatmul.mubr.bf16.gmra.mrb[0].mxu0 %v123
    %v215 = vpop.f32.mrb[0].mxu0
    %v216 = vadd.f32 0.0, %v215
    %v217 = vpop.f32.mrb[0].mxu0
    %v218 = vpop.f32.mrb[0].mxu0
    %v219 = vadd.f32 0.0, %v218
    %v220 = vpop.f32.mrb[0].mxu0
    %221 = vdwg.mxu0
    %v224 = vunpack.c.l.b16 %v31
    %v225 = vunpack.c.l.b16 %v40
    %v226 = vpack.c.b16 %v70, %v224
    %v227 = vpack.c.b16 %v72, %v71
    %v228 = vpack.c.b16 %v74, %v73
    %v229 = vpack.c.b16 %v76, %v75
    %v230 = vpack.c.b16 %v78, %v225
    %v231 = vpack.c.b16 %v80, %v79
    %v232 = vpack.c.b16 %v82, %v81
    %v233 = vpack.c.b16 %v84, %v83
    %v236 = vunpack.c.l.b16 %v49
    %v237 = vunpack.c.l.b16 %v50
    %v238 = vpack.c.b16 %v237, %v236
    %v241 = vsel %vm100, %v226, 0
    %v244 = vsel %vm100, %v227, 0
    %v247 = vsel %vm100, %v228, 0
    %v250 = vsel %vm100, %v229, 0
    %v253 = vsel %vm100, %v230, 0
    %v256 = vsel %vm100, %v231, 0
    %v259 = vsel %vm100, %v232, 0
    %v262 = vsel %vm100, %v233, 0
    %264 = vmatprep.subr.bf16.mxu0 0
    %265 = vmatpush1.bf16.msra.mxu0 %v238
    %266 = vmatprep.subr.bf16.mxu0 0
    %267 = vmatpush1.bf16.msra.mxu0 0
    %268 = vmatprep.subr.bf16.mxu0 0
    %269 = vmatpush1.bf16.msra.mxu0 0
    %270 = vmatprep.subr.bf16.mxu0 0
    %271 = vmatpush1.bf16.msra.mxu0 0
    %272 = vmatprep.subr.bf16.mxu0 0
    %273 = vmatpush1.bf16.msra.mxu0 0
    %274 = vmatprep.subr.bf16.mxu0 0
    %275 = vmatpush1.bf16.msra.mxu0 0
    %276 = vmatprep.subr.bf16.mxu0 0
    %277 = vmatpush1.bf16.msra.mxu0 0
    %278 = vmatprep.subr.bf16.mxu0 0
    %279 = vmatpush1.bf16.msra.mxu0 0
    %280 = vmatprep.subr.bf16.mxu0 0
    %281 = vmatpush1.bf16.msra.mxu0 0
    %282 = vmatprep.subr.bf16.mxu0 0
    %283 = vmatpush1.bf16.msra.mxu0 0
    %284 = vmatprep.subr.bf16.mxu0 0
    %285 = vmatpush1.bf16.msra.mxu0 0
    %286 = vmatprep.subr.bf16.mxu0 0
    %287 = vmatpush1.bf16.msra.mxu0 0
    %288 = vmatprep.subr.bf16.mxu0 0
    %289 = vmatpush1.bf16.msra.mxu0 0
    %290 = vmatprep.subr.bf16.mxu0 0
    %291 = vmatpush1.bf16.msra.mxu0 0
    %292 = vmatprep.subr.bf16.mxu0 0
    %293 = vmatpush1.bf16.msra.mxu0 0
    %294 = vmatprep.subr.bf16.mxu0 0
    %295 = vmatpush1.bf16.msra.mxu0 0
    %296 = vmatprep.mubr.bf16.mxu0 0
    %297 = vmatmul.mubr.bf16.gmra.mrb[0].mxu0 %v241
    %v298 = vpop.f32.mrb[0].mxu0
    %v299 = vadd.f32 %v160, %v298
    %v300 = vpop.f32.mrb[0].mxu0
    %v301 = vpop.f32.mrb[0].mxu0
    %v302 = vadd.f32 %v163, %v301
    %v303 = vpop.f32.mrb[0].mxu0
    %304 = vmatprep.mubr.bf16.mxu0 0
    %305 = vmatmul.mubr.bf16.gmra.mrb[0].mxu0 %v244
    %v306 = vpop.f32.mrb[0].mxu0
    %v307 = vadd.f32 %v168, %v306
    %v308 = vpop.f32.mrb[0].mxu0
    %v309 = vpop.f32.mrb[0].mxu0
    %v310 = vadd.f32 %v171, %v309
    %v311 = vpop.f32.mrb[0].mxu0
    %312 = vmatprep.mubr.bf16.mxu0 0
    %313 = vmatmul.mubr.bf16.gmra.mrb[0].mxu0 %v247
    %v314 = vpop.f32.mrb[0].mxu0
    %v315 = vadd.f32 %v176, %v314
    %v316 = vpop.f32.mrb[0].mxu0
    %v317 = vpop.f32.mrb[0].mxu0
    %v318 = vadd.f32 %v179, %v317
    %v319 = vpop.f32.mrb[0].mxu0
    %320 = vmatprep.mubr.bf16.mxu0 0
    %321 = vmatmul.mubr.bf16.gmra.mrb[0].mxu0 %v250
    %v322 = vpop.f32.mrb[0].mxu0
    %v323 = vadd.f32 %v184, %v322
    %v324 = vpop.f32.mrb[0].mxu0
    %v325 = vpop.f32.mrb[0].mxu0
    %v326 = vadd.f32 %v187, %v325
    %v327 = vpop.f32.mrb[0].mxu0
    %328 = vmatprep.mubr.bf16.mxu0 0
    %329 = vmatmul.mubr.bf16.gmra.mrb[0].mxu0 %v253
    %v330 = vpop.f32.mrb[0].mxu0
    %v331 = vadd.f32 %v192, %v330
    %v332 = vpop.f32.mrb[0].mxu0
    %v333 = vpop.f32.mrb[0].mxu0
    %v334 = vadd.f32 %v195, %v333
    %v335 = vpop.f32.mrb[0].mxu0
    %336 = vmatprep.mubr.bf16.mxu0 0
    %337 = vmatmul.mubr.bf16.gmra.mrb[0].mxu0 %v256
    %v338 = vpop.f32.mrb[0].mxu0
    %v339 = vadd.f32 %v200, %v338
    %v340 = vpop.f32.mrb[0].mxu0
    %v341 = vpop.f32.mrb[0].mxu0
    %v342 = vadd.f32 %v203, %v341
    %v343 = vpop.f32.mrb[0].mxu0
    %344 = vmatprep.mubr.bf16.mxu0 0
    %345 = vmatmul.mubr.bf16.gmra.mrb[0].mxu0 %v259
    %v346 = vpop.f32.mrb[0].mxu0
    %v347 = vadd.f32 %v208, %v346
    %v348 = vpop.f32.mrb[0].mxu0
    %v349 = vpop.f32.mrb[0].mxu0
    %v350 = vadd.f32 %v211, %v349
    %v351 = vpop.f32.mrb[0].mxu0
    %352 = vmatprep.mubr.bf16.mxu0 0
    %353 = vmatmul.mubr.bf16.gmra.mrb[0].mxu0 %v262
    %v354 = vpop.f32.mrb[0].mxu0
    %v355 = vadd.f32 %v216, %v354
    %v356 = vpop.f32.mrb[0].mxu0
    %v357 = vpop.f32.mrb[0].mxu0
    %v358 = vadd.f32 %v219, %v357
    %v359 = vpop.f32.mrb[0].mxu0
    %360 = vdwg.mxu0
    %v361 = vld [vmem:[%s0] sm:$0xf]
    %v362 = vld [vmem:[%s0 + $0x4] sm:$0x1]
    %v363 = vld [vmem:[%s0 + $0x8] sm:$0xf]
    %v364 = vld [vmem:[%s0 + $0xc] sm:$0x1]
    %v365 = vld [vmem:[%s0 + $0x10] sm:$0xf]
    %v366 = vld [vmem:[%s0 + $0x14] sm:$0x1]
    %v367 = vld [vmem:[%s0 + $0x18] sm:$0xf]
    %v368 = vld [vmem:[%s0 + $0x1c] sm:$0x1]
    %v369 = vld [vmem:[%s0 + $0x20] sm:$0xf]
    %v370 = vld [vmem:[%s0 + $0x24] sm:$0x1]
    %v371 = vld [vmem:[%s0 + $0x28] sm:$0xf]
    %v372 = vld [vmem:[%s0 + $0x2c] sm:$0x1]
    %v373 = vld [vmem:[%s0 + $0x30] sm:$0xf]
    %v374 = vld [vmem:[%s0 + $0x34] sm:$0x1]
    %v375 = vld [vmem:[%s0 + $0x38] sm:$0xf]
    %v376 = vld [vmem:[%s0 + $0x3c] sm:$0x1]
    %v377 = vld [vmem:[%s0 + $0x40] sm:$0xf]
    %v378 = vld [vmem:[%s0 + $0x44] sm:$0x1]
    %v379 = vld [vmem:[%s0 + $0x48] sm:$0xf]
    %v380 = vld [vmem:[%s0 + $0x4c] sm:$0x1]
    %v381 = vld [vmem:[%s0 + $0x50] sm:$0xf]
    %v382 = vld [vmem:[%s0 + $0x54] sm:$0x1]
    %v383 = vld [vmem:[%s0 + $0x58] sm:$0xf]
    %v384 = vld [vmem:[%s0 + $0x5c] sm:$0x1]
    %v385 = vld [vmem:[%s0 + $0x60] sm:$0xf]
    %v386 = vld [vmem:[%s0 + $0x64] sm:$0x1]
    %v387 = vld [vmem:[%s0 + $0x68] sm:$0xf]
    %v388 = vld [vmem:[%s0 + $0x6c] sm:$0x1]
    %v389 = vld [vmem:[%s0 + $0x70] sm:$0xf]
    %v390 = vld [vmem:[%s0 + $0x74] sm:$0x1]
    %v391 = vld [vmem:[%s0 + $0x78] sm:$0xf]
    %v392 = vld [vmem:[%s0 + $0x7c] sm:$0x1]
    %v393 = vld [vmem:[%s0 + $0x80] sm:$0xf]
    %v394 = vld [vmem:[%s0 + $0x84] sm:$0x1]
    %v395 = vld [vmem:[%s0 + $0x88] sm:$0xf]
    %v396 = vld [vmem:[%s0 + $0x8c] sm:$0x1]
    %vm397 = vsmask.f32 3328
    %vm398 = vsmask.f32 7440
    %vm399 = vmor %vm397, %vm398
    %v401 = vshrl.u32 %v361, 16
    %v403 = vrot.slane %v401, 4
    %v404 = vshll.u32 %v361, 16
    %v406 = vrot.slane %v404, 5
    %v407 = vor.u32 %v403, %v406
    %v408 = vrot.slane %v407, 4
    %v410 = vshll.u32 %v362, 16
    %v412 = vrot.slane %v410, 5
    %v413 = vsel %vm399, %v408, %v412
    %v415 = vshrl.u32 %v363, 16
    %v417 = vrot.slane %v415, 4
    %v418 = vshll.u32 %v363, 16
    %v420 = vrot.slane %v418, 5
    %v421 = vor.u32 %v417, %v420
    %v422 = vrot.slane %v421, 4
    %v424 = vshll.u32 %v364, 16
    %v426 = vrot.slane %v424, 5
    %v427 = vsel %vm399, %v422, %v426
    %v429 = vshrl.u32 %v365, 16
    %v431 = vrot.slane %v429, 4
    %v432 = vshll.u32 %v365, 16
    %v434 = vrot.slane %v432, 5
    %v435 = vor.u32 %v431, %v434
    %v436 = vrot.slane %v435, 4
    %v438 = vshll.u32 %v366, 16
    %v440 = vrot.slane %v438, 5
    %v441 = vsel %vm399, %v436, %v440
    %v443 = vshrl.u32 %v367, 16
    %v445 = vrot.slane %v443, 4
    %v446 = vshll.u32 %v367, 16
    %v448 = vrot.slane %v446, 5
    %v449 = vor.u32 %v445, %v448
    %v450 = vrot.slane %v449, 4
    %v452 = vshll.u32 %v368, 16
    %v454 = vrot.slane %v452, 5
    %v455 = vsel %vm399, %v450, %v454
    %v457 = vshrl.u32 %v369, 16
    %v459 = vrot.slane %v457, 4
    %v460 = vshll.u32 %v369, 16
    %v462 = vrot.slane %v460, 5
    %v463 = vor.u32 %v459, %v462
    %v464 = vrot.slane %v463, 4
    %v466 = vshll.u32 %v370, 16
    %v468 = vrot.slane %v466, 5
    %v469 = vsel %vm399, %v464, %v468
    %v471 = vshrl.u32 %v371, 16
    %v473 = vrot.slane %v471, 4
    %v474 = vshll.u32 %v371, 16
    %v476 = vrot.slane %v474, 5
    %v477 = vor.u32 %v473, %v476
    %v478 = vrot.slane %v477, 4
    %v480 = vshll.u32 %v372, 16
    %v482 = vrot.slane %v480, 5
    %v483 = vsel %vm399, %v478, %v482
    %v485 = vshrl.u32 %v373, 16
    %v487 = vrot.slane %v485, 4
    %v488 = vshll.u32 %v373, 16
    %v490 = vrot.slane %v488, 5
    %v491 = vor.u32 %v487, %v490
    %v492 = vrot.slane %v491, 4
    %v494 = vshll.u32 %v374, 16
    %v496 = vrot.slane %v494, 5
    %v497 = vsel %vm399, %v492, %v496
    %v499 = vshrl.u32 %v375, 16
    %v501 = vrot.slane %v499, 4
    %v502 = vshll.u32 %v375, 16
    %v504 = vrot.slane %v502, 5
    %v505 = vor.u32 %v501, %v504
    %v506 = vrot.slane %v505, 4
    %v508 = vshll.u32 %v376, 16
    %v510 = vrot.slane %v508, 5
    %v511 = vsel %vm399, %v506, %v510
    %v513 = vshrl.u32 %v379, 16
    %v515 = vrot.slane %v513, 4
    %v516 = vshll.u32 %v379, 16
    %v518 = vrot.slane %v516, 5
    %v519 = vor.u32 %v515, %v518
    %v520 = vrot.slane %v519, 4
    %v522 = vshll.u32 %v380, 16
    %v524 = vrot.slane %v522, 5
    %v525 = vsel %vm399, %v520, %v524
    %v527 = vshrl.u32 %v381, 16
    %v529 = vrot.slane %v527, 4
    %v530 = vshll.u32 %v381, 16
    %v532 = vrot.slane %v530, 5
    %v533 = vor.u32 %v529, %v532
    %v534 = vrot.slane %v533, 4
    %v536 = vshll.u32 %v382, 16
    %v538 = vrot.slane %v536, 5
    %v539 = vsel %vm399, %v534, %v538
    %v541 = vshrl.u32 %v383, 16
    %v543 = vrot.slane %v541, 4
    %v544 = vshll.u32 %v383, 16
    %v546 = vrot.slane %v544, 5
    %v547 = vor.u32 %v543, %v546
    %v548 = vrot.slane %v547, 4
    %v550 = vshll.u32 %v384, 16
    %v552 = vrot.slane %v550, 5
    %v553 = vsel %vm399, %v548, %v552
    %v555 = vshrl.u32 %v385, 16
    %v557 = vrot.slane %v555, 4
    %v558 = vshll.u32 %v385, 16
    %v560 = vrot.slane %v558, 5
    %v561 = vor.u32 %v557, %v560
    %v562 = vrot.slane %v561, 4
    %v564 = vshll.u32 %v386, 16
    %v566 = vrot.slane %v564, 5
    %v567 = vsel %vm399, %v562, %v566
    %v569 = vshrl.u32 %v387, 16
    %v571 = vrot.slane %v569, 4
    %v572 = vshll.u32 %v387, 16
    %v574 = vrot.slane %v572, 5
    %v575 = vor.u32 %v571, %v574
    %v576 = vrot.slane %v575, 4
    %v578 = vshll.u32 %v388, 16
    %v580 = vrot.slane %v578, 5
    %v581 = vsel %vm399, %v576, %v580
    %v583 = vshrl.u32 %v389, 16
    %v585 = vrot.slane %v583, 4
    %v586 = vshll.u32 %v389, 16
    %v588 = vrot.slane %v586, 5
    %v589 = vor.u32 %v585, %v588
    %v590 = vrot.slane %v589, 4
    %v592 = vshll.u32 %v390, 16
    %v594 = vrot.slane %v592, 5
    %v595 = vsel %vm399, %v590, %v594
    %v597 = vshrl.u32 %v391, 16
    %v599 = vrot.slane %v597, 4
    %v600 = vshll.u32 %v391, 16
    %v602 = vrot.slane %v600, 5
    %v603 = vor.u32 %v599, %v602
    %v604 = vrot.slane %v603, 4
    %v606 = vshll.u32 %v392, 16
    %v608 = vrot.slane %v606, 5
    %v609 = vsel %vm399, %v604, %v608
    %v611 = vshrl.u32 %v393, 16
    %v613 = vrot.slane %v611, 4
    %v614 = vshll.u32 %v393, 16
    %v616 = vrot.slane %v614, 5
    %v617 = vor.u32 %v613, %v616
    %v618 = vrot.slane %v617, 4
    %v620 = vshll.u32 %v394, 16
    %v622 = vrot.slane %v620, 5
    %v623 = vsel %vm399, %v618, %v622
    %s624 = scalar_lea.vmem %s1, 8
    %v625 = vld [vmem:[%s624] sm:$0xf]
    %v626 = vld [vmem:[%s624 + $0x4] sm:$0xf]
    %v627 = vunpack.c.l.b16 %v413
    %v628 = vunpack.c.l.b16 %v427
    %v629 = vunpack.c.l.b16 %v441
    %v630 = vunpack.c.l.b16 %v455
    %v631 = vunpack.c.l.b16 %v469
    %v632 = vunpack.c.l.b16 %v483
    %v633 = vunpack.c.l.b16 %v497
    %v634 = vunpack.c.l.b16 %v511
    %v635 = vunpack.c.l.b16 %v525
    %v636 = vunpack.c.l.b16 %v539
    %v637 = vunpack.c.l.b16 %v553
    %v638 = vunpack.c.l.b16 %v567
    %v639 = vunpack.c.l.b16 %v581
    %v640 = vunpack.c.l.b16 %v595
    %v641 = vunpack.c.l.b16 %v609
    %v642 = vunpack.c.l.b16 %v623
    %v643 = vpack.c.b16 %v628, %v627
    %v644 = vpack.c.b16 %v630, %v629
    %v645 = vpack.c.b16 %v632, %v631
    %v646 = vpack.c.b16 %v634, %v633
    %v647 = vpack.c.b16 %v636, %v635
    %v648 = vpack.c.b16 %v638, %v637
    %v649 = vpack.c.b16 %v640, %v639
    %v650 = vpack.c.b16 %v642, %v641
    %v653 = vunpack.c.l.b16 %v625
    %v654 = vunpack.c.l.b16 %v626
    %v655 = vpack.c.b16 %v654, %v653
    %v658 = vsel %vm100, %v643, 0
    %v661 = vsel %vm100, %v644, 0
    %v664 = vsel %vm100, %v645, 0
    %v667 = vsel %vm100, %v646, 0
    %v670 = vsel %vm100, %v647, 0
    %v673 = vsel %vm100, %v648, 0
    %v676 = vsel %vm100, %v649, 0
    %v679 = vsel %vm100, %v650, 0
    %681 = vmatprep.subr.bf16.mxu0 0
    %682 = vmatpush1.bf16.msra.mxu0 %v655
    %683 = vmatprep.subr.bf16.mxu0 0
    %684 = vmatpush1.bf16.msra.mxu0 0
    %685 = vmatprep.subr.bf16.mxu0 0
    %686 = vmatpush1.bf16.msra.mxu0 0
    %687 = vmatprep.subr.bf16.mxu0 0
    %688 = vmatpush1.bf16.msra.mxu0 0
    %689 = vmatprep.subr.bf16.mxu0 0
    %690 = vmatpush1.bf16.msra.mxu0 0
    %691 = vmatprep.subr.bf16.mxu0 0
    %692 = vmatpush1.bf16.msra.mxu0 0
    %693 = vmatprep.subr.bf16.mxu0 0
    %694 = vmatpush1.bf16.msra.mxu0 0
    %695 = vmatprep.subr.bf16.mxu0 0
    %696 = vmatpush1.bf16.msra.mxu0 0
    %697 = vmatprep.subr.bf16.mxu0 0
    %698 = vmatpush1.bf16.msra.mxu0 0
    %699 = vmatprep.subr.bf16.mxu0 0
    %700 = vmatpush1.bf16.msra.mxu0 0
    %701 = vmatprep.subr.bf16.mxu0 0
    %702 = vmatpush1.bf16.msra.mxu0 0
    %703 = vmatprep.subr.bf16.mxu0 0
    %704 = vmatpush1.bf16.msra.mxu0 0
    %705 = vmatprep.subr.bf16.mxu0 0
    %706 = vmatpush1.bf16.msra.mxu0 0
    %707 = vmatprep.subr.bf16.mxu0 0
    %708 = vmatpush1.bf16.msra.mxu0 0
    %709 = vmatprep.subr.bf16.mxu0 0
    %710 = vmatpush1.bf16.msra.mxu0 0
    %711 = vmatprep.subr.bf16.mxu0 0
    %712 = vmatpush1.bf16.msra.mxu0 0
    %713 = vmatprep.mubr.bf16.mxu0 0
    %714 = vmatmul.mubr.bf16.gmra.mrb[0].mxu0 %v658
    %v715 = vpop.f32.mrb[0].mxu0
    %v716 = vadd.f32 0.0, %v715
    %v717 = vpop.f32.mrb[0].mxu0
    %v718 = vpop.f32.mrb[0].mxu0
    %v719 = vadd.f32 0.0, %v718
    %v720 = vpop.f32.mrb[0].mxu0
    %721 = vmatprep.mubr.bf16.mxu0 0
    %722 = vmatmul.mubr.bf16.gmra.mrb[0].mxu0 %v661
    %v723 = vpop.f32.mrb[0].mxu0
    %v724 = vadd.f32 0.0, %v723
    %v725 = vpop.f32.mrb[0].mxu0
    %v726 = vpop.f32.mrb[0].mxu0
    %v727 = vadd.f32 0.0, %v726
    %v728 = vpop.f32.mrb[0].mxu0
    %729 = vmatprep.mubr.bf16.mxu0 0
    %730 = vmatmul.mubr.bf16.gmra.mrb[0].mxu0 %v664
    %v731 = vpop.f32.mrb[0].mxu0
    %v732 = vadd.f32 0.0, %v731
    %v733 = vpop.f32.mrb[0].mxu0
    %v734 = vpop.f32.mrb[0].mxu0
    %v735 = vadd.f32 0.0, %v734
    %v736 = vpop.f32.mrb[0].mxu0
    %737 = vmatprep.mubr.bf16.mxu0 0
    %738 = vmatmul.mubr.bf16.gmra.mrb[0].mxu0 %v667
    %v739 = vpop.f32.mrb[0].mxu0
    %v740 = vadd.f32 0.0, %v739
    %v741 = vpop.f32.mrb[0].mxu0
    %v742 = vpop.f32.mrb[0].mxu0
    %v743 = vadd.f32 0.0, %v742
    %v744 = vpop.f32.mrb[0].mxu0
    %745 = vmatprep.mubr.bf16.mxu0 0
    %746 = vmatmul.mubr.bf16.gmra.mrb[0].mxu0 %v670
    %v747 = vpop.f32.mrb[0].mxu0
    %v748 = vadd.f32 0.0, %v747
    %v749 = vpop.f32.mrb[0].mxu0
    %v750 = vpop.f32.mrb[0].mxu0
    %v751 = vadd.f32 0.0, %v750
    %v752 = vpop.f32.mrb[0].mxu0
    %753 = vmatprep.mubr.bf16.mxu0 0
    %754 = vmatmul.mubr.bf16.gmra.mrb[0].mxu0 %v673
    %v755 = vpop.f32.mrb[0].mxu0
    %v756 = vadd.f32 0.0, %v755
    %v757 = vpop.f32.mrb[0].mxu0
    %v758 = vpop.f32.mrb[0].mxu0
    %v759 = vadd.f32 0.0, %v758
    %v760 = vpop.f32.mrb[0].mxu0
    %761 = vmatprep.mubr.bf16.mxu0 0
    %762 = vmatmul.mubr.bf16.gmra.mrb[0].mxu0 %v676
    %v763 = vpop.f32.mrb[0].mxu0
    %v764 = vadd.f32 0.0, %v763
    %v765 = vpop.f32.mrb[0].mxu0
    %v766 = vpop.f32.mrb[0].mxu0
    %v767 = vadd.f32 0.0, %v766
    %v768 = vpop.f32.mrb[0].mxu0
    %769 = vmatprep.mubr.bf16.mxu0 0
    %770 = vmatmul.mubr.bf16.gmra.mrb[0].mxu0 %v679
    %v771 = vpop.f32.mrb[0].mxu0
    %v772 = vadd.f32 0.0, %v771
    %v773 = vpop.f32.mrb[0].mxu0
    %v774 = vpop.f32.mrb[0].mxu0
    %v775 = vadd.f32 0.0, %v774
    %v776 = vpop.f32.mrb[0].mxu0
    %777 = vdwg.mxu0
    %v778 = vadd.f32 %v299, %v716
    %v779 = vadd.f32 %v302, %v719
    %v780 = vadd.f32 %v307, %v724
    %v781 = vadd.f32 %v310, %v727
    %v782 = vadd.f32 %v315, %v732
    %v783 = vadd.f32 %v318, %v735
    %v784 = vadd.f32 %v323, %v740
    %v785 = vadd.f32 %v326, %v743
    %v786 = vadd.f32 %v331, %v748
    %v787 = vadd.f32 %v334, %v751
    %v788 = vadd.f32 %v339, %v756
    %v789 = vadd.f32 %v342, %v759
    %v790 = vadd.f32 %v347, %v764
    %v791 = vadd.f32 %v350, %v767
    %v792 = vadd.f32 %v355, %v772
    %v793 = vadd.f32 %v358, %v775
    %v795 = vshrl.u32 %v377, 16
    %v797 = vrot.slane %v795, 4
    %v798 = vshll.u32 %v377, 16
    %v800 = vrot.slane %v798, 5
    %v801 = vor.u32 %v797, %v800
    %v802 = vrot.slane %v801, 4
    %v804 = vshll.u32 %v378, 16
    %v806 = vrot.slane %v804, 5
    %v807 = vsel %vm399, %v802, %v806
    %v809 = vshrl.u32 %v395, 16
    %v811 = vrot.slane %v809, 4
    %v812 = vshll.u32 %v395, 16
    %v814 = vrot.slane %v812, 5
    %v815 = vor.u32 %v811, %v814
    %v816 = vrot.slane %v815, 4
    %v818 = vshll.u32 %v396, 16
    %v820 = vrot.slane %v818, 5
    %v821 = vsel %vm399, %v816, %v820
    %s822 = scalar_lea.vmem %s1, 24
    %v823 = vld [vmem:[%s822] sm:$0xf]
    %v824 = vld [vmem:[%s822 + $0x4] sm:$0xf]
    %v825 = vunpack.c.l.b16 %v807
    %v826 = vunpack.c.l.b16 %v821
    %v827 = vpack.c.b16 %v629, %v628
    %v828 = vpack.c.b16 %v631, %v630
    %v829 = vpack.c.b16 %v633, %v632
    %v830 = vpack.c.b16 %v825, %v634
    %v831 = vpack.c.b16 %v637, %v636
    %v832 = vpack.c.b16 %v639, %v638
    %v833 = vpack.c.b16 %v641, %v640
    %v834 = vpack.c.b16 %v826, %v642
    %v837 = vunpack.c.l.b16 %v823
    %v838 = vunpack.c.l.b16 %v824
    %v839 = vpack.c.b16 %v838, %v837
    %v842 = vsel %vm100, %v827, 0
    %v845 = vsel %vm100, %v828, 0
    %v848 = vsel %vm100, %v829, 0
    %v851 = vsel %vm100, %v830, 0
    %v854 = vsel %vm100, %v831, 0
    %v857 = vsel %vm100, %v832, 0
    %v860 = vsel %vm100, %v833, 0
    %v863 = vsel %vm100, %v834, 0
    %865 = vmatprep.subr.bf16.mxu0 0
    %866 = vmatpush1.bf16.msra.mxu0 %v839
    %867 = vmatprep.subr.bf16.mxu0 0
    %868 = vmatpush1.bf16.msra.mxu0 0
    %869 = vmatprep.subr.bf16.mxu0 0
    %870 = vmatpush1.bf16.msra.mxu0 0
    %871 = vmatprep.subr.bf16.mxu0 0
    %872 = vmatpush1.bf16.msra.mxu0 0
    %873 = vmatprep.subr.bf16.mxu0 0
    %874 = vmatpush1.bf16.msra.mxu0 0
    %875 = vmatprep.subr.bf16.mxu0 0
    %876 = vmatpush1.bf16.msra.mxu0 0
    %877 = vmatprep.subr.bf16.mxu0 0
    %878 = vmatpush1.bf16.msra.mxu0 0
    %879 = vmatprep.subr.bf16.mxu0 0
    %880 = vmatpush1.bf16.msra.mxu0 0
    %881 = vmatprep.subr.bf16.mxu0 0
    %882 = vmatpush1.bf16.msra.mxu0 0
    %883 = vmatprep.subr.bf16.mxu0 0
    %884 = vmatpush1.bf16.msra.mxu0 0
    %885 = vmatprep.subr.bf16.mxu0 0
    %886 = vmatpush1.bf16.msra.mxu0 0
    %887 = vmatprep.subr.bf16.mxu0 0
    %888 = vmatpush1.bf16.msra.mxu0 0
    %889 = vmatprep.subr.bf16.mxu0 0
    %890 = vmatpush1.bf16.msra.mxu0 0
    %891 = vmatprep.subr.bf16.mxu0 0
    %892 = vmatpush1.bf16.msra.mxu0 0
    %893 = vmatprep.subr.bf16.mxu0 0
    %894 = vmatpush1.bf16.msra.mxu0 0
    %895 = vmatprep.subr.bf16.mxu0 0
    %896 = vmatpush1.bf16.msra.mxu0 0
    %897 = vmatprep.mubr.bf16.mxu0 0
    %898 = vmatmul.mubr.bf16.gmra.mrb[0].mxu0 %v842
    %v899 = vpop.f32.mrb[0].mxu0
    %v900 = vadd.f32 0.0, %v899
    %v901 = vpop.f32.mrb[0].mxu0
    %v902 = vpop.f32.mrb[0].mxu0
    %v903 = vadd.f32 0.0, %v902
    %v904 = vpop.f32.mrb[0].mxu0
    %905 = vmatprep.mubr.bf16.mxu0 0
    %906 = vmatmul.mubr.bf16.gmra.mrb[0].mxu0 %v845
    %v907 = vpop.f32.mrb[0].mxu0
    %v908 = vadd.f32 0.0, %v907
    %v909 = vpop.f32.mrb[0].mxu0
    %v910 = vpop.f32.mrb[0].mxu0
    %v911 = vadd.f32 0.0, %v910
    %v912 = vpop.f32.mrb[0].mxu0
    %913 = vmatprep.mubr.bf16.mxu0 0
    %914 = vmatmul.mubr.bf16.gmra.mrb[0].mxu0 %v848
    %v915 = vpop.f32.mrb[0].mxu0
    %v916 = vadd.f32 0.0, %v915
    %v917 = vpop.f32.mrb[0].mxu0
    %v918 = vpop.f32.mrb[0].mxu0
    %v919 = vadd.f32 0.0, %v918
    %v920 = vpop.f32.mrb[0].mxu0
    %921 = vmatprep.mubr.bf16.mxu0 0
    %922 = vmatmul.mubr.bf16.gmra.mrb[0].mxu0 %v851
    %v923 = vpop.f32.mrb[0].mxu0
    %v924 = vadd.f32 0.0, %v923
    %v925 = vpop.f32.mrb[0].mxu0
    %v926 = vpop.f32.mrb[0].mxu0
    %v927 = vadd.f32 0.0, %v926
    %v928 = vpop.f32.mrb[0].mxu0
    %929 = vmatprep.mubr.bf16.mxu0 0
    %930 = vmatmul.mubr.bf16.gmra.mrb[0].mxu0 %v854
    %v931 = vpop.f32.mrb[0].mxu0
    %v932 = vadd.f32 0.0, %v931
    %v933 = vpop.f32.mrb[0].mxu0
    %v934 = vpop.f32.mrb[0].mxu0
    %v935 = vadd.f32 0.0, %v934
    %v936 = vpop.f32.mrb[0].mxu0
    %937 = vmatprep.mubr.bf16.mxu0 0
    %938 = vmatmul.mubr.bf16.gmra.mrb[0].mxu0 %v857
    %v939 = vpop.f32.mrb[0].mxu0
    %v940 = vadd.f32 0.0, %v939
    %v941 = vpop.f32.mrb[0].mxu0
    %v942 = vpop.f32.mrb[0].mxu0
    %v943 = vadd.f32 0.0, %v942
    %v944 = vpop.f32.mrb[0].mxu0
    %945 = vmatprep.mubr.bf16.mxu0 0
    %946 = vmatmul.mubr.bf16.gmra.mrb[0].mxu0 %v860
    %v947 = vpop.f32.mrb[0].mxu0
    %v948 = vadd.f32 0.0, %v947
    %v949 = vpop.f32.mrb[0].mxu0
    %v950 = vpop.f32.mrb[0].mxu0
    %v951 = vadd.f32 0.0, %v950
    %v952 = vpop.f32.mrb[0].mxu0
    %953 = vmatprep.mubr.bf16.mxu0 0
    %954 = vmatmul.mubr.bf16.gmra.mrb[0].mxu0 %v863
    %v955 = vpop.f32.mrb[0].mxu0
    %v956 = vadd.f32 0.0, %v955
    %v957 = vpop.f32.mrb[0].mxu0
    %v958 = vpop.f32.mrb[0].mxu0
    %v959 = vadd.f32 0.0, %v958
    %v960 = vpop.f32.mrb[0].mxu0
    %961 = vdwg.mxu0
    %v962 = vadd.f32 %v778, %v900
    %v963 = vadd.f32 %v779, %v903
    %v964 = vadd.f32 %v780, %v908
    %v965 = vadd.f32 %v781, %v911
    %v966 = vadd.f32 %v782, %v916
    %v967 = vadd.f32 %v783, %v919
    %v968 = vadd.f32 %v784, %v924
    %v969 = vadd.f32 %v785, %v927
    %v970 = vadd.f32 %v786, %v932
    %v971 = vadd.f32 %v787, %v935
    %v972 = vadd.f32 %v788, %v940
    %v973 = vadd.f32 %v789, %v943
    %v974 = vadd.f32 %v790, %v948
    %v975 = vadd.f32 %v791, %v951
    %v976 = vadd.f32 %v792, %v956
    %v977 = vadd.f32 %v793, %v959
    %vm978 = vcmask 64512
    %v979 = vsel %vm978, %v962, 0.0
    %v980 = vsel %vm978, %v963, 0.0
    %v981 = vadd.f32 %v979, %v980
    %v982 = vsel %vm978, %v964, 0.0
    %v983 = vadd.f32 %v981, %v982
    %v984 = vsel %vm978, %v965, 0.0
    %v985 = vadd.f32 %v983, %v984
    %v986 = vsel %vm978, %v966, 0.0
    %v987 = vadd.f32 %v985, %v986
    %v988 = vsel %vm978, %v967, 0.0
    %v989 = vadd.f32 %v987, %v988
    %v990 = vsel %vm978, %v968, 0.0
    %v991 = vadd.f32 %v989, %v990
    %v992 = vsel %vm978, %v969, 0.0
    %v993 = vadd.f32 %v991, %v992
    %v994 = vsel %vm978, %v970, 0.0
    %v995 = vadd.f32 %v993, %v994
    %v996 = vsel %vm978, %v971, 0.0
    %v997 = vadd.f32 %v995, %v996
    %v998 = vsel %vm978, %v972, 0.0
    %v999 = vadd.f32 %v997, %v998
    %v1000 = vsel %vm978, %v973, 0.0
    %v1001 = vadd.f32 %v999, %v1000
    %v1002 = vsel %vm978, %v974, 0.0
    %v1003 = vadd.f32 %v1001, %v1002
    %v1004 = vsel %vm978, %v975, 0.0
    %v1005 = vadd.f32 %v1003, %v1004
    %v1006 = vsel %vm978, %v976, 0.0
    %v1007 = vadd.f32 %v1005, %v1006
    %v1008 = vsel %vm978, %v977, 0.0
    %v1009 = vadd.f32 %v1007, %v1008
    %v1010 = vrot.slane %v1009, 4
    %v1011 = vadd.f32 %v1009, %v1010
    %v1012 = vrot.slane %v1011, 2
    %v1013 = vadd.f32 %v1011, %v1012
    %v1014 = vrot.slane %v1013, 1
    %v1015 = vadd.f32 %v1013, %v1014
    %v1016 = vmul.f32 %v1015, 0.0078125
    %v1017 = vsub.f32 %v962, %v1016
    %v1018 = vsub.f32 %v963, %v1016
    %v1019 = vsub.f32 %v964, %v1016
    %v1020 = vsub.f32 %v965, %v1016
    %v1021 = vsub.f32 %v966, %v1016
    %v1022 = vsub.f32 %v967, %v1016
    %v1023 = vsub.f32 %v968, %v1016
    %v1024 = vsub.f32 %v969, %v1016
    %v1025 = vsub.f32 %v970, %v1016
    %v1026 = vsub.f32 %v971, %v1016
    %v1027 = vsub.f32 %v972, %v1016
    %v1028 = vsub.f32 %v973, %v1016
    %v1029 = vsub.f32 %v974, %v1016
    %v1030 = vsub.f32 %v975, %v1016
    %v1031 = vsub.f32 %v976, %v1016
    %v1032 = vsub.f32 %v977, %v1016
    %v1033 = vmul.f32 %v1017, %v1017
    %v1034 = vmul.f32 %v1018, %v1018
    %v1035 = vmul.f32 %v1019, %v1019
    %v1036 = vmul.f32 %v1020, %v1020
    %v1037 = vmul.f32 %v1021, %v1021
    %v1038 = vmul.f32 %v1022, %v1022
    %v1039 = vmul.f32 %v1023, %v1023
    %v1040 = vmul.f32 %v1024, %v1024
    %v1041 = vmul.f32 %v1025, %v1025
    %v1042 = vmul.f32 %v1026, %v1026
    %v1043 = vmul.f32 %v1027, %v1027
    %v1044 = vmul.f32 %v1028, %v1028
    %v1045 = vmul.f32 %v1029, %v1029
    %v1046 = vmul.f32 %v1030, %v1030
    %v1047 = vmul.f32 %v1031, %v1031
    %v1048 = vmul.f32 %v1032, %v1032
    %v1049 = vsel %vm978, %v1033, 0.0
    %v1050 = vsel %vm978, %v1034, 0.0
    %v1051 = vadd.f32 %v1049, %v1050
    %v1052 = vsel %vm978, %v1035, 0.0
    %v1053 = vadd.f32 %v1051, %v1052
    %v1054 = vsel %vm978, %v1036, 0.0
    %v1055 = vadd.f32 %v1053, %v1054
    %v1056 = vsel %vm978, %v1037, 0.0
    %v1057 = vadd.f32 %v1055, %v1056
    %v1058 = vsel %vm978, %v1038, 0.0
    %v1059 = vadd.f32 %v1057, %v1058
    %v1060 = vsel %vm978, %v1039, 0.0
    %v1061 = vadd.f32 %v1059, %v1060
    %v1062 = vsel %vm978, %v1040, 0.0
    %v1063 = vadd.f32 %v1061, %v1062
    %v1064 = vsel %vm978, %v1041, 0.0
    %v1065 = vadd.f32 %v1063, %v1064
    %v1066 = vsel %vm978, %v1042, 0.0
    %v1067 = vadd.f32 %v1065, %v1066
    %v1068 = vsel %vm978, %v1043, 0.0
    %v1069 = vadd.f32 %v1067, %v1068
    %v1070 = vsel %vm978, %v1044, 0.0
    %v1071 = vadd.f32 %v1069, %v1070
    %v1072 = vsel %vm978, %v1045, 0.0
    %v1073 = vadd.f32 %v1071, %v1072
    %v1074 = vsel %vm978, %v1046, 0.0
    %v1075 = vadd.f32 %v1073, %v1074
    %v1076 = vsel %vm978, %v1047, 0.0
    %v1077 = vadd.f32 %v1075, %v1076
    %v1078 = vsel %vm978, %v1048, 0.0
    %v1079 = vadd.f32 %v1077, %v1078
    %v1080 = vrot.slane %v1079, 4
    %v1081 = vadd.f32 %v1079, %v1080
    %v1082 = vrot.slane %v1081, 2
    %v1083 = vadd.f32 %v1081, %v1082
    %v1084 = vrot.slane %v1083, 1
    %v1085 = vadd.f32 %v1083, %v1084
    %v1086 = vmul.f32 %v1085, 0.0078125
    %v1087 = vld [vmem:[%s4] sm:$0x1]
    %v1088 = vadd.f32 %v1086, 1e-05
    %v1089 = vrsqrt.pop %v1088
    %v1090 = vmul.f32 %v1087, %v1089
    %v1092 = vlaneseq
    %v1093 = vshrl.u32 %v1092, 7
    %v1094 = vsub.s32 0, %v1093
    %v1095 = vrot.slane %v1090, %v1094
    %v1097 = vmul.f32 %v1017, %v1095
    %v1098 = vmul.f32 %v1018, %v1095
    %v1099 = vmul.f32 %v1019, %v1095
    %v1100 = vmul.f32 %v1020, %v1095
    %v1101 = vmul.f32 %v1021, %v1095
    %v1102 = vmul.f32 %v1022, %v1095
    %v1103 = vmul.f32 %v1023, %v1095
    %v1104 = vmul.f32 %v1024, %v1095
    %v1105 = vmul.f32 %v1025, %v1095
    %v1106 = vmul.f32 %v1026, %v1095
    %v1107 = vmul.f32 %v1027, %v1095
    %v1108 = vmul.f32 %v1028, %v1095
    %v1109 = vmul.f32 %v1029, %v1095
    %v1110 = vmul.f32 %v1030, %v1095
    %v1111 = vmul.f32 %v1031, %v1095
    %v1112 = vmul.f32 %v1032, %v1095
    %v1113 = vld [vmem:[%s5] sm:$0x1]
    %v1115 = vlaneseq
    %v1116 = vshrl.u32 %v1115, 7
    %v1117 = vsub.s32 0, %v1116
    %v1118 = vrot.slane %v1113, %v1117
    %v1120 = vadd.f32 %v1097, %v1118
    %v1121 = vadd.f32 %v1098, %v1118
    %v1122 = vadd.f32 %v1099, %v1118
    %v1123 = vadd.f32 %v1100, %v1118
    %v1124 = vadd.f32 %v1101, %v1118
    %v1125 = vadd.f32 %v1102, %v1118
    %v1126 = vadd.f32 %v1103, %v1118
    %v1127 = vadd.f32 %v1104, %v1118
    %v1128 = vadd.f32 %v1105, %v1118
    %v1129 = vadd.f32 %v1106, %v1118
    %v1130 = vadd.f32 %v1107, %v1118
    %v1131 = vadd.f32 %v1108, %v1118
    %v1132 = vadd.f32 %v1109, %v1118
    %v1133 = vadd.f32 %v1110, %v1118
    %v1134 = vadd.f32 %v1111, %v1118
    %v1135 = vadd.f32 %v1112, %v1118
    %v1136 = vmax.f32 %v1120, 0.0
    %v1137 = vmax.f32 %v1121, 0.0
    %v1138 = vmax.f32 %v1122, 0.0
    %v1139 = vmax.f32 %v1123, 0.0
    %v1140 = vmax.f32 %v1124, 0.0
    %v1141 = vmax.f32 %v1125, 0.0
    %v1142 = vmax.f32 %v1126, 0.0
    %v1143 = vmax.f32 %v1127, 0.0
    %v1144 = vmax.f32 %v1128, 0.0
    %v1145 = vmax.f32 %v1129, 0.0
    %v1146 = vmax.f32 %v1130, 0.0
    %v1147 = vmax.f32 %v1131, 0.0
    %v1148 = vmax.f32 %v1132, 0.0
    %v1149 = vmax.f32 %v1133, 0.0
    %v1150 = vmax.f32 %v1134, 0.0
    %v1151 = vmax.f32 %v1135, 0.0
    %vm1152 = vcmask 60416
    %1153 = vst.msk [vmem:[#allocation2] sm:$0xf] %vm1152, 0
    %vm1154 = vcmask 57344
    %1155 = vst.msk [vmem:[#allocation2 + $0x4] sm:$0x1] %vm1154, 0
    %1156 = vst.msk [vmem:[#allocation2 + $0x50] sm:$0xf] %vm1152, 0
    %1157 = vst.msk [vmem:[#allocation2 + $0x54] sm:$0x1] %vm1154, 0
    %s1158 = scalar_lea.vmem [#allocation2], 72
    %1159 = vst.msk [vmem:[%s1158] sm:$0xf] %vm1152, 0
    %1160 = vst.msk [vmem:[%s1158 + $0x4] sm:$0x1] %vm1154, 0
    %1161 = vst.msk [vmem:[%s1158 + $0x50] sm:$0xf] %vm1152, 0
    %1162 = vst.msk [vmem:[%s1158 + $0x54] sm:$0x1] %vm1154, 0
    %vm1163 = vcmask 57344
    %vm1164 = vsmask.f32 256
    %vm1165 = vmand %vm1163, %vm1164
    %v1166 = vld [vmem:[#allocation2] sm:$0x1]
    %v1167 = vsel %vm1165, 0, %v1166
    %1168 = vst [vmem:[#allocation2] sm:$0x1] %v1167
    %v1169 = vld [vmem:[#allocation2 + $0x8] sm:$0x1]
    %v1170 = vsel %vm1165, 0, %v1169
    %1171 = vst [vmem:[#allocation2 + $0x8] sm:$0x1] %v1170
    %v1172 = vld [vmem:[#allocation2 + $0x10] sm:$0x1]
    %v1173 = vsel %vm1165, 0, %v1172
    %1174 = vst [vmem:[#allocation2 + $0x10] sm:$0x1] %v1173
    %v1175 = vld [vmem:[#allocation2 + $0x18] sm:$0x1]
    %v1176 = vsel %vm1165, 0, %v1175
    %1177 = vst [vmem:[#allocation2 + $0x18] sm:$0x1] %v1176
    %v1178 = vld [vmem:[#allocation2 + $0x20] sm:$0x1]
    %v1179 = vsel %vm1165, 0, %v1178
    %1180 = vst [vmem:[#allocation2 + $0x20] sm:$0x1] %v1179
    %v1181 = vld [vmem:[#allocation2 + $0x28] sm:$0x1]
    %v1182 = vsel %vm1165, 0, %v1181
    %1183 = vst [vmem:[#allocation2 + $0x28] sm:$0x1] %v1182
    %v1184 = vld [vmem:[#allocation2 + $0x30] sm:$0x1]
    %v1185 = vsel %vm1165, 0, %v1184
    %1186 = vst [vmem:[#allocation2 + $0x30] sm:$0x1] %v1185
    %v1187 = vld [vmem:[#allocation2 + $0x38] sm:$0x1]
    %v1188 = vsel %vm1165, 0, %v1187
    %1189 = vst [vmem:[#allocation2 + $0x38] sm:$0x1] %v1188
    %v1190 = vld [vmem:[#allocation2 + $0x40] sm:$0x1]
    %v1191 = vsel %vm1165, 0, %v1190
    %1192 = vst [vmem:[#allocation2 + $0x40] sm:$0x1] %v1191
    %v1193 = vld [vmem:[#allocation2 + $0x48] sm:$0x1]
    %v1194 = vsel %vm1165, 0, %v1193
    %1195 = vst [vmem:[#allocation2 + $0x48] sm:$0x1] %v1194
    %v1196 = vld [vmem:[#allocation2 + $0x50] sm:$0x1]
    %v1197 = vsel %vm1165, 0, %v1196
    %1198 = vst [vmem:[#allocation2 + $0x50] sm:$0x1] %v1197
    %v1199 = vld [vmem:[#allocation2 + $0x58] sm:$0x1]
    %v1200 = vsel %vm1165, 0, %v1199
    %1201 = vst [vmem:[#allocation2 + $0x58] sm:$0x1] %v1200
    %v1202 = vld [vmem:[#allocation2 + $0x60] sm:$0x1]
    %v1203 = vsel %vm1165, 0, %v1202
    %1204 = vst [vmem:[#allocation2 + $0x60] sm:$0x1] %v1203
    %v1205 = vld [vmem:[#allocation2 + $0x68] sm:$0x1]
    %v1206 = vsel %vm1165, 0, %v1205
    %1207 = vst [vmem:[#allocation2 + $0x68] sm:$0x1] %v1206
    %v1208 = vld [vmem:[#allocation2 + $0x70] sm:$0x1]
    %v1209 = vsel %vm1165, 0, %v1208
    %1210 = vst [vmem:[#allocation2 + $0x70] sm:$0x1] %v1209
    %v1211 = vld [vmem:[#allocation2 + $0x78] sm:$0x1]
    %v1212 = vsel %vm1165, 0, %v1211
    %1213 = vst [vmem:[#allocation2 + $0x78] sm:$0x1] %v1212
    %v1214 = vld [vmem:[#allocation2 + $0x80] sm:$0x1]
    %v1215 = vsel %vm1165, 0, %v1214
    %1216 = vst [vmem:[#allocation2 + $0x80] sm:$0x1] %v1215
    %v1217 = vld [vmem:[#allocation2 + $0x88] sm:$0x1]
    %v1218 = vsel %vm1165, 0, %v1217
    %1219 = vst [vmem:[#allocation2 + $0x88] sm:$0x1] %v1218
    %v1220 = vld [vmem:[#allocation2 + $0x90] sm:$0x1]
    %v1221 = vsel %vm1165, 0, %v1220
    %1222 = vst [vmem:[#allocation2 + $0x90] sm:$0x1] %v1221
    %v1223 = vld [vmem:[#allocation2 + $0x98] sm:$0x1]
    %v1224 = vsel %vm1165, 0, %v1223
    %1225 = vst [vmem:[#allocation2 + $0x98] sm:$0x1] %v1224
    %vm1226 = vsmask.f32 7938
    %vm1227 = vmand %vm1163, %vm1226
    %v1228 = vld [vmem:[#allocation2 + $0x4] sm:$0x1]
    %v1229 = vsel %vm1227, 0, %v1228
    %1230 = vst [vmem:[#allocation2 + $0x4] sm:$0x1] %v1229
    %v1231 = vld [vmem:[#allocation2 + $0xc] sm:$0x1]
    %v1232 = vsel %vm1227, 0, %v1231
    %1233 = vst [vmem:[#allocation2 + $0xc] sm:$0x1] %v1232
    %v1234 = vld [vmem:[#allocation2 + $0x14] sm:$0x1]
    %v1235 = vsel %vm1227, 0, %v1234
    %1236 = vst [vmem:[#allocation2 + $0x14] sm:$0x1] %v1235
    %v1237 = vld [vmem:[#allocation2 + $0x1c] sm:$0x1]
    %v1238 = vsel %vm1227, 0, %v1237
    %1239 = vst [vmem:[#allocation2 + $0x1c] sm:$0x1] %v1238
    %v1240 = vld [vmem:[#allocation2 + $0x24] sm:$0x1]
    %v1241 = vsel %vm1227, 0, %v1240
    %1242 = vst [vmem:[#allocation2 + $0x24] sm:$0x1] %v1241
    %v1243 = vld [vmem:[#allocation2 + $0x2c] sm:$0x1]
    %v1244 = vsel %vm1227, 0, %v1243
    %1245 = vst [vmem:[#allocation2 + $0x2c] sm:$0x1] %v1244
    %v1246 = vld [vmem:[#allocation2 + $0x34] sm:$0x1]
    %v1247 = vsel %vm1227, 0, %v1246
    %1248 = vst [vmem:[#allocation2 + $0x34] sm:$0x1] %v1247
    %v1249 = vld [vmem:[#allocation2 + $0x3c] sm:$0x1]
    %v1250 = vsel %vm1227, 0, %v1249
    %1251 = vst [vmem:[#allocation2 + $0x3c] sm:$0x1] %v1250
    %v1252 = vld [vmem:[#allocation2 + $0x44] sm:$0x1]
    %v1253 = vsel %vm1227, 0, %v1252
    %1254 = vst [vmem:[#allocation2 + $0x44] sm:$0x1] %v1253
    %v1255 = vld [vmem:[#allocation2 + $0x4c] sm:$0x1]
    %v1256 = vsel %vm1227, 0, %v1255
    %1257 = vst [vmem:[#allocation2 + $0x4c] sm:$0x1] %v1256
    %v1258 = vld [vmem:[#allocation2 + $0x54] sm:$0x1]
    %v1259 = vsel %vm1227, 0, %v1258
    %1260 = vst [vmem:[#allocation2 + $0x54] sm:$0x1] %v1259
    %v1261 = vld [vmem:[#allocation2 + $0x5c] sm:$0x1]
    %v1262 = vsel %vm1227, 0, %v1261
    %1263 = vst [vmem:[#allocation2 + $0x5c] sm:$0x1] %v1262
    %v1264 = vld [vmem:[#allocation2 + $0x64] sm:$0x1]
    %v1265 = vsel %vm1227, 0, %v1264
    %1266 = vst [vmem:[#allocation2 + $0x64] sm:$0x1] %v1265
    %v1267 = vld [vmem:[#allocation2 + $0x6c] sm:$0x1]
    %v1268 = vsel %vm1227, 0, %v1267
    %1269 = vst [vmem:[#allocation2 + $0x6c] sm:$0x1] %v1268
    %v1270 = vld [vmem:[#allocation2 + $0x74] sm:$0x1]
    %v1271 = vsel %vm1227, 0, %v1270
    %1272 = vst [vmem:[#allocation2 + $0x74] sm:$0x1] %v1271
    %v1273 = vld [vmem:[#allocation2 + $0x7c] sm:$0x1]
    %v1274 = vsel %vm1227, 0, %v1273
    %1275 = vst [vmem:[#allocation2 + $0x7c] sm:$0x1] %v1274
    %v1276 = vld [vmem:[#allocation2 + $0x84] sm:$0x1]
    %v1277 = vsel %vm1227, 0, %v1276
    %1278 = vst [vmem:[#allocation2 + $0x84] sm:$0x1] %v1277
    %v1279 = vld [vmem:[#allocation2 + $0x8c] sm:$0x1]
    %v1280 = vsel %vm1227, 0, %v1279
    %1281 = vst [vmem:[#allocation2 + $0x8c] sm:$0x1] %v1280
    %v1282 = vld [vmem:[#allocation2 + $0x94] sm:$0x1]
    %v1283 = vsel %vm1227, 0, %v1282
    %1284 = vst [vmem:[#allocation2 + $0x94] sm:$0x1] %v1283
    %v1285 = vld [vmem:[#allocation2 + $0x9c] sm:$0x1]
    %v1286 = vsel %vm1227, 0, %v1285
    %1287 = vst [vmem:[#allocation2 + $0x9c] sm:$0x1] %v1286
    %v1288 = vpack.c.bf16 %v1136, %v1136
    %v1289 = vpack.c.bf16 %v1137, %v1137
    %v1290 = vpack.c.bf16 %v1138, %v1138
    %v1291 = vpack.c.bf16 %v1139, %v1139
    %v1292 = vpack.c.bf16 %v1140, %v1140
    %v1293 = vpack.c.bf16 %v1141, %v1141
    %v1294 = vpack.c.bf16 %v1142, %v1142
    %v1295 = vpack.c.bf16 %v1143, %v1143
    %v1296 = vpack.c.bf16 %v1144, %v1144
    %v1297 = vpack.c.bf16 %v1145, %v1145
    %v1298 = vpack.c.bf16 %v1146, %v1146
    %v1299 = vpack.c.bf16 %v1147, %v1147
    %v1300 = vpack.c.bf16 %v1148, %v1148
    %v1301 = vpack.c.bf16 %v1149, %v1149
    %v1302 = vpack.c.bf16 %v1150, %v1150
    %v1303 = vpack.c.bf16 %v1151, %v1151
    %v1320 = vunpack.c.l.b16 %v1288
    %v1321 = vunpack.c.l.b16 %v1289
    %v1322 = vunpack.c.l.b16 %v1290
    %v1323 = vunpack.c.l.b16 %v1291
    %v1324 = vunpack.c.l.b16 %v1292
    %v1325 = vunpack.c.l.b16 %v1293
    %v1326 = vunpack.c.l.b16 %v1294
    %v1327 = vunpack.c.l.b16 %v1295
    %v1328 = vunpack.c.l.b16 %v1296
    %v1329 = vunpack.c.l.b16 %v1297
    %v1330 = vunpack.c.l.b16 %v1298
    %v1331 = vunpack.c.l.b16 %v1299
    %v1332 = vunpack.c.l.b16 %v1300
    %v1333 = vunpack.c.l.b16 %v1301
    %v1334 = vunpack.c.l.b16 %v1302
    %v1335 = vunpack.c.l.b16 %v1303
    %v1336 = vpack.c.b16 %v1320, %v1320
    %v1337 = vpack.c.b16 %v1321, %v1321
    %v1338 = vpack.c.b16 %v1322, %v1322
    %v1339 = vpack.c.b16 %v1323, %v1323
    %v1340 = vpack.c.b16 %v1324, %v1324
    %v1341 = vpack.c.b16 %v1325, %v1325
    %v1342 = vpack.c.b16 %v1326, %v1326
    %v1343 = vpack.c.b16 %v1327, %v1327
    %v1344 = vpack.c.b16 %v1328, %v1328
    %v1345 = vpack.c.b16 %v1329, %v1329
    %v1346 = vpack.c.b16 %v1330, %v1330
    %v1347 = vpack.c.b16 %v1331, %v1331
    %v1348 = vpack.c.b16 %v1332, %v1332
    %v1349 = vpack.c.b16 %v1333, %v1333
    %v1350 = vpack.c.b16 %v1334, %v1334
    %v1351 = vpack.c.b16 %v1335, %v1335
    %v1353 = vshrl.u32 %v1336, 16
    %v1355 = vrot.slane %v1353, 7
    %v1356 = vshll.u32 %v1336, 16
    %v1358 = vor.u32 %v1355, %v1356
    %v1359 = vrot.slane %v1355, 4
    %v1361 = vshrl.u32 %v1337, 16
    %v1363 = vrot.slane %v1361, 7
    %v1364 = vshll.u32 %v1337, 16
    %v1366 = vor.u32 %v1363, %v1364
    %v1367 = vrot.slane %v1363, 4
    %v1369 = vshrl.u32 %v1338, 16
    %v1371 = vrot.slane %v1369, 7
    %v1372 = vshll.u32 %v1338, 16
    %v1374 = vor.u32 %v1371, %v1372
    %v1375 = vrot.slane %v1371, 4
    %v1377 = vshrl.u32 %v1339, 16
    %v1379 = vrot.slane %v1377, 7
    %v1380 = vshll.u32 %v1339, 16
    %v1382 = vor.u32 %v1379, %v1380
    %v1383 = vrot.slane %v1379, 4
    %v1385 = vshrl.u32 %v1340, 16
    %v1387 = vrot.slane %v1385, 7
    %v1388 = vshll.u32 %v1340, 16
    %v1390 = vor.u32 %v1387, %v1388
    %v1391 = vrot.slane %v1387, 4
    %v1393 = vshrl.u32 %v1341, 16
    %v1395 = vrot.slane %v1393, 7
    %v1396 = vshll.u32 %v1341, 16
    %v1398 = vor.u32 %v1395, %v1396
    %v1399 = vrot.slane %v1395, 4
    %v1401 = vshrl.u32 %v1342, 16
    %v1403 = vrot.slane %v1401, 7
    %v1404 = vshll.u32 %v1342, 16
    %v1406 = vor.u32 %v1403, %v1404
    %v1407 = vrot.slane %v1403, 4
    %v1409 = vshrl.u32 %v1343, 16
    %v1411 = vrot.slane %v1409, 7
    %v1412 = vshll.u32 %v1343, 16
    %v1414 = vor.u32 %v1411, %v1412
    %v1415 = vrot.slane %v1411, 4
    %v1417 = vshrl.u32 %v1344, 16
    %v1419 = vrot.slane %v1417, 7
    %v1420 = vshll.u32 %v1344, 16
    %v1422 = vor.u32 %v1419, %v1420
    %v1423 = vrot.slane %v1419, 4
    %v1425 = vshrl.u32 %v1345, 16
    %v1427 = vrot.slane %v1425, 7
    %v1428 = vshll.u32 %v1345, 16
    %v1430 = vor.u32 %v1427, %v1428
    %v1431 = vrot.slane %v1427, 4
    %v1433 = vshrl.u32 %v1346, 16
    %v1435 = vrot.slane %v1433, 7
    %v1436 = vshll.u32 %v1346, 16
    %v1438 = vor.u32 %v1435, %v1436
    %v1439 = vrot.slane %v1435, 4
    %v1441 = vshrl.u32 %v1347, 16
    %v1443 = vrot.slane %v1441, 7
    %v1444 = vshll.u32 %v1347, 16
    %v1446 = vor.u32 %v1443, %v1444
    %v1447 = vrot.slane %v1443, 4
    %v1449 = vshrl.u32 %v1348, 16
    %v1451 = vrot.slane %v1449, 7
    %v1452 = vshll.u32 %v1348, 16
    %v1454 = vor.u32 %v1451, %v1452
    %v1455 = vrot.slane %v1451, 4
    %v1457 = vshrl.u32 %v1349, 16
    %v1459 = vrot.slane %v1457, 7
    %v1460 = vshll.u32 %v1349, 16
    %v1462 = vor.u32 %v1459, %v1460
    %v1463 = vrot.slane %v1459, 4
    %v1465 = vshrl.u32 %v1350, 16
    %v1467 = vrot.slane %v1465, 7
    %v1468 = vshll.u32 %v1350, 16
    %v1470 = vor.u32 %v1467, %v1468
    %v1471 = vrot.slane %v1467, 4
    %v1473 = vshrl.u32 %v1351, 16
    %v1475 = vrot.slane %v1473, 7
    %v1476 = vshll.u32 %v1351, 16
    %v1478 = vor.u32 %v1475, %v1476
    %v1479 = vrot.slane %v1475, 4
    %s1512 = scalar_lea.vmem [#allocation2], 8
    %vm1513 = vcmask 60416
    %vm1514 = vmand %vm1513, %vm1226
    %v1515 = vld [vmem:[%s1512] sm:$0xf]
    %v1516 = vsel %vm1514, %v1358, %v1515
    %1517 = vst [vmem:[%s1512] sm:$0xf] %v1516
    %v1518 = vld [vmem:[%s1512 + $0x4] sm:$0x1]
    %v1519 = vsel %vm1165, %v1359, %v1518
    %1520 = vst [vmem:[%s1512 + $0x4] sm:$0x1] %v1519
    %v1521 = vld [vmem:[%s1512 + $0x8] sm:$0xf]
    %v1522 = vsel %vm1514, %v1366, %v1521
    %1523 = vst [vmem:[%s1512 + $0x8] sm:$0xf] %v1522
    %v1524 = vld [vmem:[%s1512 + $0xc] sm:$0x1]
    %v1525 = vsel %vm1165, %v1367, %v1524
    %1526 = vst [vmem:[%s1512 + $0xc] sm:$0x1] %v1525
    %v1527 = vld [vmem:[%s1512 + $0x10] sm:$0xf]
    %v1528 = vsel %vm1514, %v1374, %v1527
    %1529 = vst [vmem:[%s1512 + $0x10] sm:$0xf] %v1528
    %v1530 = vld [vmem:[%s1512 + $0x14] sm:$0x1]
    %v1531 = vsel %vm1165, %v1375, %v1530
    %1532 = vst [vmem:[%s1512 + $0x14] sm:$0x1] %v1531
    %v1533 = vld [vmem:[%s1512 + $0x18] sm:$0xf]
    %v1534 = vsel %vm1514, %v1382, %v1533
    %1535 = vst [vmem:[%s1512 + $0x18] sm:$0xf] %v1534
    %v1536 = vld [vmem:[%s1512 + $0x1c] sm:$0x1]
    %v1537 = vsel %vm1165, %v1383, %v1536
    %1538 = vst [vmem:[%s1512 + $0x1c] sm:$0x1] %v1537
    %v1539 = vld [vmem:[%s1512 + $0x20] sm:$0xf]
    %v1540 = vsel %vm1514, %v1390, %v1539
    %1541 = vst [vmem:[%s1512 + $0x20] sm:$0xf] %v1540
    %v1542 = vld [vmem:[%s1512 + $0x24] sm:$0x1]
    %v1543 = vsel %vm1165, %v1391, %v1542
    %1544 = vst [vmem:[%s1512 + $0x24] sm:$0x1] %v1543
    %v1545 = vld [vmem:[%s1512 + $0x28] sm:$0xf]
    %v1546 = vsel %vm1514, %v1398, %v1545
    %1547 = vst [vmem:[%s1512 + $0x28] sm:$0xf] %v1546
    %v1548 = vld [vmem:[%s1512 + $0x2c] sm:$0x1]
    %v1549 = vsel %vm1165, %v1399, %v1548
    %1550 = vst [vmem:[%s1512 + $0x2c] sm:$0x1] %v1549
    %v1551 = vld [vmem:[%s1512 + $0x30] sm:$0xf]
    %v1552 = vsel %vm1514, %v1406, %v1551
    %1553 = vst [vmem:[%s1512 + $0x30] sm:$0xf] %v1552
    %v1554 = vld [vmem:[%s1512 + $0x34] sm:$0x1]
    %v1555 = vsel %vm1165, %v1407, %v1554
    %1556 = vst [vmem:[%s1512 + $0x34] sm:$0x1] %v1555
    %v1557 = vld [vmem:[%s1512 + $0x38] sm:$0xf]
    %v1558 = vsel %vm1514, %v1414, %v1557
    %1559 = vst [vmem:[%s1512 + $0x38] sm:$0xf] %v1558
    %v1560 = vld [vmem:[%s1512 + $0x3c] sm:$0x1]
    %v1561 = vsel %vm1165, %v1415, %v1560
    %1562 = vst [vmem:[%s1512 + $0x3c] sm:$0x1] %v1561
    %v1563 = vld [vmem:[%s1512 + $0x50] sm:$0xf]
    %v1564 = vsel %vm1514, %v1422, %v1563
    %1565 = vst [vmem:[%s1512 + $0x50] sm:$0xf] %v1564
    %v1566 = vld [vmem:[%s1512 + $0x54] sm:$0x1]
    %v1567 = vsel %vm1165, %v1423, %v1566
    %1568 = vst [vmem:[%s1512 + $0x54] sm:$0x1] %v1567
    %v1569 = vld [vmem:[%s1512 + $0x58] sm:$0xf]
    %v1570 = vsel %vm1514, %v1430, %v1569
    %1571 = vst [vmem:[%s1512 + $0x58] sm:$0xf] %v1570
    %v1572 = vld [vmem:[%s1512 + $0x5c] sm:$0x1]
    %v1573 = vsel %vm1165, %v1431, %v1572
    %1574 = vst [vmem:[%s1512 + $0x5c] sm:$0x1] %v1573
    %v1575 = vld [vmem:[%s1512 + $0x60] sm:$0xf]
    %v1576 = vsel %vm1514, %v1438, %v1575
    %1577 = vst [vmem:[%s1512 + $0x60] sm:$0xf] %v1576
    %v1578 = vld [vmem:[%s1512 + $0x64] sm:$0x1]
    %v1579 = vsel %vm1165, %v1439, %v1578
    %1580 = vst [vmem:[%s1512 + $0x64] sm:$0x1] %v1579
    %v1581 = vld [vmem:[%s1512 + $0x68] sm:$0xf]
    %v1582 = vsel %vm1514, %v1446, %v1581
    %1583 = vst [vmem:[%s1512 + $0x68] sm:$0xf] %v1582
    %v1584 = vld [vmem:[%s1512 + $0x6c] sm:$0x1]
    %v1585 = vsel %vm1165, %v1447, %v1584
    %1586 = vst [vmem:[%s1512 + $0x6c] sm:$0x1] %v1585
    %v1587 = vld [vmem:[%s1512 + $0x70] sm:$0xf]
    %v1588 = vsel %vm1514, %v1454, %v1587
    %1589 = vst [vmem:[%s1512 + $0x70] sm:$0xf] %v1588
    %v1590 = vld [vmem:[%s1512 + $0x74] sm:$0x1]
    %v1591 = vsel %vm1165, %v1455, %v1590
    %1592 = vst [vmem:[%s1512 + $0x74] sm:$0x1] %v1591
    %v1593 = vld [vmem:[%s1512 + $0x78] sm:$0xf]
    %v1594 = vsel %vm1514, %v1462, %v1593
    %1595 = vst [vmem:[%s1512 + $0x78] sm:$0xf] %v1594
    %v1596 = vld [vmem:[%s1512 + $0x7c] sm:$0x1]
    %v1597 = vsel %vm1165, %v1463, %v1596
    %1598 = vst [vmem:[%s1512 + $0x7c] sm:$0x1] %v1597
    %v1599 = vld [vmem:[%s1512 + $0x80] sm:$0xf]
    %v1600 = vsel %vm1514, %v1470, %v1599
    %1601 = vst [vmem:[%s1512 + $0x80] sm:$0xf] %v1600
    %v1602 = vld [vmem:[%s1512 + $0x84] sm:$0x1]
    %v1603 = vsel %vm1165, %v1471, %v1602
    %1604 = vst [vmem:[%s1512 + $0x84] sm:$0x1] %v1603
    %v1605 = vld [vmem:[%s1512 + $0x88] sm:$0xf]
    %v1606 = vsel %vm1514, %v1478, %v1605
    %1607 = vst [vmem:[%s1512 + $0x88] sm:$0xf] %v1606
    %v1608 = vld [vmem:[%s1512 + $0x8c] sm:$0x1]
    %v1609 = vsel %vm1165, %v1479, %v1608
    %1610 = vst [vmem:[%s1512 + $0x8c] sm:$0x1] %v1609
    %v1611 = vld [vmem:[#allocation2] sm:$0xf]
    %v1612 = vld [vmem:[#allocation2 + $0x8] sm:$0xf]
    %v1613 = vld [vmem:[#allocation2 + $0x10] sm:$0xf]
    %v1614 = vld [vmem:[#allocation2 + $0x18] sm:$0xf]
    %v1615 = vld [vmem:[#allocation2 + $0x20] sm:$0xf]
    %v1616 = vld [vmem:[#allocation2 + $0x28] sm:$0xf]
    %v1617 = vld [vmem:[#allocation2 + $0x30] sm:$0xf]
    %v1618 = vld [vmem:[#allocation2 + $0x38] sm:$0xf]
    %v1619 = vld [vmem:[#allocation2 + $0x40] sm:$0xf]
    %v1620 = vld [vmem:[#allocation2 + $0x48] sm:$0xf]
    %v1621 = vld [vmem:[#allocation2 + $0x50] sm:$0xf]
    %v1622 = vld [vmem:[#allocation2 + $0x58] sm:$0xf]
    %v1623 = vld [vmem:[#allocation2 + $0x60] sm:$0xf]
    %v1624 = vld [vmem:[#allocation2 + $0x68] sm:$0xf]
    %v1625 = vld [vmem:[#allocation2 + $0x70] sm:$0xf]
    %v1626 = vld [vmem:[#allocation2 + $0x78] sm:$0xf]
    %v1627 = vld [vmem:[#allocation2 + $0x80] sm:$0xf]
    %v1628 = vld [vmem:[#allocation2 + $0x88] sm:$0xf]
    %v1629 = vld [vmem:[#allocation2 + $0x90] sm:$0xf]
    %v1630 = vld [vmem:[#allocation2 + $0x98] sm:$0xf]
    %v1631 = vld [vmem:[%s3] sm:$0xf]
    %s1632 = scalar_lea.vmem %s3, 12
    %v1633 = vld [vmem:[%s1632] sm:$0xf]
    %v1650 = vunpack.c.l.b16 %v1612
    %v1651 = vunpack.c.l.b16 %v1613
    %v1652 = vunpack.c.l.b16 %v1614
    %v1653 = vunpack.c.l.b16 %v1615
    %v1654 = vunpack.c.l.b16 %v1616
    %v1655 = vunpack.c.l.b16 %v1617
    %v1656 = vunpack.c.l.b16 %v1618
    %v1657 = vunpack.c.l.b16 %v1619
    %v1658 = vunpack.c.l.b16 %v1622
    %v1659 = vunpack.c.l.b16 %v1623
    %v1660 = vunpack.c.l.b16 %v1624
    %v1661 = vunpack.c.l.b16 %v1625
    %v1662 = vunpack.c.l.b16 %v1626
    %v1663 = vunpack.c.l.b16 %v1627
    %v1664 = vunpack.c.l.b16 %v1628
    %v1665 = vunpack.c.l.b16 %v1629
    %v1666 = vpack.c.b16 %v1651, %v1650
    %v1667 = vpack.c.b16 %v1653, %v1652
    %v1668 = vpack.c.b16 %v1655, %v1654
    %v1669 = vpack.c.b16 %v1657, %v1656
    %v1670 = vpack.c.b16 %v1659, %v1658
    %v1671 = vpack.c.b16 %v1661, %v1660
    %v1672 = vpack.c.b16 %v1663, %v1662
    %v1673 = vpack.c.b16 %v1665, %v1664
    %v1675 = vsel %vm978, %v1666, 0
    %v1678 = vsel %vm978, %v1667, 0
    %v1681 = vsel %vm978, %v1668, 0
    %v1684 = vsel %vm978, %v1669, 0
    %v1687 = vsel %vm978, %v1670, 0
    %v1690 = vsel %vm978, %v1671, 0
    %v1693 = vsel %vm978, %v1672, 0
    %v1696 = vsel %vm978, %v1673, 0
    %vm1698 = vcmask 1043456
    %v1700 = vsel %vm1698, %v1633, 0
    %1702 = vmatprep.subr.bf16.mxu0 0
    %1703 = vmatpush1.bf16.msra.mxu0 %v1700
    %1704 = vmatprep.subr.bf16.mxu0 0
    %1705 = vmatpush1.bf16.msra.mxu0 0
    %1706 = vmatprep.subr.bf16.mxu0 0
    %1707 = vmatpush1.bf16.msra.mxu0 0
    %1708 = vmatprep.subr.bf16.mxu0 0
    %1709 = vmatpush1.bf16.msra.mxu0 0
    %1710 = vmatprep.subr.bf16.mxu0 0
    %1711 = vmatpush1.bf16.msra.mxu0 0
    %1712 = vmatprep.subr.bf16.mxu0 0
    %1713 = vmatpush1.bf16.msra.mxu0 0
    %1714 = vmatprep.subr.bf16.mxu0 0
    %1715 = vmatpush1.bf16.msra.mxu0 0
    %1716 = vmatprep.subr.bf16.mxu0 0
    %1717 = vmatpush1.bf16.msra.mxu0 0
    %1718 = vmatprep.subr.bf16.mxu0 0
    %1719 = vmatpush1.bf16.msra.mxu0 0
    %1720 = vmatprep.subr.bf16.mxu0 0
    %1721 = vmatpush1.bf16.msra.mxu0 0
    %1722 = vmatprep.subr.bf16.mxu0 0
    %1723 = vmatpush1.bf16.msra.mxu0 0
    %1724 = vmatprep.subr.bf16.mxu0 0
    %1725 = vmatpush1.bf16.msra.mxu0 0
    %1726 = vmatprep.subr.bf16.mxu0 0
    %1727 = vmatpush1.bf16.msra.mxu0 0
    %1728 = vmatprep.subr.bf16.mxu0 0
    %1729 = vmatpush1.bf16.msra.mxu0 0
    %1730 = vmatprep.subr.bf16.mxu0 0
    %1731 = vmatpush1.bf16.msra.mxu0 0
    %1732 = vmatprep.subr.bf16.mxu0 0
    %1733 = vmatpush1.bf16.msra.mxu0 0
    %1734 = vmatprep.mubr.bf16.mxu0 0
    %1735 = vmatmul.mubr.bf16.gmra.mrb[0].mxu0 %v1675
    %v1736 = vpop.f32.mrb[0].mxu0
    %v1737 = vadd.f32 0.0, %v1736
    %v1738 = vpop.f32.mrb[0].mxu0
    %v1739 = vpop.f32.mrb[0].mxu0
    %v1740 = vadd.f32 0.0, %v1739
    %v1741 = vpop.f32.mrb[0].mxu0
    %1742 = vmatprep.mubr.bf16.mxu0 0
    %1743 = vmatmul.mubr.bf16.gmra.mrb[0].mxu0 %v1678
    %v1744 = vpop.f32.mrb[0].mxu0
    %v1745 = vadd.f32 0.0, %v1744
    %v1746 = vpop.f32.mrb[0].mxu0
    %v1747 = vpop.f32.mrb[0].mxu0
    %v1748 = vadd.f32 0.0, %v1747
    %v1749 = vpop.f32.mrb[0].mxu0
    %1750 = vmatprep.mubr.bf16.mxu0 0
    %1751 = vmatmul.mubr.bf16.gmra.mrb[0].mxu0 %v1681
    %v1752 = vpop.f32.mrb[0].mxu0
    %v1753 = vadd.f32 0.0, %v1752
    %v1754 = vpop.f32.mrb[0].mxu0
    %v1755 = vpop.f32.mrb[0].mxu0
    %v1756 = vadd.f32 0.0, %v1755
    %v1757 = vpop.f32.mrb[0].mxu0
    %1758 = vmatprep.mubr.bf16.mxu0 0
    %1759 = vmatmul.mubr.bf16.gmra.mrb[0].mxu0 %v1684
    %v1760 = vpop.f32.mrb[0].mxu0
    %v1761 = vadd.f32 0.0, %v1760
    %v1762 = vpop.f32.mrb[0].mxu0
    %v1763 = vpop.f32.mrb[0].mxu0
    %v1764 = vadd.f32 0.0, %v1763
    %v1765 = vpop.f32.mrb[0].mxu0
    %1766 = vmatprep.mubr.bf16.mxu0 0
    %1767 = vmatmul.mubr.bf16.gmra.mrb[0].mxu0 %v1687
    %v1768 = vpop.f32.mrb[0].mxu0
    %v1769 = vadd.f32 0.0, %v1768
    %v1770 = vpop.f32.mrb[0].mxu0
    %v1771 = vpop.f32.mrb[0].mxu0
    %v1772 = vadd.f32 0.0, %v1771
    %v1773 = vpop.f32.mrb[0].mxu0
    %1774 = vmatprep.mubr.bf16.mxu0 0
    %1775 = vmatmul.mubr.bf16.gmra.mrb[0].mxu0 %v1690
    %v1776 = vpop.f32.mrb[0].mxu0
    %v1777 = vadd.f32 0.0, %v1776
    %v1778 = vpop.f32.mrb[0].mxu0
    %v1779 = vpop.f32.mrb[0].mxu0
    %v1780 = vadd.f32 0.0, %v1779
    %v1781 = vpop.f32.mrb[0].mxu0
    %1782 = vmatprep.mubr.bf16.mxu0 0
    %1783 = vmatmul.mubr.bf16.gmra.mrb[0].mxu0 %v1693
    %v1784 = vpop.f32.mrb[0].mxu0
    %v1785 = vadd.f32 0.0, %v1784
    %v1786 = vpop.f32.mrb[0].mxu0
    %v1787 = vpop.f32.mrb[0].mxu0
    %v1788 = vadd.f32 0.0, %v1787
    %v1789 = vpop.f32.mrb[0].mxu0
    %1790 = vmatprep.mubr.bf16.mxu0 0
    %1791 = vmatmul.mubr.bf16.gmra.mrb[0].mxu0 %v1696
    %v1792 = vpop.f32.mrb[0].mxu0
    %v1793 = vadd.f32 0.0, %v1792
    %v1794 = vpop.f32.mrb[0].mxu0
    %v1795 = vpop.f32.mrb[0].mxu0
    %v1796 = vadd.f32 0.0, %v1795
    %v1797 = vpop.f32.mrb[0].mxu0
    %1798 = vdwg.mxu0
    %v1801 = vunpack.c.l.b16 %v1611
    %v1802 = vunpack.c.l.b16 %v1621
    %v1803 = vpack.c.b16 %v1650, %v1801
    %v1804 = vpack.c.b16 %v1652, %v1651
    %v1805 = vpack.c.b16 %v1654, %v1653
    %v1806 = vpack.c.b16 %v1656, %v1655
    %v1807 = vpack.c.b16 %v1658, %v1802
    %v1808 = vpack.c.b16 %v1660, %v1659
    %v1809 = vpack.c.b16 %v1662, %v1661
    %v1810 = vpack.c.b16 %v1664, %v1663
    %v1812 = vsel %vm978, %v1803, 0
    %v1815 = vsel %vm978, %v1804, 0
    %v1818 = vsel %vm978, %v1805, 0
    %v1821 = vsel %vm978, %v1806, 0
    %v1824 = vsel %vm978, %v1807, 0
    %v1827 = vsel %vm978, %v1808, 0
    %v1830 = vsel %vm978, %v1809, 0
    %v1833 = vsel %vm978, %v1810, 0
    %v1836 = vsel %vm1698, %v1631, 0
    %1838 = vmatprep.subr.bf16.mxu0 0
    %1839 = vmatpush1.bf16.msra.mxu0 %v1836
    %1840 = vmatprep.subr.bf16.mxu0 0
    %1841 = vmatpush1.bf16.msra.mxu0 0
    %1842 = vmatprep.subr.bf16.mxu0 0
    %1843 = vmatpush1.bf16.msra.mxu0 0
    %1844 = vmatprep.subr.bf16.mxu0 0
    %1845 = vmatpush1.bf16.msra.mxu0 0
    %1846 = vmatprep.subr.bf16.mxu0 0
    %1847 = vmatpush1.bf16.msra.mxu0 0
    %1848 = vmatprep.subr.bf16.mxu0 0
    %1849 = vmatpush1.bf16.msra.mxu0 0
    %1850 = vmatprep.subr.bf16.mxu0 0
    %1851 = vmatpush1.bf16.msra.mxu0 0
    %1852 = vmatprep.subr.bf16.mxu0 0
    %1853 = vmatpush1.bf16.msra.mxu0 0
    %1854 = vmatprep.subr.bf16.mxu0 0
    %1855 = vmatpush1.bf16.msra.mxu0 0
    %1856 = vmatprep.subr.bf16.mxu0 0
    %1857 = vmatpush1.bf16.msra.mxu0 0
    %1858 = vmatprep.subr.bf16.mxu0 0
    %1859 = vmatpush1.bf16.msra.mxu0 0
    %1860 = vmatprep.subr.bf16.mxu0 0
    %1861 = vmatpush1.bf16.msra.mxu0 0
    %1862 = vmatprep.subr.bf16.mxu0 0
    %1863 = vmatpush1.bf16.msra.mxu0 0
    %1864 = vmatprep.subr.bf16.mxu0 0
    %1865 = vmatpush1.bf16.msra.mxu0 0
    %1866 = vmatprep.subr.bf16.mxu0 0
    %1867 = vmatpush1.bf16.msra.mxu0 0
    %1868 = vmatprep.subr.bf16.mxu0 0
    %1869 = vmatpush1.bf16.msra.mxu0 0
    %1870 = vmatprep.mubr.bf16.mxu0 0
    %1871 = vmatmul.mubr.bf16.gmra.mrb[0].mxu0 %v1812
    %v1872 = vpop.f32.mrb[0].mxu0
    %v1873 = vadd.f32 %v1737, %v1872
    %v1874 = vpop.f32.mrb[0].mxu0
    %v1875 = vpop.f32.mrb[0].mxu0
    %v1876 = vadd.f32 %v1740, %v1875
    %v1877 = vpop.f32.mrb[0].mxu0
    %1878 = vmatprep.mubr.bf16.mxu0 0
    %1879 = vmatmul.mubr.bf16.gmra.mrb[0].mxu0 %v1815
    %v1880 = vpop.f32.mrb[0].mxu0
    %v1881 = vadd.f32 %v1745, %v1880
    %v1882 = vpop.f32.mrb[0].mxu0
    %v1883 = vpop.f32.mrb[0].mxu0
    %v1884 = vadd.f32 %v1748, %v1883
    %v1885 = vpop.f32.mrb[0].mxu0
    %1886 = vmatprep.mubr.bf16.mxu0 0
    %1887 = vmatmul.mubr.bf16.gmra.mrb[0].mxu0 %v1818
    %v1888 = vpop.f32.mrb[0].mxu0
    %v1889 = vadd.f32 %v1753, %v1888
    %v1890 = vpop.f32.mrb[0].mxu0
    %v1891 = vpop.f32.mrb[0].mxu0
    %v1892 = vadd.f32 %v1756, %v1891
    %v1893 = vpop.f32.mrb[0].mxu0
    %1894 = vmatprep.mubr.bf16.mxu0 0
    %1895 = vmatmul.mubr.bf16.gmra.mrb[0].mxu0 %v1821
    %v1896 = vpop.f32.mrb[0].mxu0
    %v1897 = vadd.f32 %v1761, %v1896
    %v1898 = vpop.f32.mrb[0].mxu0
    %v1899 = vpop.f32.mrb[0].mxu0
    %v1900 = vadd.f32 %v1764, %v1899
    %v1901 = vpop.f32.mrb[0].mxu0
    %1902 = vmatprep.mubr.bf16.mxu0 0
    %1903 = vmatmul.mubr.bf16.gmra.mrb[0].mxu0 %v1824
    %v1904 = vpop.f32.mrb[0].mxu0
    %v1905 = vadd.f32 %v1769, %v1904
    %v1906 = vpop.f32.mrb[0].mxu0
    %v1907 = vpop.f32.mrb[0].mxu0
    %v1908 = vadd.f32 %v1772, %v1907
    %v1909 = vpop.f32.mrb[0].mxu0
    %1910 = vmatprep.mubr.bf16.mxu0 0
    %1911 = vmatmul.mubr.bf16.gmra.mrb[0].mxu0 %v1827
    %v1912 = vpop.f32.mrb[0].mxu0
    %v1913 = vadd.f32 %v1777, %v1912
    %v1914 = vpop.f32.mrb[0].mxu0
    %v1915 = vpop.f32.mrb[0].mxu0
    %v1916 = vadd.f32 %v1780, %v1915
    %v1917 = vpop.f32.mrb[0].mxu0
    %1918 = vmatprep.mubr.bf16.mxu0 0
    %1919 = vmatmul.mubr.bf16.gmra.mrb[0].mxu0 %v1830
    %v1920 = vpop.f32.mrb[0].mxu0
    %v1921 = vadd.f32 %v1785, %v1920
    %v1922 = vpop.f32.mrb[0].mxu0
    %v1923 = vpop.f32.mrb[0].mxu0
    %v1924 = vadd.f32 %v1788, %v1923
    %v1925 = vpop.f32.mrb[0].mxu0
    %1926 = vmatprep.mubr.bf16.mxu0 0
    %1927 = vmatmul.mubr.bf16.gmra.mrb[0].mxu0 %v1833
    %v1928 = vpop.f32.mrb[0].mxu0
    %v1929 = vadd.f32 %v1793, %v1928
    %v1930 = vpop.f32.mrb[0].mxu0
    %v1931 = vpop.f32.mrb[0].mxu0
    %v1932 = vadd.f32 %v1796, %v1931
    %v1933 = vpop.f32.mrb[0].mxu0
    %1934 = vdwg.mxu0
    %s1935 = scalar_lea.vmem %s3, 24
    %v1936 = vld [vmem:[%s1935] sm:$0xf]
    %v1939 = vunpack.c.l.b16 %v1620
    %v1940 = vunpack.c.l.b16 %v1630
    %v1941 = vpack.c.b16 %v1939, %v1657
    %v1942 = vpack.c.b16 %v1940, %v1665
    %v1944 = vsel %vm978, %v1941, 0
    %v1947 = vsel %vm978, %v1942, 0
    %v1950 = vsel %vm1698, %v1936, 0
    %1952 = vmatprep.subr.bf16.mxu0 0
    %1953 = vmatpush1.bf16.msra.mxu0 %v1950
    %1954 = vmatprep.subr.bf16.mxu0 0
    %1955 = vmatpush1.bf16.msra.mxu0 0
    %1956 = vmatprep.subr.bf16.mxu0 0
    %1957 = vmatpush1.bf16.msra.mxu0 0
    %1958 = vmatprep.subr.bf16.mxu0 0
    %1959 = vmatpush1.bf16.msra.mxu0 0
    %1960 = vmatprep.subr.bf16.mxu0 0
    %1961 = vmatpush1.bf16.msra.mxu0 0
    %1962 = vmatprep.subr.bf16.mxu0 0
    %1963 = vmatpush1.bf16.msra.mxu0 0
    %1964 = vmatprep.subr.bf16.mxu0 0
    %1965 = vmatpush1.bf16.msra.mxu0 0
    %1966 = vmatprep.subr.bf16.mxu0 0
    %1967 = vmatpush1.bf16.msra.mxu0 0
    %1968 = vmatprep.subr.bf16.mxu0 0
    %1969 = vmatpush1.bf16.msra.mxu0 0
    %1970 = vmatprep.subr.bf16.mxu0 0
    %1971 = vmatpush1.bf16.msra.mxu0 0
    %1972 = vmatprep.subr.bf16.mxu0 0
    %1973 = vmatpush1.bf16.msra.mxu0 0
    %1974 = vmatprep.subr.bf16.mxu0 0
    %1975 = vmatpush1.bf16.msra.mxu0 0
    %1976 = vmatprep.subr.bf16.mxu0 0
    %1977 = vmatpush1.bf16.msra.mxu0 0
    %1978 = vmatprep.subr.bf16.mxu0 0
    %1979 = vmatpush1.bf16.msra.mxu0 0
    %1980 = vmatprep.subr.bf16.mxu0 0
    %1981 = vmatpush1.bf16.msra.mxu0 0
    %1982 = vmatprep.subr.bf16.mxu0 0
    %1983 = vmatpush1.bf16.msra.mxu0 0
    %1984 = vmatprep.mubr.bf16.mxu0 0
    %1985 = vmatmul.mubr.bf16.gmra.mrb[0].mxu0 %v1815
    %v1986 = vpop.f32.mrb[0].mxu0
    %v1987 = vadd.f32 0.0, %v1986
    %v1988 = vpop.f32.mrb[0].mxu0
    %v1989 = vpop.f32.mrb[0].mxu0
    %v1990 = vadd.f32 0.0, %v1989
    %v1991 = vpop.f32.mrb[0].mxu0
    %1992 = vmatprep.mubr.bf16.mxu0 0
    %1993 = vmatmul.mubr.bf16.gmra.mrb[0].mxu0 %v1818
    %v1994 = vpop.f32.mrb[0].mxu0
    %v1995 = vadd.f32 0.0, %v1994
    %v1996 = vpop.f32.mrb[0].mxu0
    %v1997 = vpop.f32.mrb[0].mxu0
    %v1998 = vadd.f32 0.0, %v1997
    %v1999 = vpop.f32.mrb[0].mxu0
    %2000 = vmatprep.mubr.bf16.mxu0 0
    %2001 = vmatmul.mubr.bf16.gmra.mrb[0].mxu0 %v1821
    %v2002 = vpop.f32.mrb[0].mxu0
    %v2003 = vadd.f32 0.0, %v2002
    %v2004 = vpop.f32.mrb[0].mxu0
    %v2005 = vpop.f32.mrb[0].mxu0
    %v2006 = vadd.f32 0.0, %v2005
    %v2007 = vpop.f32.mrb[0].mxu0
    %2008 = vmatprep.mubr.bf16.mxu0 0
    %2009 = vmatmul.mubr.bf16.gmra.mrb[0].mxu0 %v1944
    %v2010 = vpop.f32.mrb[0].mxu0
    %v2011 = vadd.f32 0.0, %v2010
    %v2012 = vpop.f32.mrb[0].mxu0
    %v2013 = vpop.f32.mrb[0].mxu0
    %v2014 = vadd.f32 0.0, %v2013
    %v2015 = vpop.f32.mrb[0].mxu0
    %2016 = vmatprep.mubr.bf16.mxu0 0
    %2017 = vmatmul.mubr.bf16.gmra.mrb[0].mxu0 %v1827
    %v2018 = vpop.f32.mrb[0].mxu0
    %v2019 = vadd.f32 0.0, %v2018
    %v2020 = vpop.f32.mrb[0].mxu0
    %v2021 = vpop.f32.mrb[0].mxu0
    %v2022 = vadd.f32 0.0, %v2021
    %v2023 = vpop.f32.mrb[0].mxu0
    %2024 = vmatprep.mubr.bf16.mxu0 0
    %2025 = vmatmul.mubr.bf16.gmra.mrb[0].mxu0 %v1830
    %v2026 = vpop.f32.mrb[0].mxu0
    %v2027 = vadd.f32 0.0, %v2026
    %v2028 = vpop.f32.mrb[0].mxu0
    %v2029 = vpop.f32.mrb[0].mxu0
    %v2030 = vadd.f32 0.0, %v2029
    %v2031 = vpop.f32.mrb[0].mxu0
    %2032 = vmatprep.mubr.bf16.mxu0 0
    %2033 = vmatmul.mubr.bf16.gmra.mrb[0].mxu0 %v1833
    %v2034 = vpop.f32.mrb[0].mxu0
    %v2035 = vadd.f32 0.0, %v2034
    %v2036 = vpop.f32.mrb[0].mxu0
    %v2037 = vpop.f32.mrb[0].mxu0
    %v2038 = vadd.f32 0.0, %v2037
    %v2039 = vpop.f32.mrb[0].mxu0
    %2040 = vmatprep.mubr.bf16.mxu0 0
    %2041 = vmatmul.mubr.bf16.gmra.mrb[0].mxu0 %v1947
    %v2042 = vpop.f32.mrb[0].mxu0
    %v2043 = vadd.f32 0.0, %v2042
    %v2044 = vpop.f32.mrb[0].mxu0
    %v2045 = vpop.f32.mrb[0].mxu0
    %v2046 = vadd.f32 0.0, %v2045
    %v2047 = vpop.f32.mrb[0].mxu0
    %2048 = vdwg.mxu0
    %v2049 = vadd.f32 %v1873, %v1987
    %v2050 = vadd.f32 %v1876, %v1990
    %v2051 = vadd.f32 %v1881, %v1995
    %v2052 = vadd.f32 %v1884, %v1998
    %v2053 = vadd.f32 %v1889, %v2003
    %v2054 = vadd.f32 %v1892, %v2006
    %v2055 = vadd.f32 %v1897, %v2011
    %v2056 = vadd.f32 %v1900, %v2014
    %v2057 = vadd.f32 %v1905, %v2019
    %v2058 = vadd.f32 %v1908, %v2022
    %v2059 = vadd.f32 %v1913, %v2027
    %v2060 = vadd.f32 %v1916, %v2030
    %v2061 = vadd.f32 %v1921, %v2035
    %v2062 = vadd.f32 %v1924, %v2038
    %v2063 = vadd.f32 %v1929, %v2043
    %v2064 = vadd.f32 %v1932, %v2046
    %v2065 = vld [vmem:[#allocation2] sm:$0xf]
    %v2066 = vld [vmem:[#allocation2 + $0x4] sm:$0x1]
    %v2067 = vld [vmem:[#allocation2 + $0x8] sm:$0xf]
    %v2068 = vld [vmem:[#allocation2 + $0xc] sm:$0x1]
    %v2069 = vld [vmem:[#allocation2 + $0x10] sm:$0xf]
    %v2070 = vld [vmem:[#allocation2 + $0x14] sm:$0x1]
    %v2071 = vld [vmem:[#allocation2 + $0x18] sm:$0xf]
    %v2072 = vld [vmem:[#allocation2 + $0x1c] sm:$0x1]
    %v2073 = vld [vmem:[#allocation2 + $0x20] sm:$0xf]
    %v2074 = vld [vmem:[#allocation2 + $0x24] sm:$0x1]
    %v2075 = vld [vmem:[#allocation2 + $0x28] sm:$0xf]
    %v2076 = vld [vmem:[#allocation2 + $0x2c] sm:$0x1]
    %v2077 = vld [vmem:[#allocation2 + $0x30] sm:$0xf]
    %v2078 = vld [vmem:[#allocation2 + $0x34] sm:$0x1]
    %v2079 = vld [vmem:[#allocation2 + $0x38] sm:$0xf]
    %v2080 = vld [vmem:[#allocation2 + $0x3c] sm:$0x1]
    %v2081 = vld [vmem:[#allocation2 + $0x40] sm:$0xf]
    %v2082 = vld [vmem:[#allocation2 + $0x44] sm:$0x1]
    %v2083 = vld [vmem:[#allocation2 + $0x48] sm:$0xf]
    %v2084 = vld [vmem:[#allocation2 + $0x4c] sm:$0x1]
    %v2085 = vld [vmem:[#allocation2 + $0x50] sm:$0xf]
    %v2086 = vld [vmem:[#allocation2 + $0x54] sm:$0x1]
    %v2087 = vld [vmem:[#allocation2 + $0x58] sm:$0xf]
    %v2088 = vld [vmem:[#allocation2 + $0x5c] sm:$0x1]
    %v2089 = vld [vmem:[#allocation2 + $0x60] sm:$0xf]
    %v2090 = vld [vmem:[#allocation2 + $0x64] sm:$0x1]
    %v2091 = vld [vmem:[#allocation2 + $0x68] sm:$0xf]
    %v2092 = vld [vmem:[#allocation2 + $0x6c] sm:$0x1]
    %v2093 = vld [vmem:[#allocation2 + $0x70] sm:$0xf]
    %v2094 = vld [vmem:[#allocation2 + $0x74] sm:$0x1]
    %v2095 = vld [vmem:[#allocation2 + $0x78] sm:$0xf]
    %v2096 = vld [vmem:[#allocation2 + $0x7c] sm:$0x1]
    %v2097 = vld [vmem:[#allocation2 + $0x80] sm:$0xf]
    %v2098 = vld [vmem:[#allocation2 + $0x84] sm:$0x1]
    %v2099 = vld [vmem:[#allocation2 + $0x88] sm:$0xf]
    %v2100 = vld [vmem:[#allocation2 + $0x8c] sm:$0x1]
    %v2101 = vld [vmem:[#allocation2 + $0x90] sm:$0xf]
    %v2102 = vld [vmem:[#allocation2 + $0x94] sm:$0x1]
    %v2103 = vld [vmem:[#allocation2 + $0x98] sm:$0xf]
    %v2104 = vld [vmem:[#allocation2 + $0x9c] sm:$0x1]
    %v2106 = vshrl.u32 %v2065, 16
    %v2108 = vrot.slane %v2106, 4
    %v2109 = vshll.u32 %v2065, 16
    %v2111 = vrot.slane %v2109, 5
    %v2112 = vor.u32 %v2108, %v2111
    %v2113 = vrot.slane %v2112, 4
    %v2115 = vshll.u32 %v2066, 16
    %v2117 = vrot.slane %v2115, 5
    %v2118 = vsel %vm399, %v2113, %v2117
    %v2120 = vshrl.u32 %v2067, 16
    %v2122 = vrot.slane %v2120, 4
    %v2123 = vshll.u32 %v2067, 16
    %v2125 = vrot.slane %v2123, 5
    %v2126 = vor.u32 %v2122, %v2125
    %v2127 = vrot.slane %v2126, 4
    %v2129 = vshll.u32 %v2068, 16
    %v2131 = vrot.slane %v2129, 5
    %v2132 = vsel %vm399, %v2127, %v2131
    %v2134 = vshrl.u32 %v2069, 16
    %v2136 = vrot.slane %v2134, 4
    %v2137 = vshll.u32 %v2069, 16
    %v2139 = vrot.slane %v2137, 5
    %v2140 = vor.u32 %v2136, %v2139
    %v2141 = vrot.slane %v2140, 4
    %v2143 = vshll.u32 %v2070, 16
    %v2145 = vrot.slane %v2143, 5
    %v2146 = vsel %vm399, %v2141, %v2145
    %v2148 = vshrl.u32 %v2071, 16
    %v2150 = vrot.slane %v2148, 4
    %v2151 = vshll.u32 %v2071, 16
    %v2153 = vrot.slane %v2151, 5
    %v2154 = vor.u32 %v2150, %v2153
    %v2155 = vrot.slane %v2154, 4
    %v2157 = vshll.u32 %v2072, 16
    %v2159 = vrot.slane %v2157, 5
    %v2160 = vsel %vm399, %v2155, %v2159
    %v2162 = vshrl.u32 %v2073, 16
    %v2164 = vrot.slane %v2162, 4
    %v2165 = vshll.u32 %v2073, 16
    %v2167 = vrot.slane %v2165, 5
    %v2168 = vor.u32 %v2164, %v2167
    %v2169 = vrot.slane %v2168, 4
    %v2171 = vshll.u32 %v2074, 16
    %v2173 = vrot.slane %v2171, 5
    %v2174 = vsel %vm399, %v2169, %v2173
    %v2176 = vshrl.u32 %v2075, 16
    %v2178 = vrot.slane %v2176, 4
    %v2179 = vshll.u32 %v2075, 16
    %v2181 = vrot.slane %v2179, 5
    %v2182 = vor.u32 %v2178, %v2181
    %v2183 = vrot.slane %v2182, 4
    %v2185 = vshll.u32 %v2076, 16
    %v2187 = vrot.slane %v2185, 5
    %v2188 = vsel %vm399, %v2183, %v2187
    %v2190 = vshrl.u32 %v2077, 16
    %v2192 = vrot.slane %v2190, 4
    %v2193 = vshll.u32 %v2077, 16
    %v2195 = vrot.slane %v2193, 5
    %v2196 = vor.u32 %v2192, %v2195
    %v2197 = vrot.slane %v2196, 4
    %v2199 = vshll.u32 %v2078, 16
    %v2201 = vrot.slane %v2199, 5
    %v2202 = vsel %vm399, %v2197, %v2201
    %v2204 = vshrl.u32 %v2079, 16
    %v2206 = vrot.slane %v2204, 4
    %v2207 = vshll.u32 %v2079, 16
    %v2209 = vrot.slane %v2207, 5
    %v2210 = vor.u32 %v2206, %v2209
    %v2211 = vrot.slane %v2210, 4
    %v2213 = vshll.u32 %v2080, 16
    %v2215 = vrot.slane %v2213, 5
    %v2216 = vsel %vm399, %v2211, %v2215
    %v2218 = vshrl.u32 %v2085, 16
    %v2220 = vrot.slane %v2218, 4
    %v2221 = vshll.u32 %v2085, 16
    %v2223 = vrot.slane %v2221, 5
    %v2224 = vor.u32 %v2220, %v2223
    %v2225 = vrot.slane %v2224, 4
    %v2227 = vshll.u32 %v2086, 16
    %v2229 = vrot.slane %v2227, 5
    %v2230 = vsel %vm399, %v2225, %v2229
    %v2232 = vshrl.u32 %v2087, 16
    %v2234 = vrot.slane %v2232, 4
    %v2235 = vshll.u32 %v2087, 16
    %v2237 = vrot.slane %v2235, 5
    %v2238 = vor.u32 %v2234, %v2237
    %v2239 = vrot.slane %v2238, 4
    %v2241 = vshll.u32 %v2088, 16
    %v2243 = vrot.slane %v2241, 5
    %v2244 = vsel %vm399, %v2239, %v2243
    %v2246 = vshrl.u32 %v2089, 16
    %v2248 = vrot.slane %v2246, 4
    %v2249 = vshll.u32 %v2089, 16
    %v2251 = vrot.slane %v2249, 5
    %v2252 = vor.u32 %v2248, %v2251
    %v2253 = vrot.slane %v2252, 4
    %v2255 = vshll.u32 %v2090, 16
    %v2257 = vrot.slane %v2255, 5
    %v2258 = vsel %vm399, %v2253, %v2257
    %v2260 = vshrl.u32 %v2091, 16
    %v2262 = vrot.slane %v2260, 4
    %v2263 = vshll.u32 %v2091, 16
    %v2265 = vrot.slane %v2263, 5
    %v2266 = vor.u32 %v2262, %v2265
    %v2267 = vrot.slane %v2266, 4
    %v2269 = vshll.u32 %v2092, 16
    %v2271 = vrot.slane %v2269, 5
    %v2272 = vsel %vm399, %v2267, %v2271
    %v2274 = vshrl.u32 %v2093, 16
    %v2276 = vrot.slane %v2274, 4
    %v2277 = vshll.u32 %v2093, 16
    %v2279 = vrot.slane %v2277, 5
    %v2280 = vor.u32 %v2276, %v2279
    %v2281 = vrot.slane %v2280, 4
    %v2283 = vshll.u32 %v2094, 16
    %v2285 = vrot.slane %v2283, 5
    %v2286 = vsel %vm399, %v2281, %v2285
    %v2288 = vshrl.u32 %v2095, 16
    %v2290 = vrot.slane %v2288, 4
    %v2291 = vshll.u32 %v2095, 16
    %v2293 = vrot.slane %v2291, 5
    %v2294 = vor.u32 %v2290, %v2293
    %v2295 = vrot.slane %v2294, 4
    %v2297 = vshll.u32 %v2096, 16
    %v2299 = vrot.slane %v2297, 5
    %v2300 = vsel %vm399, %v2295, %v2299
    %v2302 = vshrl.u32 %v2097, 16
    %v2304 = vrot.slane %v2302, 4
    %v2305 = vshll.u32 %v2097, 16
    %v2307 = vrot.slane %v2305, 5
    %v2308 = vor.u32 %v2304, %v2307
    %v2309 = vrot.slane %v2308, 4
    %v2311 = vshll.u32 %v2098, 16
    %v2313 = vrot.slane %v2311, 5
    %v2314 = vsel %vm399, %v2309, %v2313
    %v2316 = vshrl.u32 %v2099, 16
    %v2318 = vrot.slane %v2316, 4
    %v2319 = vshll.u32 %v2099, 16
    %v2321 = vrot.slane %v2319, 5
    %v2322 = vor.u32 %v2318, %v2321
    %v2323 = vrot.slane %v2322, 4
    %v2325 = vshll.u32 %v2100, 16
    %v2327 = vrot.slane %v2325, 5
    %v2328 = vsel %vm399, %v2323, %v2327
    %s2329 = scalar_lea.vmem %s3, 4
    %v2330 = vld [vmem:[%s2329] sm:$0xf]
    %v2331 = vunpack.c.l.b16 %v2118
    %v2332 = vunpack.c.l.b16 %v2132
    %v2333 = vunpack.c.l.b16 %v2146
    %v2334 = vunpack.c.l.b16 %v2160
    %v2335 = vunpack.c.l.b16 %v2174
    %v2336 = vunpack.c.l.b16 %v2188
    %v2337 = vunpack.c.l.b16 %v2202
    %v2338 = vunpack.c.l.b16 %v2216
    %v2339 = vunpack.c.l.b16 %v2230
    %v2340 = vunpack.c.l.b16 %v2244
    %v2341 = vunpack.c.l.b16 %v2258
    %v2342 = vunpack.c.l.b16 %v2272
    %v2343 = vunpack.c.l.b16 %v2286
    %v2344 = vunpack.c.l.b16 %v2300
    %v2345 = vunpack.c.l.b16 %v2314
    %v2346 = vunpack.c.l.b16 %v2328
    %v2347 = vpack.c.b16 %v2332, %v2331
    %v2348 = vpack.c.b16 %v2334, %v2333
    %v2349 = vpack.c.b16 %v2336, %v2335
    %v2350 = vpack.c.b16 %v2338, %v2337
    %v2351 = vpack.c.b16 %v2340, %v2339
    %v2352 = vpack.c.b16 %v2342, %v2341
    %v2353 = vpack.c.b16 %v2344, %v2343
    %v2354 = vpack.c.b16 %v2346, %v2345
    %v2356 = vsel %vm978, %v2347, 0
    %v2359 = vsel %vm978, %v2348, 0
    %v2362 = vsel %vm978, %v2349, 0
    %v2365 = vsel %vm978, %v2350, 0
    %v2368 = vsel %vm978, %v2351, 0
    %v2371 = vsel %vm978, %v2352, 0
    %v2374 = vsel %vm978, %v2353, 0
    %v2377 = vsel %vm978, %v2354, 0
    %v2380 = vsel %vm1698, %v2330, 0
    %2382 = vmatprep.subr.bf16.mxu0 0
    %2383 = vmatpush1.bf16.msra.mxu0 %v2380
    %2384 = vmatprep.subr.bf16.mxu0 0
    %2385 = vmatpush1.bf16.msra.mxu0 0
    %2386 = vmatprep.subr.bf16.mxu0 0
    %2387 = vmatpush1.bf16.msra.mxu0 0
    %2388 = vmatprep.subr.bf16.mxu0 0
    %2389 = vmatpush1.bf16.msra.mxu0 0
    %2390 = vmatprep.subr.bf16.mxu0 0
    %2391 = vmatpush1.bf16.msra.mxu0 0
    %2392 = vmatprep.subr.bf16.mxu0 0
    %2393 = vmatpush1.bf16.msra.mxu0 0
    %2394 = vmatprep.subr.bf16.mxu0 0
    %2395 = vmatpush1.bf16.msra.mxu0 0
    %2396 = vmatprep.subr.bf16.mxu0 0
    %2397 = vmatpush1.bf16.msra.mxu0 0
    %2398 = vmatprep.subr.bf16.mxu0 0
    %2399 = vmatpush1.bf16.msra.mxu0 0
    %2400 = vmatprep.subr.bf16.mxu0 0
    %2401 = vmatpush1.bf16.msra.mxu0 0
    %2402 = vmatprep.subr.bf16.mxu0 0
    %2403 = vmatpush1.bf16.msra.mxu0 0
    %2404 = vmatprep.subr.bf16.mxu0 0
    %2405 = vmatpush1.bf16.msra.mxu0 0
    %2406 = vmatprep.subr.bf16.mxu0 0
    %2407 = vmatpush1.bf16.msra.mxu0 0
    %2408 = vmatprep.subr.bf16.mxu0 0
    %2409 = vmatpush1.bf16.msra.mxu0 0
    %2410 = vmatprep.subr.bf16.mxu0 0
    %2411 = vmatpush1.bf16.msra.mxu0 0
    %2412 = vmatprep.subr.bf16.mxu0 0
    %2413 = vmatpush1.bf16.msra.mxu0 0
    %2414 = vmatprep.mubr.bf16.mxu0 0
    %2415 = vmatmul.mubr.bf16.gmra.mrb[0].mxu0 %v2356
    %v2416 = vpop.f32.mrb[0].mxu0
    %v2417 = vadd.f32 0.0, %v2416
    %v2418 = vpop.f32.mrb[0].mxu0
    %v2419 = vpop.f32.mrb[0].mxu0
    %v2420 = vadd.f32 0.0, %v2419
    %v2421 = vpop.f32.mrb[0].mxu0
    %2422 = vmatprep.mubr.bf16.mxu0 0
    %2423 = vmatmul.mubr.bf16.gmra.mrb[0].mxu0 %v2359
    %v2424 = vpop.f32.mrb[0].mxu0
    %v2425 = vadd.f32 0.0, %v2424
    %v2426 = vpop.f32.mrb[0].mxu0
    %v2427 = vpop.f32.mrb[0].mxu0
    %v2428 = vadd.f32 0.0, %v2427
    %v2429 = vpop.f32.mrb[0].mxu0
    %2430 = vmatprep.mubr.bf16.mxu0 0
    %2431 = vmatmul.mubr.bf16.gmra.mrb[0].mxu0 %v2362
    %v2432 = vpop.f32.mrb[0].mxu0
    %v2433 = vadd.f32 0.0, %v2432
    %v2434 = vpop.f32.mrb[0].mxu0
    %v2435 = vpop.f32.mrb[0].mxu0
    %v2436 = vadd.f32 0.0, %v2435
    %v2437 = vpop.f32.mrb[0].mxu0
    %2438 = vmatprep.mubr.bf16.mxu0 0
    %2439 = vmatmul.mubr.bf16.gmra.mrb[0].mxu0 %v2365
    %v2440 = vpop.f32.mrb[0].mxu0
    %v2441 = vadd.f32 0.0, %v2440
    %v2442 = vpop.f32.mrb[0].mxu0
    %v2443 = vpop.f32.mrb[0].mxu0
    %v2444 = vadd.f32 0.0, %v2443
    %v2445 = vpop.f32.mrb[0].mxu0
    %2446 = vmatprep.mubr.bf16.mxu0 0
    %2447 = vmatmul.mubr.bf16.gmra.mrb[0].mxu0 %v2368
    %v2448 = vpop.f32.mrb[0].mxu0
    %v2449 = vadd.f32 0.0, %v2448
    %v2450 = vpop.f32.mrb[0].mxu0
    %v2451 = vpop.f32.mrb[0].mxu0
    %v2452 = vadd.f32 0.0, %v2451
    %v2453 = vpop.f32.mrb[0].mxu0
    %2454 = vmatprep.mubr.bf16.mxu0 0
    %2455 = vmatmul.mubr.bf16.gmra.mrb[0].mxu0 %v2371
    %v2456 = vpop.f32.mrb[0].mxu0
    %v2457 = vadd.f32 0.0, %v2456
    %v2458 = vpop.f32.mrb[0].mxu0
    %v2459 = vpop.f32.mrb[0].mxu0
    %v2460 = vadd.f32 0.0, %v2459
    %v2461 = vpop.f32.mrb[0].mxu0
    %2462 = vmatprep.mubr.bf16.mxu0 0
    %2463 = vmatmul.mubr.bf16.gmra.mrb[0].mxu0 %v2374
    %v2464 = vpop.f32.mrb[0].mxu0
    %v2465 = vadd.f32 0.0, %v2464
    %v2466 = vpop.f32.mrb[0].mxu0
    %v2467 = vpop.f32.mrb[0].mxu0
    %v2468 = vadd.f32 0.0, %v2467
    %v2469 = vpop.f32.mrb[0].mxu0
    %2470 = vmatprep.mubr.bf16.mxu0 0
    %2471 = vmatmul.mubr.bf16.gmra.mrb[0].mxu0 %v2377
    %v2472 = vpop.f32.mrb[0].mxu0
    %v2473 = vadd.f32 0.0, %v2472
    %v2474 = vpop.f32.mrb[0].mxu0
    %v2475 = vpop.f32.mrb[0].mxu0
    %v2476 = vadd.f32 0.0, %v2475
    %v2477 = vpop.f32.mrb[0].mxu0
    %2478 = vdwg.mxu0
    %v2479 = vadd.f32 %v2049, %v2417
    %v2480 = vadd.f32 %v2050, %v2420
    %v2481 = vadd.f32 %v2051, %v2425
    %v2482 = vadd.f32 %v2052, %v2428
    %v2483 = vadd.f32 %v2053, %v2433
    %v2484 = vadd.f32 %v2054, %v2436
    %v2485 = vadd.f32 %v2055, %v2441
    %v2486 = vadd.f32 %v2056, %v2444
    %v2487 = vadd.f32 %v2057, %v2449
    %v2488 = vadd.f32 %v2058, %v2452
    %v2489 = vadd.f32 %v2059, %v2457
    %v2490 = vadd.f32 %v2060, %v2460
    %v2491 = vadd.f32 %v2061, %v2465
    %v2492 = vadd.f32 %v2062, %v2468
    %v2493 = vadd.f32 %v2063, %v2473
    %v2494 = vadd.f32 %v2064, %v2476
    %v2496 = vshrl.u32 %v2081, 16
    %v2498 = vrot.slane %v2496, 4
    %v2499 = vshll.u32 %v2081, 16
    %v2501 = vrot.slane %v2499, 5
    %v2502 = vor.u32 %v2498, %v2501
    %v2503 = vrot.slane %v2502, 4
    %v2505 = vshll.u32 %v2082, 16
    %v2507 = vrot.slane %v2505, 5
    %v2508 = vsel %vm399, %v2503, %v2507
    %v2510 = vshrl.u32 %v2101, 16
    %v2512 = vrot.slane %v2510, 4
    %v2513 = vshll.u32 %v2101, 16
    %v2515 = vrot.slane %v2513, 5
    %v2516 = vor.u32 %v2512, %v2515
    %v2517 = vrot.slane %v2516, 4
    %v2519 = vshll.u32 %v2102, 16
    %v2521 = vrot.slane %v2519, 5
    %v2522 = vsel %vm399, %v2517, %v2521
    %s2523 = scalar_lea.vmem %s3, 16
    %v2524 = vld [vmem:[%s2523] sm:$0xf]
    %v2525 = vunpack.c.l.b16 %v2508
    %v2526 = vunpack.c.l.b16 %v2522
    %v2527 = vpack.c.b16 %v2333, %v2332
    %v2528 = vpack.c.b16 %v2335, %v2334
    %v2529 = vpack.c.b16 %v2337, %v2336
    %v2530 = vpack.c.b16 %v2525, %v2338
    %v2531 = vpack.c.b16 %v2341, %v2340
    %v2532 = vpack.c.b16 %v2343, %v2342
    %v2533 = vpack.c.b16 %v2345, %v2344
    %v2534 = vpack.c.b16 %v2526, %v2346
    %v2536 = vsel %vm978, %v2527, 0
    %v2539 = vsel %vm978, %v2528, 0
    %v2542 = vsel %vm978, %v2529, 0
    %v2545 = vsel %vm978, %v2530, 0
    %v2548 = vsel %vm978, %v2531, 0
    %v2551 = vsel %vm978, %v2532, 0
    %v2554 = vsel %vm978, %v2533, 0
    %v2557 = vsel %vm978, %v2534, 0
    %v2560 = vsel %vm1698, %v2524, 0
    %2562 = vmatprep.subr.bf16.mxu0 0
    %2563 = vmatpush1.bf16.msra.mxu0 %v2560
    %2564 = vmatprep.subr.bf16.mxu0 0
    %2565 = vmatpush1.bf16.msra.mxu0 0
    %2566 = vmatprep.subr.bf16.mxu0 0
    %2567 = vmatpush1.bf16.msra.mxu0 0
    %2568 = vmatprep.subr.bf16.mxu0 0
    %2569 = vmatpush1.bf16.msra.mxu0 0
    %2570 = vmatprep.subr.bf16.mxu0 0
    %2571 = vmatpush1.bf16.msra.mxu0 0
    %2572 = vmatprep.subr.bf16.mxu0 0
    %2573 = vmatpush1.bf16.msra.mxu0 0
    %2574 = vmatprep.subr.bf16.mxu0 0
    %2575 = vmatpush1.bf16.msra.mxu0 0
    %2576 = vmatprep.subr.bf16.mxu0 0
    %2577 = vmatpush1.bf16.msra.mxu0 0
    %2578 = vmatprep.subr.bf16.mxu0 0
    %2579 = vmatpush1.bf16.msra.mxu0 0
    %2580 = vmatprep.subr.bf16.mxu0 0
    %2581 = vmatpush1.bf16.msra.mxu0 0
    %2582 = vmatprep.subr.bf16.mxu0 0
    %2583 = vmatpush1.bf16.msra.mxu0 0
    %2584 = vmatprep.subr.bf16.mxu0 0
    %2585 = vmatpush1.bf16.msra.mxu0 0
    %2586 = vmatprep.subr.bf16.mxu0 0
    %2587 = vmatpush1.bf16.msra.mxu0 0
    %2588 = vmatprep.subr.bf16.mxu0 0
    %2589 = vmatpush1.bf16.msra.mxu0 0
    %2590 = vmatprep.subr.bf16.mxu0 0
    %2591 = vmatpush1.bf16.msra.mxu0 0
    %2592 = vmatprep.subr.bf16.mxu0 0
    %2593 = vmatpush1.bf16.msra.mxu0 0
    %2594 = vmatprep.mubr.bf16.mxu0 0
    %2595 = vmatmul.mubr.bf16.gmra.mrb[0].mxu0 %v2536
    %v2596 = vpop.f32.mrb[0].mxu0
    %v2597 = vadd.f32 0.0, %v2596
    %v2598 = vpop.f32.mrb[0].mxu0
    %v2599 = vpop.f32.mrb[0].mxu0
    %v2600 = vadd.f32 0.0, %v2599
    %v2601 = vpop.f32.mrb[0].mxu0
    %2602 = vmatprep.mubr.bf16.mxu0 0
    %2603 = vmatmul.mubr.bf16.gmra.mrb[0].mxu0 %v2539
    %v2604 = vpop.f32.mrb[0].mxu0
    %v2605 = vadd.f32 0.0, %v2604
    %v2606 = vpop.f32.mrb[0].mxu0
    %v2607 = vpop.f32.mrb[0].mxu0
    %v2608 = vadd.f32 0.0, %v2607
    %v2609 = vpop.f32.mrb[0].mxu0
    %2610 = vmatprep.mubr.bf16.mxu0 0
    %2611 = vmatmul.mubr.bf16.gmra.mrb[0].mxu0 %v2542
    %v2612 = vpop.f32.mrb[0].mxu0
    %v2613 = vadd.f32 0.0, %v2612
    %v2614 = vpop.f32.mrb[0].mxu0
    %v2615 = vpop.f32.mrb[0].mxu0
    %v2616 = vadd.f32 0.0, %v2615
    %v2617 = vpop.f32.mrb[0].mxu0
    %2618 = vmatprep.mubr.bf16.mxu0 0
    %2619 = vmatmul.mubr.bf16.gmra.mrb[0].mxu0 %v2545
    %v2620 = vpop.f32.mrb[0].mxu0
    %v2621 = vadd.f32 0.0, %v2620
    %v2622 = vpop.f32.mrb[0].mxu0
    %v2623 = vpop.f32.mrb[0].mxu0
    %v2624 = vadd.f32 0.0, %v2623
    %v2625 = vpop.f32.mrb[0].mxu0
    %2626 = vmatprep.mubr.bf16.mxu0 0
    %2627 = vmatmul.mubr.bf16.gmra.mrb[0].mxu0 %v2548
    %v2628 = vpop.f32.mrb[0].mxu0
    %v2629 = vadd.f32 0.0, %v2628
    %v2630 = vpop.f32.mrb[0].mxu0
    %v2631 = vpop.f32.mrb[0].mxu0
    %v2632 = vadd.f32 0.0, %v2631
    %v2633 = vpop.f32.mrb[0].mxu0
    %2634 = vmatprep.mubr.bf16.mxu0 0
    %2635 = vmatmul.mubr.bf16.gmra.mrb[0].mxu0 %v2551
    %v2636 = vpop.f32.mrb[0].mxu0
    %v2637 = vadd.f32 0.0, %v2636
    %v2638 = vpop.f32.mrb[0].mxu0
    %v2639 = vpop.f32.mrb[0].mxu0
    %v2640 = vadd.f32 0.0, %v2639
    %v2641 = vpop.f32.mrb[0].mxu0
    %2642 = vmatprep.mubr.bf16.mxu0 0
    %2643 = vmatmul.mubr.bf16.gmra.mrb[0].mxu0 %v2554
    %v2644 = vpop.f32.mrb[0].mxu0
    %v2645 = vadd.f32 0.0, %v2644
    %v2646 = vpop.f32.mrb[0].mxu0
    %v2647 = vpop.f32.mrb[0].mxu0
    %v2648 = vadd.f32 0.0, %v2647
    %v2649 = vpop.f32.mrb[0].mxu0
    %2650 = vmatprep.mubr.bf16.mxu0 0
    %2651 = vmatmul.mubr.bf16.gmra.mrb[0].mxu0 %v2557
    %v2652 = vpop.f32.mrb[0].mxu0
    %v2653 = vadd.f32 0.0, %v2652
    %v2654 = vpop.f32.mrb[0].mxu0
    %v2655 = vpop.f32.mrb[0].mxu0
    %v2656 = vadd.f32 0.0, %v2655
    %v2657 = vpop.f32.mrb[0].mxu0
    %2658 = vdwg.mxu0
    %v2659 = vadd.f32 %v2479, %v2597
    %v2660 = vadd.f32 %v2480, %v2600
    %v2661 = vadd.f32 %v2481, %v2605
    %v2662 = vadd.f32 %v2482, %v2608
    %v2663 = vadd.f32 %v2483, %v2613
    %v2664 = vadd.f32 %v2484, %v2616
    %v2665 = vadd.f32 %v2485, %v2621
    %v2666 = vadd.f32 %v2486, %v2624
    %v2667 = vadd.f32 %v2487, %v2629
    %v2668 = vadd.f32 %v2488, %v2632
    %v2669 = vadd.f32 %v2489, %v2637
    %v2670 = vadd.f32 %v2490, %v2640
    %v2671 = vadd.f32 %v2491, %v2645
    %v2672 = vadd.f32 %v2492, %v2648
    %v2673 = vadd.f32 %v2493, %v2653
    %v2674 = vadd.f32 %v2494, %v2656
    %v2676 = vshrl.u32 %v2083, 16
    %v2678 = vrot.slane %v2676, 4
    %v2679 = vshll.u32 %v2083, 16
    %v2681 = vrot.slane %v2679, 5
    %v2682 = vor.u32 %v2678, %v2681
    %v2683 = vrot.slane %v2682, 4
    %v2685 = vshll.u32 %v2084, 16
    %v2687 = vrot.slane %v2685, 5
    %v2688 = vsel %vm399, %v2683, %v2687
    %v2690 = vshrl.u32 %v2103, 16
    %v2692 = vrot.slane %v2690, 4
    %v2693 = vshll.u32 %v2103, 16
    %v2695 = vrot.slane %v2693, 5
    %v2696 = vor.u32 %v2692, %v2695
    %v2697 = vrot.slane %v2696, 4
    %v2699 = vshll.u32 %v2104, 16
    %v2701 = vrot.slane %v2699, 5
    %v2702 = vsel %vm399, %v2697, %v2701
    %s2703 = scalar_lea.vmem %s3, 28
    %v2704 = vld [vmem:[%s2703] sm:$0xf]
    %v2705 = vunpack.c.l.b16 %v2688
    %v2706 = vunpack.c.l.b16 %v2702
    %v2707 = vpack.c.b16 %v2705, %v2525
    %v2708 = vpack.c.b16 %v2706, %v2526
    %v2710 = vsel %vm978, %v2707, 0
    %v2713 = vsel %vm978, %v2708, 0
    %v2716 = vsel %vm1698, %v2704, 0
    %2718 = vmatprep.subr.bf16.mxu0 0
    %2719 = vmatpush1.bf16.msra.mxu0 %v2716
    %2720 = vmatprep.subr.bf16.mxu0 0
    %2721 = vmatpush1.bf16.msra.mxu0 0
    %2722 = vmatprep.subr.bf16.mxu0 0
    %2723 = vmatpush1.bf16.msra.mxu0 0
    %2724 = vmatprep.subr.bf16.mxu0 0
    %2725 = vmatpush1.bf16.msra.mxu0 0
    %2726 = vmatprep.subr.bf16.mxu0 0
    %2727 = vmatpush1.bf16.msra.mxu0 0
    %2728 = vmatprep.subr.bf16.mxu0 0
    %2729 = vmatpush1.bf16.msra.mxu0 0
    %2730 = vmatprep.subr.bf16.mxu0 0
    %2731 = vmatpush1.bf16.msra.mxu0 0
    %2732 = vmatprep.subr.bf16.mxu0 0
    %2733 = vmatpush1.bf16.msra.mxu0 0
    %2734 = vmatprep.subr.bf16.mxu0 0
    %2735 = vmatpush1.bf16.msra.mxu0 0
    %2736 = vmatprep.subr.bf16.mxu0 0
    %2737 = vmatpush1.bf16.msra.mxu0 0
    %2738 = vmatprep.subr.bf16.mxu0 0
    %2739 = vmatpush1.bf16.msra.mxu0 0
    %2740 = vmatprep.subr.bf16.mxu0 0
    %2741 = vmatpush1.bf16.msra.mxu0 0
    %2742 = vmatprep.subr.bf16.mxu0 0
    %2743 = vmatpush1.bf16.msra.mxu0 0
    %2744 = vmatprep.subr.bf16.mxu0 0
    %2745 = vmatpush1.bf16.msra.mxu0 0
    %2746 = vmatprep.subr.bf16.mxu0 0
    %2747 = vmatpush1.bf16.msra.mxu0 0
    %2748 = vmatprep.subr.bf16.mxu0 0
    %2749 = vmatpush1.bf16.msra.mxu0 0
    %2750 = vmatprep.mubr.bf16.mxu0 0
    %2751 = vmatmul.mubr.bf16.gmra.mrb[0].mxu0 %v2359
    %v2752 = vpop.f32.mrb[0].mxu0
    %v2753 = vadd.f32 0.0, %v2752
    %v2754 = vpop.f32.mrb[0].mxu0
    %v2755 = vpop.f32.mrb[0].mxu0
    %v2756 = vadd.f32 0.0, %v2755
    %v2757 = vpop.f32.mrb[0].mxu0
    %2758 = vmatprep.mubr.bf16.mxu0 0
    %2759 = vmatmul.mubr.bf16.gmra.mrb[0].mxu0 %v2362
    %v2760 = vpop.f32.mrb[0].mxu0
    %v2761 = vadd.f32 0.0, %v2760
    %v2762 = vpop.f32.mrb[0].mxu0
    %v2763 = vpop.f32.mrb[0].mxu0
    %v2764 = vadd.f32 0.0, %v2763
    %v2765 = vpop.f32.mrb[0].mxu0
    %2766 = vmatprep.mubr.bf16.mxu0 0
    %2767 = vmatmul.mubr.bf16.gmra.mrb[0].mxu0 %v2365
    %v2768 = vpop.f32.mrb[0].mxu0
    %v2769 = vadd.f32 0.0, %v2768
    %v2770 = vpop.f32.mrb[0].mxu0
    %v2771 = vpop.f32.mrb[0].mxu0
    %v2772 = vadd.f32 0.0, %v2771
    %v2773 = vpop.f32.mrb[0].mxu0
    %2774 = vmatprep.mubr.bf16.mxu0 0
    %2775 = vmatmul.mubr.bf16.gmra.mrb[0].mxu0 %v2710
    %v2776 = vpop.f32.mrb[0].mxu0
    %v2777 = vadd.f32 0.0, %v2776
    %v2778 = vpop.f32.mrb[0].mxu0
    %v2779 = vpop.f32.mrb[0].mxu0
    %v2780 = vadd.f32 0.0, %v2779
    %v2781 = vpop.f32.mrb[0].mxu0
    %2782 = vmatprep.mubr.bf16.mxu0 0
    %2783 = vmatmul.mubr.bf16.gmra.mrb[0].mxu0 %v2371
    %v2784 = vpop.f32.mrb[0].mxu0
    %v2785 = vadd.f32 0.0, %v2784
    %v2786 = vpop.f32.mrb[0].mxu0
    %v2787 = vpop.f32.mrb[0].mxu0
    %v2788 = vadd.f32 0.0, %v2787
    %v2789 = vpop.f32.mrb[0].mxu0
    %2790 = vmatprep.mubr.bf16.mxu0 0
    %2791 = vmatmul.mubr.bf16.gmra.mrb[0].mxu0 %v2374
    %v2792 = vpop.f32.mrb[0].mxu0
    %v2793 = vadd.f32 0.0, %v2792
    %v2794 = vpop.f32.mrb[0].mxu0
    %v2795 = vpop.f32.mrb[0].mxu0
    %v2796 = vadd.f32 0.0, %v2795
    %v2797 = vpop.f32.mrb[0].mxu0
    %2798 = vmatprep.mubr.bf16.mxu0 0
    %2799 = vmatmul.mubr.bf16.gmra.mrb[0].mxu0 %v2377
    %v2800 = vpop.f32.mrb[0].mxu0
    %v2801 = vadd.f32 0.0, %v2800
    %v2802 = vpop.f32.mrb[0].mxu0
    %v2803 = vpop.f32.mrb[0].mxu0
    %v2804 = vadd.f32 0.0, %v2803
    %v2805 = vpop.f32.mrb[0].mxu0
    %2806 = vmatprep.mubr.bf16.mxu0 0
    %2807 = vmatmul.mubr.bf16.gmra.mrb[0].mxu0 %v2713
    %v2808 = vpop.f32.mrb[0].mxu0
    %v2809 = vadd.f32 0.0, %v2808
    %v2810 = vpop.f32.mrb[0].mxu0
    %v2811 = vpop.f32.mrb[0].mxu0
    %v2812 = vadd.f32 0.0, %v2811
    %v2813 = vpop.f32.mrb[0].mxu0
    %2814 = vdwg.mxu0
    %v2815 = vadd.f32 %v2659, %v2753
    %v2816 = vadd.f32 %v2660, %v2756
    %v2817 = vadd.f32 %v2661, %v2761
    %v2818 = vadd.f32 %v2662, %v2764
    %v2819 = vadd.f32 %v2663, %v2769
    %v2820 = vadd.f32 %v2664, %v2772
    %v2821 = vadd.f32 %v2665, %v2777
    %v2822 = vadd.f32 %v2666, %v2780
    %v2823 = vadd.f32 %v2667, %v2785
    %v2824 = vadd.f32 %v2668, %v2788
    %v2825 = vadd.f32 %v2669, %v2793
    %v2826 = vadd.f32 %v2670, %v2796
    %v2827 = vadd.f32 %v2671, %v2801
    %v2828 = vadd.f32 %v2672, %v2804
    %v2829 = vadd.f32 %v2673, %v2809
    %v2830 = vadd.f32 %v2674, %v2812
    %v2831 = vld [vmem:[#allocation2] sm:$0xe]
    %v2832 = vld [vmem:[#allocation2 + $0x8] sm:$0xe]
    %v2833 = vld [vmem:[#allocation2 + $0x10] sm:$0xe]
    %v2834 = vld [vmem:[#allocation2 + $0x18] sm:$0xe]
    %v2835 = vld [vmem:[#allocation2 + $0x20] sm:$0xe]
    %v2836 = vld [vmem:[#allocation2 + $0x28] sm:$0xe]
    %v2837 = vld [vmem:[#allocation2 + $0x30] sm:$0xe]
    %v2838 = vld [vmem:[#allocation2 + $0x38] sm:$0xe]
    %v2839 = vld [vmem:[#allocation2 + $0x40] sm:$0xe]
    %v2840 = vld [vmem:[#allocation2 + $0x48] sm:$0xe]
    %v2841 = vld [vmem:[#allocation2 + $0x50] sm:$0xe]
    %v2842 = vld [vmem:[#allocation2 + $0x58] sm:$0xe]
    %v2843 = vld [vmem:[#allocation2 + $0x60] sm:$0xe]
    %v2844 = vld [vmem:[#allocation2 + $0x68] sm:$0xe]
    %v2845 = vld [vmem:[#allocation2 + $0x70] sm:$0xe]
    %v2846 = vld [vmem:[#allocation2 + $0x78] sm:$0xe]
    %v2847 = vld [vmem:[#allocation2 + $0x80] sm:$0xe]
    %v2848 = vld [vmem:[#allocation2 + $0x88] sm:$0xe]
    %v2849 = vld [vmem:[#allocation2 + $0x90] sm:$0xe]
    %v2850 = vld [vmem:[#allocation2 + $0x98] sm:$0xe]
    %vm2883 = vcmask 1042432
    %vm2884 = vcmask 1046532
    %vm2885 = vmor %vm2883, %vm2884
    %v2886 = vrot.slane %v2831, 5
    %v2887 = vrot.slane %v2886, 4
    %v2888 = vrot.slane %v2066, 5
    %v2889 = vsel %vm2885, %v2887, %v2888
    %v2890 = vrot.slane %v2832, 5
    %v2891 = vrot.slane %v2890, 4
    %v2892 = vrot.slane %v2068, 5
    %v2893 = vsel %vm2885, %v2891, %v2892
    %v2894 = vrot.slane %v2833, 5
    %v2895 = vrot.slane %v2894, 4
    %v2896 = vrot.slane %v2070, 5
    %v2897 = vsel %vm2885, %v2895, %v2896
    %v2898 = vrot.slane %v2834, 5
    %v2899 = vrot.slane %v2898, 4
    %v2900 = vrot.slane %v2072, 5
    %v2901 = vsel %vm2885, %v2899, %v2900
    %v2902 = vrot.slane %v2835, 5
    %v2903 = vrot.slane %v2902, 4
    %v2904 = vrot.slane %v2074, 5
    %v2905 = vsel %vm2885, %v2903, %v2904
    %v2906 = vrot.slane %v2836, 5
    %v2907 = vrot.slane %v2906, 4
    %v2908 = vrot.slane %v2076, 5
    %v2909 = vsel %vm2885, %v2907, %v2908
    %v2910 = vrot.slane %v2837, 5
    %v2911 = vrot.slane %v2910, 4
    %v2912 = vrot.slane %v2078, 5
    %v2913 = vsel %vm2885, %v2911, %v2912
    %v2914 = vrot.slane %v2838, 5
    %v2915 = vrot.slane %v2914, 4
    %v2916 = vrot.slane %v2080, 5
    %v2917 = vsel %vm2885, %v2915, %v2916
    %v2918 = vrot.slane %v2841, 5
    %v2919 = vrot.slane %v2918, 4
    %v2920 = vrot.slane %v2086, 5
    %v2921 = vsel %vm2885, %v2919, %v2920
    %v2922 = vrot.slane %v2842, 5
    %v2923 = vrot.slane %v2922, 4
    %v2924 = vrot.slane %v2088, 5
    %v2925 = vsel %vm2885, %v2923, %v2924
    %v2926 = vrot.slane %v2843, 5
    %v2927 = vrot.slane %v2926, 4
    %v2928 = vrot.slane %v2090, 5
    %v2929 = vsel %vm2885, %v2927, %v2928
    %v2930 = vrot.slane %v2844, 5
    %v2931 = vrot.slane %v2930, 4
    %v2932 = vrot.slane %v2092, 5
    %v2933 = vsel %vm2885, %v2931, %v2932
    %v2934 = vrot.slane %v2845, 5
    %v2935 = vrot.slane %v2934, 4
    %v2936 = vrot.slane %v2094, 5
    %v2937 = vsel %vm2885, %v2935, %v2936
    %v2938 = vrot.slane %v2846, 5
    %v2939 = vrot.slane %v2938, 4
    %v2940 = vrot.slane %v2096, 5
    %v2941 = vsel %vm2885, %v2939, %v2940
    %v2942 = vrot.slane %v2847, 5
    %v2943 = vrot.slane %v2942, 4
    %v2944 = vrot.slane %v2098, 5
    %v2945 = vsel %vm2885, %v2943, %v2944
    %v2946 = vrot.slane %v2848, 5
    %v2947 = vrot.slane %v2946, 4
    %v2948 = vrot.slane %v2100, 5
    %v2949 = vsel %vm2885, %v2947, %v2948
    %s2950 = scalar_lea.vmem %s3, 8
    %v2951 = vld [vmem:[%s2950] sm:$0xf]
    %v2952 = vunpack.c.l.b16 %v2889
    %v2953 = vunpack.c.l.b16 %v2893
    %v2954 = vunpack.c.l.b16 %v2897
    %v2955 = vunpack.c.l.b16 %v2901
    %v2956 = vunpack.c.l.b16 %v2905
    %v2957 = vunpack.c.l.b16 %v2909
    %v2958 = vunpack.c.l.b16 %v2913
    %v2959 = vunpack.c.l.b16 %v2917
    %v2960 = vunpack.c.l.b16 %v2921
    %v2961 = vunpack.c.l.b16 %v2925
    %v2962 = vunpack.c.l.b16 %v2929
    %v2963 = vunpack.c.l.b16 %v2933
    %v2964 = vunpack.c.l.b16 %v2937
    %v2965 = vunpack.c.l.b16 %v2941
    %v2966 = vunpack.c.l.b16 %v2945
    %v2967 = vunpack.c.l.b16 %v2949
    %v2968 = vpack.c.b16 %v2953, %v2952
    %v2969 = vpack.c.b16 %v2955, %v2954
    %v2970 = vpack.c.b16 %v2957, %v2956
    %v2971 = vpack.c.b16 %v2959, %v2958
    %v2972 = vpack.c.b16 %v2961, %v2960
    %v2973 = vpack.c.b16 %v2963, %v2962
    %v2974 = vpack.c.b16 %v2965, %v2964
    %v2975 = vpack.c.b16 %v2967, %v2966
    %v2977 = vsel %vm978, %v2968, 0
    %v2980 = vsel %vm978, %v2969, 0
    %v2983 = vsel %vm978, %v2970, 0
    %v2986 = vsel %vm978, %v2971, 0
    %v2989 = vsel %vm978, %v2972, 0
    %v2992 = vsel %vm978, %v2973, 0
    %v2995 = vsel %vm978, %v2974, 0
    %v2998 = vsel %vm978, %v2975, 0
    %v3001 = vsel %vm1698, %v2951, 0
    %3003 = vmatprep.subr.bf16.mxu0 0
    %3004 = vmatpush1.bf16.msra.mxu0 %v3001
    %3005 = vmatprep.subr.bf16.mxu0 0
    %3006 = vmatpush1.bf16.msra.mxu0 0
    %3007 = vmatprep.subr.bf16.mxu0 0
    %3008 = vmatpush1.bf16.msra.mxu0 0
    %3009 = vmatprep.subr.bf16.mxu0 0
    %3010 = vmatpush1.bf16.msra.mxu0 0
    %3011 = vmatprep.subr.bf16.mxu0 0
    %3012 = vmatpush1.bf16.msra.mxu0 0
    %3013 = vmatprep.subr.bf16.mxu0 0
    %3014 = vmatpush1.bf16.msra.mxu0 0
    %3015 = vmatprep.subr.bf16.mxu0 0
    %3016 = vmatpush1.bf16.msra.mxu0 0
    %3017 = vmatprep.subr.bf16.mxu0 0
    %3018 = vmatpush1.bf16.msra.mxu0 0
    %3019 = vmatprep.subr.bf16.mxu0 0
    %3020 = vmatpush1.bf16.msra.mxu0 0
    %3021 = vmatprep.subr.bf16.mxu0 0
    %3022 = vmatpush1.bf16.msra.mxu0 0
    %3023 = vmatprep.subr.bf16.mxu0 0
    %3024 = vmatpush1.bf16.msra.mxu0 0
    %3025 = vmatprep.subr.bf16.mxu0 0
    %3026 = vmatpush1.bf16.msra.mxu0 0
    %3027 = vmatprep.subr.bf16.mxu0 0
    %3028 = vmatpush1.bf16.msra.mxu0 0
    %3029 = vmatprep.subr.bf16.mxu0 0
    %3030 = vmatpush1.bf16.msra.mxu0 0
    %3031 = vmatprep.subr.bf16.mxu0 0
    %3032 = vmatpush1.bf16.msra.mxu0 0
    %3033 = vmatprep.subr.bf16.mxu0 0
    %3034 = vmatpush1.bf16.msra.mxu0 0
    %3035 = vmatprep.mubr.bf16.mxu0 0
    %3036 = vmatmul.mubr.bf16.gmra.mrb[0].mxu0 %v2977
    %v3037 = vpop.f32.mrb[0].mxu0
    %v3038 = vadd.f32 0.0, %v3037
    %v3039 = vpop.f32.mrb[0].mxu0
    %v3040 = vpop.f32.mrb[0].mxu0
    %v3041 = vadd.f32 0.0, %v3040
    %v3042 = vpop.f32.mrb[0].mxu0
    %3043 = vmatprep.mubr.bf16.mxu0 0
    %3044 = vmatmul.mubr.bf16.gmra.mrb[0].mxu0 %v2980
    %v3045 = vpop.f32.mrb[0].mxu0
    %v3046 = vadd.f32 0.0, %v3045
    %v3047 = vpop.f32.mrb[0].mxu0
    %v3048 = vpop.f32.mrb[0].mxu0
    %v3049 = vadd.f32 0.0, %v3048
    %v3050 = vpop.f32.mrb[0].mxu0
    %3051 = vmatprep.mubr.bf16.mxu0 0
    %3052 = vmatmul.mubr.bf16.gmra.mrb[0].mxu0 %v2983
    %v3053 = vpop.f32.mrb[0].mxu0
    %v3054 = vadd.f32 0.0, %v3053
    %v3055 = vpop.f32.mrb[0].mxu0
    %v3056 = vpop.f32.mrb[0].mxu0
    %v3057 = vadd.f32 0.0, %v3056
    %v3058 = vpop.f32.mrb[0].mxu0
    %3059 = vmatprep.mubr.bf16.mxu0 0
    %3060 = vmatmul.mubr.bf16.gmra.mrb[0].mxu0 %v2986
    %v3061 = vpop.f32.mrb[0].mxu0
    %v3062 = vadd.f32 0.0, %v3061
    %v3063 = vpop.f32.mrb[0].mxu0
    %v3064 = vpop.f32.mrb[0].mxu0
    %v3065 = vadd.f32 0.0, %v3064
    %v3066 = vpop.f32.mrb[0].mxu0
    %3067 = vmatprep.mubr.bf16.mxu0 0
    %3068 = vmatmul.mubr.bf16.gmra.mrb[0].mxu0 %v2989
    %v3069 = vpop.f32.mrb[0].mxu0
    %v3070 = vadd.f32 0.0, %v3069
    %v3071 = vpop.f32.mrb[0].mxu0
    %v3072 = vpop.f32.mrb[0].mxu0
    %v3073 = vadd.f32 0.0, %v3072
    %v3074 = vpop.f32.mrb[0].mxu0
    %3075 = vmatprep.mubr.bf16.mxu0 0
    %3076 = vmatmul.mubr.bf16.gmra.mrb[0].mxu0 %v2992
    %v3077 = vpop.f32.mrb[0].mxu0
    %v3078 = vadd.f32 0.0, %v3077
    %v3079 = vpop.f32.mrb[0].mxu0
    %v3080 = vpop.f32.mrb[0].mxu0
    %v3081 = vadd.f32 0.0, %v3080
    %v3082 = vpop.f32.mrb[0].mxu0
    %3083 = vmatprep.mubr.bf16.mxu0 0
    %3084 = vmatmul.mubr.bf16.gmra.mrb[0].mxu0 %v2995
    %v3085 = vpop.f32.mrb[0].mxu0
    %v3086 = vadd.f32 0.0, %v3085
    %v3087 = vpop.f32.mrb[0].mxu0
    %v3088 = vpop.f32.mrb[0].mxu0
    %v3089 = vadd.f32 0.0, %v3088
    %v3090 = vpop.f32.mrb[0].mxu0
    %3091 = vmatprep.mubr.bf16.mxu0 0
    %3092 = vmatmul.mubr.bf16.gmra.mrb[0].mxu0 %v2998
    %v3093 = vpop.f32.mrb[0].mxu0
    %v3094 = vadd.f32 0.0, %v3093
    %v3095 = vpop.f32.mrb[0].mxu0
    %v3096 = vpop.f32.mrb[0].mxu0
    %v3097 = vadd.f32 0.0, %v3096
    %v3098 = vpop.f32.mrb[0].mxu0
    %3099 = vdwg.mxu0
    %v3100 = vadd.f32 %v2815, %v3038
    %v3101 = vadd.f32 %v2816, %v3041
    %v3102 = vadd.f32 %v2817, %v3046
    %v3103 = vadd.f32 %v2818, %v3049
    %v3104 = vadd.f32 %v2819, %v3054
    %v3105 = vadd.f32 %v2820, %v3057
    %v3106 = vadd.f32 %v2821, %v3062
    %v3107 = vadd.f32 %v2822, %v3065
    %v3108 = vadd.f32 %v2823, %v3070
    %v3109 = vadd.f32 %v2824, %v3073
    %v3110 = vadd.f32 %v2825, %v3078
    %v3111 = vadd.f32 %v2826, %v3081
    %v3112 = vadd.f32 %v2827, %v3086
    %v3113 = vadd.f32 %v2828, %v3089
    %v3114 = vadd.f32 %v2829, %v3094
    %v3115 = vadd.f32 %v2830, %v3097
    %v3120 = vrot.slane %v2839, 5
    %v3121 = vrot.slane %v3120, 4
    %v3122 = vrot.slane %v2082, 5
    %v3123 = vsel %vm2885, %v3121, %v3122
    %v3124 = vrot.slane %v2849, 5
    %v3125 = vrot.slane %v3124, 4
    %v3126 = vrot.slane %v2102, 5
    %v3127 = vsel %vm2885, %v3125, %v3126
    %s3128 = scalar_lea.vmem %s3, 20
    %v3129 = vld [vmem:[%s3128] sm:$0xf]
    %v3130 = vunpack.c.l.b16 %v3123
    %v3131 = vunpack.c.l.b16 %v3127
    %v3132 = vpack.c.b16 %v2954, %v2953
    %v3133 = vpack.c.b16 %v2956, %v2955
    %v3134 = vpack.c.b16 %v2958, %v2957
    %v3135 = vpack.c.b16 %v3130, %v2959
    %v3136 = vpack.c.b16 %v2962, %v2961
    %v3137 = vpack.c.b16 %v2964, %v2963
    %v3138 = vpack.c.b16 %v2966, %v2965
    %v3139 = vpack.c.b16 %v3131, %v2967
    %v3141 = vsel %vm978, %v3132, 0
    %v3144 = vsel %vm978, %v3133, 0
    %v3147 = vsel %vm978, %v3134, 0
    %v3150 = vsel %vm978, %v3135, 0
    %v3153 = vsel %vm978, %v3136, 0
    %v3156 = vsel %vm978, %v3137, 0
    %v3159 = vsel %vm978, %v3138, 0
    %v3162 = vsel %vm978, %v3139, 0
    %v3165 = vsel %vm1698, %v3129, 0
    %3167 = vmatprep.subr.bf16.mxu0 0
    %3168 = vmatpush1.bf16.msra.mxu0 %v3165
    %3169 = vmatprep.subr.bf16.mxu0 0
    %3170 = vmatpush1.bf16.msra.mxu0 0
    %3171 = vmatprep.subr.bf16.mxu0 0
    %3172 = vmatpush1.bf16.msra.mxu0 0
    %3173 = vmatprep.subr.bf16.mxu0 0
    %3174 = vmatpush1.bf16.msra.mxu0 0
    %3175 = vmatprep.subr.bf16.mxu0 0
    %3176 = vmatpush1.bf16.msra.mxu0 0
    %3177 = vmatprep.subr.bf16.mxu0 0
    %3178 = vmatpush1.bf16.msra.mxu0 0
    %3179 = vmatprep.subr.bf16.mxu0 0
    %3180 = vmatpush1.bf16.msra.mxu0 0
    %3181 = vmatprep.subr.bf16.mxu0 0
    %3182 = vmatpush1.bf16.msra.mxu0 0
    %3183 = vmatprep.subr.bf16.mxu0 0
    %3184 = vmatpush1.bf16.msra.mxu0 0
    %3185 = vmatprep.subr.bf16.mxu0 0
    %3186 = vmatpush1.bf16.msra.mxu0 0
    %3187 = vmatprep.subr.bf16.mxu0 0
    %3188 = vmatpush1.bf16.msra.mxu0 0
    %3189 = vmatprep.subr.bf16.mxu0 0
    %3190 = vmatpush1.bf16.msra.mxu0 0
    %3191 = vmatprep.subr.bf16.mxu0 0
    %3192 = vmatpush1.bf16.msra.mxu0 0
    %3193 = vmatprep.subr.bf16.mxu0 0
    %3194 = vmatpush1.bf16.msra.mxu0 0
    %3195 = vmatprep.subr.bf16.mxu0 0
    %3196 = vmatpush1.bf16.msra.mxu0 0
    %3197 = vmatprep.subr.bf16.mxu0 0
    %3198 = vmatpush1.bf16.msra.mxu0 0
    %3199 = vmatprep.mubr.bf16.mxu0 0
    %3200 = vmatmul.mubr.bf16.gmra.mrb[0].mxu0 %v3141
    %v3201 = vpop.f32.mrb[0].mxu0
    %v3202 = vadd.f32 0.0, %v3201
    %v3203 = vpop.f32.mrb[0].mxu0
    %v3204 = vpop.f32.mrb[0].mxu0
    %v3205 = vadd.f32 0.0, %v3204
    %v3206 = vpop.f32.mrb[0].mxu0
    %3207 = vmatprep.mubr.bf16.mxu0 0
    %3208 = vmatmul.mubr.bf16.gmra.mrb[0].mxu0 %v3144
    %v3209 = vpop.f32.mrb[0].mxu0
    %v3210 = vadd.f32 0.0, %v3209
    %v3211 = vpop.f32.mrb[0].mxu0
    %v3212 = vpop.f32.mrb[0].mxu0
    %v3213 = vadd.f32 0.0, %v3212
    %v3214 = vpop.f32.mrb[0].mxu0
    %3215 = vmatprep.mubr.bf16.mxu0 0
    %3216 = vmatmul.mubr.bf16.gmra.mrb[0].mxu0 %v3147
    %v3217 = vpop.f32.mrb[0].mxu0
    %v3218 = vadd.f32 0.0, %v3217
    %v3219 = vpop.f32.mrb[0].mxu0
    %v3220 = vpop.f32.mrb[0].mxu0
    %v3221 = vadd.f32 0.0, %v3220
    %v3222 = vpop.f32.mrb[0].mxu0
    %3223 = vmatprep.mubr.bf16.mxu0 0
    %3224 = vmatmul.mubr.bf16.gmra.mrb[0].mxu0 %v3150
    %v3225 = vpop.f32.mrb[0].mxu0
    %v3226 = vadd.f32 0.0, %v3225
    %v3227 = vpop.f32.mrb[0].mxu0
    %v3228 = vpop.f32.mrb[0].mxu0
    %v3229 = vadd.f32 0.0, %v3228
    %v3230 = vpop.f32.mrb[0].mxu0
    %3231 = vmatprep.mubr.bf16.mxu0 0
    %3232 = vmatmul.mubr.bf16.gmra.mrb[0].mxu0 %v3153
    %v3233 = vpop.f32.mrb[0].mxu0
    %v3234 = vadd.f32 0.0, %v3233
    %v3235 = vpop.f32.mrb[0].mxu0
    %v3236 = vpop.f32.mrb[0].mxu0
    %v3237 = vadd.f32 0.0, %v3236
    %v3238 = vpop.f32.mrb[0].mxu0
    %3239 = vmatprep.mubr.bf16.mxu0 0
    %3240 = vmatmul.mubr.bf16.gmra.mrb[0].mxu0 %v3156
    %v3241 = vpop.f32.mrb[0].mxu0
    %v3242 = vadd.f32 0.0, %v3241
    %v3243 = vpop.f32.mrb[0].mxu0
    %v3244 = vpop.f32.mrb[0].mxu0
    %v3245 = vadd.f32 0.0, %v3244
    %v3246 = vpop.f32.mrb[0].mxu0
    %3247 = vmatprep.mubr.bf16.mxu0 0
    %3248 = vmatmul.mubr.bf16.gmra.mrb[0].mxu0 %v3159
    %v3249 = vpop.f32.mrb[0].mxu0
    %v3250 = vadd.f32 0.0, %v3249
    %v3251 = vpop.f32.mrb[0].mxu0
    %v3252 = vpop.f32.mrb[0].mxu0
    %v3253 = vadd.f32 0.0, %v3252
    %v3254 = vpop.f32.mrb[0].mxu0
    %3255 = vmatprep.mubr.bf16.mxu0 0
    %3256 = vmatmul.mubr.bf16.gmra.mrb[0].mxu0 %v3162
    %v3257 = vpop.f32.mrb[0].mxu0
    %v3258 = vadd.f32 0.0, %v3257
    %v3259 = vpop.f32.mrb[0].mxu0
    %v3260 = vpop.f32.mrb[0].mxu0
    %v3261 = vadd.f32 0.0, %v3260
    %v3262 = vpop.f32.mrb[0].mxu0
    %3263 = vdwg.mxu0
    %v3264 = vadd.f32 %v3100, %v3202
    %v3265 = vadd.f32 %v3101, %v3205
    %v3266 = vadd.f32 %v3102, %v3210
    %v3267 = vadd.f32 %v3103, %v3213
    %v3268 = vadd.f32 %v3104, %v3218
    %v3269 = vadd.f32 %v3105, %v3221
    %v3270 = vadd.f32 %v3106, %v3226
    %v3271 = vadd.f32 %v3107, %v3229
    %v3272 = vadd.f32 %v3108, %v3234
    %v3273 = vadd.f32 %v3109, %v3237
    %v3274 = vadd.f32 %v3110, %v3242
    %v3275 = vadd.f32 %v3111, %v3245
    %v3276 = vadd.f32 %v3112, %v3250
    %v3277 = vadd.f32 %v3113, %v3253
    %v3278 = vadd.f32 %v3114, %v3258
    %v3279 = vadd.f32 %v3115, %v3261
    %v3284 = vrot.slane %v2840, 5
    %v3285 = vrot.slane %v3284, 4
    %v3286 = vrot.slane %v2084, 5
    %v3287 = vsel %vm2885, %v3285, %v3286
    %v3288 = vrot.slane %v2850, 5
    %v3289 = vrot.slane %v3288, 4
    %v3290 = vrot.slane %v2104, 5
    %v3291 = vsel %vm2885, %v3289, %v3290
    %s3292 = scalar_lea.vmem %s3, 32
    %v3293 = vld [vmem:[%s3292] sm:$0xf]
    %v3294 = vunpack.c.l.b16 %v3287
    %v3295 = vunpack.c.l.b16 %v3291
    %v3296 = vpack.c.b16 %v3294, %v3130
    %v3297 = vpack.c.b16 %v3295, %v3131
    %v3299 = vsel %vm978, %v3296, 0
    %v3302 = vsel %vm978, %v3297, 0
    %v3305 = vsel %vm1698, %v3293, 0
    %3307 = vmatprep.subr.bf16.mxu0 0
    %3308 = vmatpush1.bf16.msra.mxu0 %v3305
    %3309 = vmatprep.subr.bf16.mxu0 0
    %3310 = vmatpush1.bf16.msra.mxu0 0
    %3311 = vmatprep.subr.bf16.mxu0 0
    %3312 = vmatpush1.bf16.msra.mxu0 0
    %3313 = vmatprep.subr.bf16.mxu0 0
    %3314 = vmatpush1.bf16.msra.mxu0 0
    %3315 = vmatprep.subr.bf16.mxu0 0
    %3316 = vmatpush1.bf16.msra.mxu0 0
    %3317 = vmatprep.subr.bf16.mxu0 0
    %3318 = vmatpush1.bf16.msra.mxu0 0
    %3319 = vmatprep.subr.bf16.mxu0 0
    %3320 = vmatpush1.bf16.msra.mxu0 0
    %3321 = vmatprep.subr.bf16.mxu0 0
    %3322 = vmatpush1.bf16.msra.mxu0 0
    %3323 = vmatprep.subr.bf16.mxu0 0
    %3324 = vmatpush1.bf16.msra.mxu0 0
    %3325 = vmatprep.subr.bf16.mxu0 0
    %3326 = vmatpush1.bf16.msra.mxu0 0
    %3327 = vmatprep.subr.bf16.mxu0 0
    %3328 = vmatpush1.bf16.msra.mxu0 0
    %3329 = vmatprep.subr.bf16.mxu0 0
    %3330 = vmatpush1.bf16.msra.mxu0 0
    %3331 = vmatprep.subr.bf16.mxu0 0
    %3332 = vmatpush1.bf16.msra.mxu0 0
    %3333 = vmatprep.subr.bf16.mxu0 0
    %3334 = vmatpush1.bf16.msra.mxu0 0
    %3335 = vmatprep.subr.bf16.mxu0 0
    %3336 = vmatpush1.bf16.msra.mxu0 0
    %3337 = vmatprep.subr.bf16.mxu0 0
    %3338 = vmatpush1.bf16.msra.mxu0 0
    %3339 = vmatprep.mubr.bf16.mxu0 0
    %3340 = vmatmul.mubr.bf16.gmra.mrb[0].mxu0 %v2980
    %v3341 = vpop.f32.mrb[0].mxu0
    %v3342 = vadd.f32 0.0, %v3341
    %v3343 = vpop.f32.mrb[0].mxu0
    %v3344 = vpop.f32.mrb[0].mxu0
    %v3345 = vadd.f32 0.0, %v3344
    %v3346 = vpop.f32.mrb[0].mxu0
    %3347 = vmatprep.mubr.bf16.mxu0 0
    %3348 = vmatmul.mubr.bf16.gmra.mrb[0].mxu0 %v2983
    %v3349 = vpop.f32.mrb[0].mxu0
    %v3350 = vadd.f32 0.0, %v3349
    %v3351 = vpop.f32.mrb[0].mxu0
    %v3352 = vpop.f32.mrb[0].mxu0
    %v3353 = vadd.f32 0.0, %v3352
    %v3354 = vpop.f32.mrb[0].mxu0
    %3355 = vmatprep.mubr.bf16.mxu0 0
    %3356 = vmatmul.mubr.bf16.gmra.mrb[0].mxu0 %v2986
    %v3357 = vpop.f32.mrb[0].mxu0
    %v3358 = vadd.f32 0.0, %v3357
    %v3359 = vpop.f32.mrb[0].mxu0
    %v3360 = vpop.f32.mrb[0].mxu0
    %v3361 = vadd.f32 0.0, %v3360
    %v3362 = vpop.f32.mrb[0].mxu0
    %3363 = vmatprep.mubr.bf16.mxu0 0
    %3364 = vmatmul.mubr.bf16.gmra.mrb[0].mxu0 %v3299
    %v3365 = vpop.f32.mrb[0].mxu0
    %v3366 = vadd.f32 0.0, %v3365
    %v3367 = vpop.f32.mrb[0].mxu0
    %v3368 = vpop.f32.mrb[0].mxu0
    %v3369 = vadd.f32 0.0, %v3368
    %v3370 = vpop.f32.mrb[0].mxu0
    %3371 = vmatprep.mubr.bf16.mxu0 0
    %3372 = vmatmul.mubr.bf16.gmra.mrb[0].mxu0 %v2992
    %v3373 = vpop.f32.mrb[0].mxu0
    %v3374 = vadd.f32 0.0, %v3373
    %v3375 = vpop.f32.mrb[0].mxu0
    %v3376 = vpop.f32.mrb[0].mxu0
    %v3377 = vadd.f32 0.0, %v3376
    %v3378 = vpop.f32.mrb[0].mxu0
    %3379 = vmatprep.mubr.bf16.mxu0 0
    %3380 = vmatmul.mubr.bf16.gmra.mrb[0].mxu0 %v2995
    %v3381 = vpop.f32.mrb[0].mxu0
    %v3382 = vadd.f32 0.0, %v3381
    %v3383 = vpop.f32.mrb[0].mxu0
    %v3384 = vpop.f32.mrb[0].mxu0
    %v3385 = vadd.f32 0.0, %v3384
    %v3386 = vpop.f32.mrb[0].mxu0
    %3387 = vmatprep.mubr.bf16.mxu0 0
    %3388 = vmatmul.mubr.bf16.gmra.mrb[0].mxu0 %v2998
    %v3389 = vpop.f32.mrb[0].mxu0
    %v3390 = vadd.f32 0.0, %v3389
    %v3391 = vpop.f32.mrb[0].mxu0
    %v3392 = vpop.f32.mrb[0].mxu0
    %v3393 = vadd.f32 0.0, %v3392
    %v3394 = vpop.f32.mrb[0].mxu0
    %3395 = vmatprep.mubr.bf16.mxu0 0
    %3396 = vmatmul.mubr.bf16.gmra.mrb[0].mxu0 %v3302
    %v3397 = vpop.f32.mrb[0].mxu0
    %v3398 = vadd.f32 0.0, %v3397
    %v3399 = vpop.f32.mrb[0].mxu0
    %v3400 = vpop.f32.mrb[0].mxu0
    %v3401 = vadd.f32 0.0, %v3400
    %v3402 = vpop.f32.mrb[0].mxu0
    %3403 = vdwg.mxu0
    %v3404 = vadd.f32 %v3264, %v3342
    %v3405 = vadd.f32 %v3265, %v3345
    %v3406 = vadd.f32 %v3266, %v3350
    %v3407 = vadd.f32 %v3267, %v3353
    %v3408 = vadd.f32 %v3268, %v3358
    %v3409 = vadd.f32 %v3269, %v3361
    %v3410 = vadd.f32 %v3270, %v3366
    %v3411 = vadd.f32 %v3271, %v3369
    %v3412 = vadd.f32 %v3272, %v3374
    %v3413 = vadd.f32 %v3273, %v3377
    %v3414 = vadd.f32 %v3274, %v3382
    %v3415 = vadd.f32 %v3275, %v3385
    %v3416 = vadd.f32 %v3276, %v3390
    %v3417 = vadd.f32 %v3277, %v3393
    %v3418 = vadd.f32 %v3278, %v3398
    %v3419 = vadd.f32 %v3279, %v3401
    %v3420 = vld [vmem:[%s0] sm:$0xf]
    %v3421 = vld [vmem:[%s0 + $0x8] sm:$0xf]
    %v3422 = vld [vmem:[%s0 + $0x10] sm:$0xf]
    %v3423 = vld [vmem:[%s0 + $0x18] sm:$0xf]
    %v3424 = vld [vmem:[%s0 + $0x20] sm:$0xf]
    %v3425 = vld [vmem:[%s0 + $0x28] sm:$0xf]
    %v3426 = vld [vmem:[%s0 + $0x30] sm:$0xf]
    %v3427 = vld [vmem:[%s0 + $0x38] sm:$0xf]
    %v3428 = vld [vmem:[%s0 + $0x48] sm:$0xf]
    %v3429 = vld [vmem:[%s0 + $0x50] sm:$0xf]
    %v3430 = vld [vmem:[%s0 + $0x58] sm:$0xf]
    %v3431 = vld [vmem:[%s0 + $0x60] sm:$0xf]
    %v3432 = vld [vmem:[%s0 + $0x68] sm:$0xf]
    %v3433 = vld [vmem:[%s0 + $0x70] sm:$0xf]
    %v3434 = vld [vmem:[%s0 + $0x78] sm:$0xf]
    %v3435 = vld [vmem:[%s0 + $0x80] sm:$0xf]
    %v3436 = vld [vmem:[%s2] sm:$0xf]
    %v3437 = vld [vmem:[%s2 + $0x4] sm:$0xf]
    %v3454 = vunpack.c.l.b16 %v3420
    %v3455 = vunpack.c.l.b16 %v3421
    %v3456 = vunpack.c.l.b16 %v3422
    %v3457 = vunpack.c.l.b16 %v3423
    %v3458 = vunpack.c.l.b16 %v3424
    %v3459 = vunpack.c.l.b16 %v3425
    %v3460 = vunpack.c.l.b16 %v3426
    %v3461 = vunpack.c.l.b16 %v3427
    %v3462 = vunpack.c.l.b16 %v3428
    %v3463 = vunpack.c.l.b16 %v3429
    %v3464 = vunpack.c.l.b16 %v3430
    %v3465 = vunpack.c.l.b16 %v3431
    %v3466 = vunpack.c.l.b16 %v3432
    %v3467 = vunpack.c.l.b16 %v3433
    %v3468 = vunpack.c.l.b16 %v3434
    %v3469 = vunpack.c.l.b16 %v3435
    %v3470 = vpack.c.b16 %v3455, %v3454
    %v3471 = vpack.c.b16 %v3457, %v3456
    %v3472 = vpack.c.b16 %v3459, %v3458
    %v3473 = vpack.c.b16 %v3461, %v3460
    %v3474 = vpack.c.b16 %v3463, %v3462
    %v3475 = vpack.c.b16 %v3465, %v3464
    %v3476 = vpack.c.b16 %v3467, %v3466
    %v3477 = vpack.c.b16 %v3469, %v3468
    %v3480 = vunpack.c.l.b16 %v3436
    %v3481 = vunpack.c.l.b16 %v3437
    %v3482 = vpack.c.b16 %v3481, %v3480
    %v3485 = vsel %vm100, %v3470, 0
    %v3488 = vsel %vm100, %v3471, 0
    %v3491 = vsel %vm100, %v3472, 0
    %v3494 = vsel %vm100, %v3473, 0
    %v3497 = vsel %vm100, %v3474, 0
    %v3500 = vsel %vm100, %v3475, 0
    %v3503 = vsel %vm100, %v3476, 0
    %v3506 = vsel %vm100, %v3477, 0
    %3508 = vmatprep.subr.bf16.mxu0 0
    %3509 = vmatpush1.bf16.msra.mxu0 %v3482
    %3510 = vmatprep.subr.bf16.mxu0 0
    %3511 = vmatpush1.bf16.msra.mxu0 0
    %3512 = vmatprep.subr.bf16.mxu0 0
    %3513 = vmatpush1.bf16.msra.mxu0 0
    %3514 = vmatprep.subr.bf16.mxu0 0
    %3515 = vmatpush1.bf16.msra.mxu0 0
    %3516 = vmatprep.subr.bf16.mxu0 0
    %3517 = vmatpush1.bf16.msra.mxu0 0
    %3518 = vmatprep.subr.bf16.mxu0 0
    %3519 = vmatpush1.bf16.msra.mxu0 0
    %3520 = vmatprep.subr.bf16.mxu0 0
    %3521 = vmatpush1.bf16.msra.mxu0 0
    %3522 = vmatprep.subr.bf16.mxu0 0
    %3523 = vmatpush1.bf16.msra.mxu0 0
    %3524 = vmatprep.subr.bf16.mxu0 0
    %3525 = vmatpush1.bf16.msra.mxu0 0
    %3526 = vmatprep.subr.bf16.mxu0 0
    %3527 = vmatpush1.bf16.msra.mxu0 0
    %3528 = vmatprep.subr.bf16.mxu0 0
    %3529 = vmatpush1.bf16.msra.mxu0 0
    %3530 = vmatprep.subr.bf16.mxu0 0
    %3531 = vmatpush1.bf16.msra.mxu0 0
    %3532 = vmatprep.subr.bf16.mxu0 0
    %3533 = vmatpush1.bf16.msra.mxu0 0
    %3534 = vmatprep.subr.bf16.mxu0 0
    %3535 = vmatpush1.bf16.msra.mxu0 0
    %3536 = vmatprep.subr.bf16.mxu0 0
    %3537 = vmatpush1.bf16.msra.mxu0 0
    %3538 = vmatprep.subr.bf16.mxu0 0
    %3539 = vmatpush1.bf16.msra.mxu0 0
    %3540 = vmatprep.mubr.bf16.mxu0 0
    %3541 = vmatmul.mubr.bf16.gmra.mrb[0].mxu0 %v3485
    %v3542 = vpop.f32.mrb[0].mxu0
    %v3543 = vadd.f32 0.0, %v3542
    %v3544 = vpop.f32.mrb[0].mxu0
    %v3545 = vpop.f32.mrb[0].mxu0
    %v3546 = vadd.f32 0.0, %v3545
    %v3547 = vpop.f32.mrb[0].mxu0
    %3548 = vmatprep.mubr.bf16.mxu0 0
    %3549 = vmatmul.mubr.bf16.gmra.mrb[0].mxu0 %v3488
    %v3550 = vpop.f32.mrb[0].mxu0
    %v3551 = vadd.f32 0.0, %v3550
    %v3552 = vpop.f32.mrb[0].mxu0
    %v3553 = vpop.f32.mrb[0].mxu0
    %v3554 = vadd.f32 0.0, %v3553
    %v3555 = vpop.f32.mrb[0].mxu0
    %3556 = vmatprep.mubr.bf16.mxu0 0
    %3557 = vmatmul.mubr.bf16.gmra.mrb[0].mxu0 %v3491
    %v3558 = vpop.f32.mrb[0].mxu0
    %v3559 = vadd.f32 0.0, %v3558
    %v3560 = vpop.f32.mrb[0].mxu0
    %v3561 = vpop.f32.mrb[0].mxu0
    %v3562 = vadd.f32 0.0, %v3561
    %v3563 = vpop.f32.mrb[0].mxu0
    %3564 = vmatprep.mubr.bf16.mxu0 0
    %3565 = vmatmul.mubr.bf16.gmra.mrb[0].mxu0 %v3494
    %v3566 = vpop.f32.mrb[0].mxu0
    %v3567 = vadd.f32 0.0, %v3566
    %v3568 = vpop.f32.mrb[0].mxu0
    %v3569 = vpop.f32.mrb[0].mxu0
    %v3570 = vadd.f32 0.0, %v3569
    %v3571 = vpop.f32.mrb[0].mxu0
    %3572 = vmatprep.mubr.bf16.mxu0 0
    %3573 = vmatmul.mubr.bf16.gmra.mrb[0].mxu0 %v3497
    %v3574 = vpop.f32.mrb[0].mxu0
    %v3575 = vadd.f32 0.0, %v3574
    %v3576 = vpop.f32.mrb[0].mxu0
    %v3577 = vpop.f32.mrb[0].mxu0
    %v3578 = vadd.f32 0.0, %v3577
    %v3579 = vpop.f32.mrb[0].mxu0
    %3580 = vmatprep.mubr.bf16.mxu0 0
    %3581 = vmatmul.mubr.bf16.gmra.mrb[0].mxu0 %v3500
    %v3582 = vpop.f32.mrb[0].mxu0
    %v3583 = vadd.f32 0.0, %v3582
    %v3584 = vpop.f32.mrb[0].mxu0
    %v3585 = vpop.f32.mrb[0].mxu0
    %v3586 = vadd.f32 0.0, %v3585
    %v3587 = vpop.f32.mrb[0].mxu0
    %3588 = vmatprep.mubr.bf16.mxu0 0
    %3589 = vmatmul.mubr.bf16.gmra.mrb[0].mxu0 %v3503
    %v3590 = vpop.f32.mrb[0].mxu0
    %v3591 = vadd.f32 0.0, %v3590
    %v3592 = vpop.f32.mrb[0].mxu0
    %v3593 = vpop.f32.mrb[0].mxu0
    %v3594 = vadd.f32 0.0, %v3593
    %v3595 = vpop.f32.mrb[0].mxu0
    %3596 = vmatprep.mubr.bf16.mxu0 0
    %3597 = vmatmul.mubr.bf16.gmra.mrb[0].mxu0 %v3506
    %v3598 = vpop.f32.mrb[0].mxu0
    %v3599 = vadd.f32 0.0, %v3598
    %v3600 = vpop.f32.mrb[0].mxu0
    %v3601 = vpop.f32.mrb[0].mxu0
    %v3602 = vadd.f32 0.0, %v3601
    %v3603 = vpop.f32.mrb[0].mxu0
    %3604 = vdwg.mxu0
    %v3605 = vsel %vm978, %v3404, 0.0
    %v3606 = vsel %vm978, %v3405, 0.0
    %v3607 = vadd.f32 %v3605, %v3606
    %v3608 = vsel %vm978, %v3406, 0.0
    %v3609 = vadd.f32 %v3607, %v3608
    %v3610 = vsel %vm978, %v3407, 0.0
    %v3611 = vadd.f32 %v3609, %v3610
    %v3612 = vsel %vm978, %v3408, 0.0
    %v3613 = vadd.f32 %v3611, %v3612
    %v3614 = vsel %vm978, %v3409, 0.0
    %v3615 = vadd.f32 %v3613, %v3614
    %v3616 = vsel %vm978, %v3410, 0.0
    %v3617 = vadd.f32 %v3615, %v3616
    %v3618 = vsel %vm978, %v3411, 0.0
    %v3619 = vadd.f32 %v3617, %v3618
    %v3620 = vsel %vm978, %v3412, 0.0
    %v3621 = vadd.f32 %v3619, %v3620
    %v3622 = vsel %vm978, %v3413, 0.0
    %v3623 = vadd.f32 %v3621, %v3622
    %v3624 = vsel %vm978, %v3414, 0.0
    %v3625 = vadd.f32 %v3623, %v3624
    %v3626 = vsel %vm978, %v3415, 0.0
    %v3627 = vadd.f32 %v3625, %v3626
    %v3628 = vsel %vm978, %v3416, 0.0
    %v3629 = vadd.f32 %v3627, %v3628
    %v3630 = vsel %vm978, %v3417, 0.0
    %v3631 = vadd.f32 %v3629, %v3630
    %v3632 = vsel %vm978, %v3418, 0.0
    %v3633 = vadd.f32 %v3631, %v3632
    %v3634 = vsel %vm978, %v3419, 0.0
    %v3635 = vadd.f32 %v3633, %v3634
    %v3636 = vrot.slane %v3635, 4
    %v3637 = vadd.f32 %v3635, %v3636
    %v3638 = vrot.slane %v3637, 2
    %v3639 = vadd.f32 %v3637, %v3638
    %v3640 = vrot.slane %v3639, 1
    %v3641 = vadd.f32 %v3639, %v3640
    %v3642 = vmul.f32 %v3641, 0.0078125
    %v3643 = vsub.f32 %v3404, %v3642
    %v3644 = vsub.f32 %v3405, %v3642
    %v3645 = vsub.f32 %v3406, %v3642
    %v3646 = vsub.f32 %v3407, %v3642
    %v3647 = vsub.f32 %v3408, %v3642
    %v3648 = vsub.f32 %v3409, %v3642
    %v3649 = vsub.f32 %v3410, %v3642
    %v3650 = vsub.f32 %v3411, %v3642
    %v3651 = vsub.f32 %v3412, %v3642
    %v3652 = vsub.f32 %v3413, %v3642
    %v3653 = vsub.f32 %v3414, %v3642
    %v3654 = vsub.f32 %v3415, %v3642
    %v3655 = vsub.f32 %v3416, %v3642
    %v3656 = vsub.f32 %v3417, %v3642
    %v3657 = vsub.f32 %v3418, %v3642
    %v3658 = vsub.f32 %v3419, %v3642
    %v3659 = vmul.f32 %v3643, %v3643
    %v3660 = vmul.f32 %v3644, %v3644
    %v3661 = vmul.f32 %v3645, %v3645
    %v3662 = vmul.f32 %v3646, %v3646
    %v3663 = vmul.f32 %v3647, %v3647
    %v3664 = vmul.f32 %v3648, %v3648
    %v3665 = vmul.f32 %v3649, %v3649
    %v3666 = vmul.f32 %v3650, %v3650
    %v3667 = vmul.f32 %v3651, %v3651
    %v3668 = vmul.f32 %v3652, %v3652
    %v3669 = vmul.f32 %v3653, %v3653
    %v3670 = vmul.f32 %v3654, %v3654
    %v3671 = vmul.f32 %v3655, %v3655
    %v3672 = vmul.f32 %v3656, %v3656
    %v3673 = vmul.f32 %v3657, %v3657
    %v3674 = vmul.f32 %v3658, %v3658
    %v3675 = vsel %vm978, %v3659, 0.0
    %v3676 = vsel %vm978, %v3660, 0.0
    %v3677 = vadd.f32 %v3675, %v3676
    %v3678 = vsel %vm978, %v3661, 0.0
    %v3679 = vadd.f32 %v3677, %v3678
    %v3680 = vsel %vm978, %v3662, 0.0
    %v3681 = vadd.f32 %v3679, %v3680
    %v3682 = vsel %vm978, %v3663, 0.0
    %v3683 = vadd.f32 %v3681, %v3682
    %v3684 = vsel %vm978, %v3664, 0.0
    %v3685 = vadd.f32 %v3683, %v3684
    %v3686 = vsel %vm978, %v3665, 0.0
    %v3687 = vadd.f32 %v3685, %v3686
    %v3688 = vsel %vm978, %v3666, 0.0
    %v3689 = vadd.f32 %v3687, %v3688
    %v3690 = vsel %vm978, %v3667, 0.0
    %v3691 = vadd.f32 %v3689, %v3690
    %v3692 = vsel %vm978, %v3668, 0.0
    %v3693 = vadd.f32 %v3691, %v3692
    %v3694 = vsel %vm978, %v3669, 0.0
    %v3695 = vadd.f32 %v3693, %v3694
    %v3696 = vsel %vm978, %v3670, 0.0
    %v3697 = vadd.f32 %v3695, %v3696
    %v3698 = vsel %vm978, %v3671, 0.0
    %v3699 = vadd.f32 %v3697, %v3698
    %v3700 = vsel %vm978, %v3672, 0.0
    %v3701 = vadd.f32 %v3699, %v3700
    %v3702 = vsel %vm978, %v3673, 0.0
    %v3703 = vadd.f32 %v3701, %v3702
    %v3704 = vsel %vm978, %v3674, 0.0
    %v3705 = vadd.f32 %v3703, %v3704
    %v3706 = vrot.slane %v3705, 4
    %v3707 = vadd.f32 %v3705, %v3706
    %v3708 = vrot.slane %v3707, 2
    %v3709 = vadd.f32 %v3707, %v3708
    %v3710 = vrot.slane %v3709, 1
    %v3711 = vadd.f32 %v3709, %v3710
    %v3712 = vmul.f32 %v3711, 0.0078125
    %v3713 = vld [vmem:[%s6] sm:$0x1]
    %v3714 = vadd.f32 %v3712, 1e-05
    %v3715 = vrsqrt.pop %v3714
    %v3716 = vmul.f32 %v3713, %v3715
    %v3718 = vlaneseq
    %v3719 = vshrl.u32 %v3718, 7
    %v3720 = vsub.s32 0, %v3719
    %v3721 = vrot.slane %v3716, %v3720
    %v3723 = vmul.f32 %v3643, %v3721
    %v3724 = vmul.f32 %v3644, %v3721
    %v3725 = vmul.f32 %v3645, %v3721
    %v3726 = vmul.f32 %v3646, %v3721
    %v3727 = vmul.f32 %v3647, %v3721
    %v3728 = vmul.f32 %v3648, %v3721
    %v3729 = vmul.f32 %v3649, %v3721
    %v3730 = vmul.f32 %v3650, %v3721
    %v3731 = vmul.f32 %v3651, %v3721
    %v3732 = vmul.f32 %v3652, %v3721
    %v3733 = vmul.f32 %v3653, %v3721
    %v3734 = vmul.f32 %v3654, %v3721
    %v3735 = vmul.f32 %v3655, %v3721
    %v3736 = vmul.f32 %v3656, %v3721
    %v3737 = vmul.f32 %v3657, %v3721
    %v3738 = vmul.f32 %v3658, %v3721
    %v3739 = vld [vmem:[%s7] sm:$0x1]
    %v3741 = vlaneseq
    %v3742 = vshrl.u32 %v3741, 7
    %v3743 = vsub.s32 0, %v3742
    %v3744 = vrot.slane %v3739, %v3743
    %v3746 = vadd.f32 %v3723, %v3744
    %v3747 = vadd.f32 %v3724, %v3744
    %v3748 = vadd.f32 %v3725, %v3744
    %v3749 = vadd.f32 %v3726, %v3744
    %v3750 = vadd.f32 %v3727, %v3744
    %v3751 = vadd.f32 %v3728, %v3744
    %v3752 = vadd.f32 %v3729, %v3744
    %v3753 = vadd.f32 %v3730, %v3744
    %v3754 = vadd.f32 %v3731, %v3744
    %v3755 = vadd.f32 %v3732, %v3744
    %v3756 = vadd.f32 %v3733, %v3744
    %v3757 = vadd.f32 %v3734, %v3744
    %v3758 = vadd.f32 %v3735, %v3744
    %v3759 = vadd.f32 %v3736, %v3744
    %v3760 = vadd.f32 %v3737, %v3744
    %v3761 = vadd.f32 %v3738, %v3744
    %v3762 = vadd.f32 %v3746, %v3543
    %v3763 = vadd.f32 %v3747, %v3546
    %v3764 = vadd.f32 %v3748, %v3551
    %v3765 = vadd.f32 %v3749, %v3554
    %v3766 = vadd.f32 %v3750, %v3559
    %v3767 = vadd.f32 %v3751, %v3562
    %v3768 = vadd.f32 %v3752, %v3567
    %v3769 = vadd.f32 %v3753, %v3570
    %v3770 = vadd.f32 %v3754, %v3575
    %v3771 = vadd.f32 %v3755, %v3578
    %v3772 = vadd.f32 %v3756, %v3583
    %v3773 = vadd.f32 %v3757, %v3586
    %v3774 = vadd.f32 %v3758, %v3591
    %v3775 = vadd.f32 %v3759, %v3594
    %v3776 = vadd.f32 %v3760, %v3599
    %v3777 = vadd.f32 %v3761, %v3602
    %v3778 = vmax.f32 %v3762, 0.0
    %v3779 = vmax.f32 %v3763, 0.0
    %v3780 = vmax.f32 %v3764, 0.0
    %v3781 = vmax.f32 %v3765, 0.0
    %v3782 = vmax.f32 %v3766, 0.0
    %v3783 = vmax.f32 %v3767, 0.0
    %v3784 = vmax.f32 %v3768, 0.0
    %v3785 = vmax.f32 %v3769, 0.0
    %v3786 = vmax.f32 %v3770, 0.0
    %v3787 = vmax.f32 %v3771, 0.0
    %v3788 = vmax.f32 %v3772, 0.0
    %v3789 = vmax.f32 %v3773, 0.0
    %v3790 = vmax.f32 %v3774, 0.0
    %v3791 = vmax.f32 %v3775, 0.0
    %v3792 = vmax.f32 %v3776, 0.0
    %v3793 = vmax.f32 %v3777, 0.0
    %3794 = vst.msk [vmem:[#allocation3] sm:$0xff] %vm978, %v3778
    %3795 = vst.msk [vmem:[#allocation3 + $0x8] sm:$0xff] %vm978, %v3779
    %3796 = vst.msk [vmem:[#allocation3 + $0x10] sm:$0xff] %vm978, %v3780
    %3797 = vst.msk [vmem:[#allocation3 + $0x18] sm:$0xff] %vm978, %v3781
    %3798 = vst.msk [vmem:[#allocation3 + $0x20] sm:$0xff] %vm978, %v3782
    %3799 = vst.msk [vmem:[#allocation3 + $0x28] sm:$0xff] %vm978, %v3783
    %3800 = vst.msk [vmem:[#allocation3 + $0x30] sm:$0xff] %vm978, %v3784
    %3801 = vst.msk [vmem:[#allocation3 + $0x38] sm:$0xff] %vm978, %v3785
    %3802 = vst.msk [vmem:[#allocation3 + $0x40] sm:$0xff] %vm978, %v3786
    %3803 = vst.msk [vmem:[#allocation3 + $0x48] sm:$0xff] %vm978, %v3787
    %3804 = vst.msk [vmem:[#allocation3 + $0x50] sm:$0xff] %vm978, %v3788
    %3805 = vst.msk [vmem:[#allocation3 + $0x58] sm:$0xff] %vm978, %v3789
    %3806 = vst.msk [vmem:[#allocation3 + $0x60] sm:$0xff] %vm978, %v3790
    %3807 = vst.msk [vmem:[#allocation3 + $0x68] sm:$0xff] %vm978, %v3791
    %3808 = vst.msk [vmem:[#allocation3 + $0x70] sm:$0xff] %vm978, %v3792
    %3809 = vst.msk [vmem:[#allocation3 + $0x78] sm:$0xff] %vm978, %v3793
    // Predicated region
    $region34: #{tpu_custom_call.1} parent=1 // pred_check
      _
    $region35: #{tpu_custom_call.1} parent=1 // pred_check_branch
      %3811 = sbr.rel (0) target = $region37
    $region36: #{tpu_custom_call.1} parent=1 // pred_region
      %s3813 = ssub.s32 2048, 2048
      %3814 = vsyncadd [#allocation4], %s3813
      %s3815 = sshll.u32 [#allocation3], 4
      %s3816 = int_to_ptr.vmem [resolvable:$true] %s3815
      %3821 = dma.vmem_to_hbm [thread:$0]  %s3816, 2048, %s8, [#allocation4], 128, 128, 8
    $region37: #{tpu_custom_call.1} parent=1 // pred_fallthru
      _
    // Predicated region
    $region38: #{tpu_custom_call.1} parent=1 // pred_check
      _
    $region39: #{tpu_custom_call.1} parent=1 // pred_check_branch
      %3823 = sbr.rel (0) target = $region41
    $region40: #{tpu_custom_call.1} parent=1 // pred_region
      %3824 = dma.done [#allocation4], 2048
    $region41: #{tpu_custom_call.1} parent=1 // pred_fallthru
      _
    %3825 = vsyncpa [#allocation4], 1

</llo_original>
